<compile_context>
chip_gen: v6e
topology: v6e:2x2x1
jax: 0.10.0
libtpu: 0.0.40
codegen_flags: <defaults>
</compile_context>

<pallas_src>
import functools
import math

import jax
import jax.numpy as jnp
from jax import lax
from jax.experimental import pallas as pl
from jax.experimental.pallas import tpu as pltpu

# ----------------------------- config ---------------------------------------
B = 2            # batch
S = 8            # sequence length
H = 64           # hidden size
NH = 2           # attention heads
DH = H // NH     # head dim
FF = 128         # intermediate (feed-forward) size
VOCAB = 128      # vocab size (synthetic)
MAX_POS = 32     # max position embeddings
TYPE_VOCAB = 2   # token type vocab
LAYERS = 2       # encoder layers
NUM_LABELS = 2   # classifier labels
LN_EPS = 1e-12   # BERT layernorm eps
LANE = 128       # lane padding for the classifier output (lane-dense store)


# ----------------------------- fused kernel ---------------------------------
def _layernorm(x, g, b):
    mean = jnp.mean(x, axis=-1, keepdims=True)
    var = jnp.mean(jnp.square(x - mean), axis=-1, keepdims=True)
    return (x - mean) * lax.rsqrt(var + LN_EPS) * g + b


def _fused_bert_kernel(emb_ref, mask_ref, eg_ref, eb_ref,
                       wqkv_ref, bqkv_ref, wo_ref, bo_ref,
                       ln1g_ref, ln1b_ref,
                       wi_ref, bi_ref, wf_ref, bf_ref,
                       ln2g_ref, ln2b_ref,
                       poolw_ref, poolb_ref, clsw_ref, clsb_ref,
                       o_ref):
    """Whole BERT-classification forward on VMEM-resident tensors."""
    inv_sqrt_dh = jnp.float32(1.0 / math.sqrt(DH))
    inv_sqrt2 = jnp.float32(1.0 / math.sqrt(2.0))

    mask = mask_ref[...]                                  # (B, S) additive bias

    # Embedding LayerNorm (no residual).
    h = _layernorm(emb_ref[...], eg_ref[...], eb_ref[...])   # (B*S, H)
    # dropout(hidden_dropout_prob) is identity at inference.

    for l in range(LAYERS):                               # static unroll (2)
        x = h

        # Fused QKV projection: one (B*S,H)@(H,3H) matmul.
        qkv = jnp.dot(x, wqkv_ref[l],
                      preferred_element_type=jnp.float32) + bqkv_ref[l]
        q = qkv[:, 0 * H:1 * H]
        k = qkv[:, 1 * H:2 * H]
        v = qkv[:, 2 * H:3 * H]

        # Attention: heads are contiguous DH-lane column blocks; per (b, head)
        # tiles are tiny, so a static unrolled loop keeps everything in vregs.
        batch_ctx = []
        for b in range(B):
            qb = q[b * S:(b + 1) * S]                     # (S, H)
            kb = k[b * S:(b + 1) * S]
            vb = v[b * S:(b + 1) * S]
            mb = mask[b:b + 1, :]                         # (1, S) key-mask bias
            heads = []
            for hh in range(NH):
                qh = qb[:, hh * DH:(hh + 1) * DH]         # (S, DH)
                kh = kb[:, hh * DH:(hh + 1) * DH]
                vh = vb[:, hh * DH:(hh + 1) * DH]
                s = lax.dot_general(qh, kh, (((1,), (1,)), ((), ())),
                                    preferred_element_type=jnp.float32)
                s = s * inv_sqrt_dh + mb                  # (S, S)
                s = s - jnp.max(s, axis=-1, keepdims=True)
                p = jnp.exp(s)
                p = p / jnp.sum(p, axis=-1, keepdims=True)
                heads.append(jnp.dot(p, vh,
                                     preferred_element_type=jnp.float32))
            batch_ctx.append(jnp.concatenate(heads, axis=-1))   # (S, H)
        ctx = jnp.concatenate(batch_ctx, axis=0)                # (B*S, H)

        # Attention output projection + residual + LayerNorm.
        attn_out = jnp.dot(ctx, wo_ref[l],
                           preferred_element_type=jnp.float32) + bo_ref[l]
        h = _layernorm(attn_out + x, ln1g_ref[l], ln1b_ref[l])

        # Feed-forward with exact-erf BERT GELU.
        ff = jnp.dot(h, wi_ref[l],
                     preferred_element_type=jnp.float32) + bi_ref[l]
        ff = 0.5 * ff * (1.0 + lax.erf(ff * inv_sqrt2))
        ff_out = jnp.dot(ff, wf_ref[l],
                         preferred_element_type=jnp.float32) + bf_ref[l]
        h = _layernorm(ff_out + h, ln2g_ref[l], ln2b_ref[l])

    # Pooler on [CLS] tokens (row b*S of each batch) + tanh.
    cls_tok = jnp.concatenate([h[b * S:b * S + 1, :] for b in range(B)], axis=0)
    pooled = jnp.tanh(jnp.dot(cls_tok, poolw_ref[...],
                              preferred_element_type=jnp.float32)
                      + poolb_ref[...])                          # (B, H)
    # dropout(pooled_output) -> identity at inference.

    # Classifier with lane-padded (H, 128) weight -> lane-dense output store.
    logits = jnp.dot(pooled, clsw_ref[...],
                     preferred_element_type=jnp.float32) + clsb_ref[...]
    o_ref[...] = logits                                          # (B, 128)


def _full_spec(shape):
    n = len(shape)
    return pl.BlockSpec(shape, lambda i, _n=n: (0,) * _n)


# ----------------------------- parameters -----------------------------------
def init_params(key):
    def nrm(k, shape, scale=0.02):
        return scale * jax.random.normal(k, shape, dtype=jnp.float32)

    keys = iter(jax.random.split(key, 16))
    params = {
        "word_emb": nrm(next(keys), (VOCAB, H)),
        "pos_emb": nrm(next(keys), (MAX_POS, H)),
        "type_emb": nrm(next(keys), (TYPE_VOCAB, H)),
        "emb_ln_g": jnp.ones((1, H), jnp.float32),
        "emb_ln_b": jnp.zeros((1, H), jnp.float32),
        # Per-layer weights stacked along a leading LAYERS axis; QKV fused.
        "wqkv": nrm(next(keys), (LAYERS, H, 3 * H)),
        "bqkv": jnp.zeros((LAYERS, 1, 3 * H), jnp.float32),
        "wo": nrm(next(keys), (LAYERS, H, H)),
        "bo": jnp.zeros((LAYERS, 1, H), jnp.float32),
        "ln1_g": jnp.ones((LAYERS, 1, H), jnp.float32),
        "ln1_b": jnp.zeros((LAYERS, 1, H), jnp.float32),
        "wi": nrm(next(keys), (LAYERS, H, FF)),
        "bi": jnp.zeros((LAYERS, 1, FF), jnp.float32),
        "wf": nrm(next(keys), (LAYERS, FF, H)),
        "bf": jnp.zeros((LAYERS, 1, H), jnp.float32),
        "ln2_g": jnp.ones((LAYERS, 1, H), jnp.float32),
        "ln2_b": jnp.zeros((LAYERS, 1, H), jnp.float32),
        "pool_w": nrm(next(keys), (H, H)),
        "pool_b": jnp.zeros((1, H), jnp.float32),
        # classifier: nn.Linear(hidden, num_labels) with xavier-normal weights
        "cls_w": jax.random.normal(next(keys), (H, NUM_LABELS), jnp.float32)
                 * math.sqrt(2.0 / (H + NUM_LABELS)),
        "cls_b": jnp.zeros((NUM_LABELS,), jnp.float32),
    }
    return params


# ----------------------------- forward --------------------------------------
@jax.jit
def bert_classification_forward(params, input_ids, token_type_ids,
                                attention_mask):
    # Embedding gathers stay in plain JAX (glue); sum is fused by XLA.
    emb = (params["word_emb"][input_ids]
           + params["pos_emb"][jnp.arange(S)][None, :, :]
           + params["type_emb"][token_type_ids]).reshape(B * S, H)

    # BERT extended attention mask: (1 - mask) * -10000, per-key additive bias.
    mask_bias = (1.0 - attention_mask.astype(jnp.float32)) * jnp.float32(-1e4)

    # Lane-pad the classifier weights so the kernel's output store is
    # lane-dense (128 lanes); slice back to NUM_LABELS afterwards.
    cls_w_pad = jnp.zeros((H, LANE), jnp.float32).at[:, :NUM_LABELS].set(
        params["cls_w"])
    cls_b_pad = jnp.zeros((1, LANE), jnp.float32).at[:, :NUM_LABELS].set(
        params["cls_b"])

    args = (emb, mask_bias,
            params["emb_ln_g"], params["emb_ln_b"],
            params["wqkv"], params["bqkv"], params["wo"], params["bo"],
            params["ln1_g"], params["ln1_b"],
            params["wi"], params["bi"], params["wf"], params["bf"],
            params["ln2_g"], params["ln2_b"],
            params["pool_w"], params["pool_b"], cls_w_pad, cls_b_pad)

    logits_pad = pl.pallas_call(
        _fused_bert_kernel,
        out_shape=jax.ShapeDtypeStruct((B, LANE), jnp.float32),
        grid=(1,),
        in_specs=[_full_spec(a.shape) for a in args],
        out_specs=_full_spec((B, LANE)),
        compiler_params=pltpu.CompilerParams(
            dimension_semantics=("arbitrary",)),
    )(*args)

    return logits_pad[:, :NUM_LABELS]


# ----------------------------- main ------------------------------------------
if __name__ == "__main__":
    key = jax.random.PRNGKey(0)
    k_param, k_ids = jax.random.split(key)

    params = init_params(k_param)
    input_ids = jax.random.randint(k_ids, (B, S), 0, VOCAB, dtype=jnp.int32)
    token_type_ids = jnp.zeros((B, S), jnp.int32)
    attention_mask = jnp.ones((B, S), jnp.int32)

    logits = bert_classification_forward(params, input_ids, token_type_ids,
                                         attention_mask)
    logits = jax.block_until_ready(logits)
    assert logits.shape == (B, NUM_LABELS)
    assert bool(jnp.all(jnp.isfinite(logits)))
    print("KERNEL_OK")
</pallas_src>

<mosaic_0001>
module attributes {stable_mosaic.version = 11 : i64} {
  func.func @_fused_bert_kernel(%arg0: i32, %arg1: memref<16x64xf32, #tpu.memory_space<vmem>>, %arg2: memref<2x8xf32, #tpu.memory_space<vmem>>, %arg3: memref<1x64xf32, #tpu.memory_space<vmem>>, %arg4: memref<1x64xf32, #tpu.memory_space<vmem>>, %arg5: memref<2x64x192xf32, #tpu.memory_space<vmem>>, %arg6: memref<2x1x192xf32, #tpu.memory_space<vmem>>, %arg7: memref<2x64x64xf32, #tpu.memory_space<vmem>>, %arg8: memref<2x1x64xf32, #tpu.memory_space<vmem>>, %arg9: memref<2x1x64xf32, #tpu.memory_space<vmem>>, %arg10: memref<2x1x64xf32, #tpu.memory_space<vmem>>, %arg11: memref<2x64x128xf32, #tpu.memory_space<vmem>>, %arg12: memref<2x1x128xf32, #tpu.memory_space<vmem>>, %arg13: memref<2x128x64xf32, #tpu.memory_space<vmem>>, %arg14: memref<2x1x64xf32, #tpu.memory_space<vmem>>, %arg15: memref<2x1x64xf32, #tpu.memory_space<vmem>>, %arg16: memref<2x1x64xf32, #tpu.memory_space<vmem>>, %arg17: memref<64x64xf32, #tpu.memory_space<vmem>>, %arg18: memref<1x64xf32, #tpu.memory_space<vmem>>, %arg19: memref<64x128xf32, #tpu.memory_space<vmem>>, %arg20: memref<1x128xf32, #tpu.memory_space<vmem>>, %arg21: memref<2x128xf32, #tpu.memory_space<vmem>>) attributes {dimension_semantics = [#tpu.dimension_semantics<arbitrary>], iteration_bounds = array<i64: 1>, scalar_prefetch = 0 : i64, scratch_operands = 0 : i64, tpu.core_type = #tpu.core_type<tc>, window_params = [{pipeline_mode = #tpu.pipeline_mode<synchronous>, transform_indices = @transform_0, window_bounds = array<i64: 16, 64>}, {pipeline_mode = #tpu.pipeline_mode<synchronous>, transform_indices = @transform_1, window_bounds = array<i64: 2, 8>}, {pipeline_mode = #tpu.pipeline_mode<synchronous>, transform_indices = @transform_2, window_bounds = array<i64: 1, 64>}, {pipeline_mode = #tpu.pipeline_mode<synchronous>, transform_indices = @transform_3, window_bounds = array<i64: 1, 64>}, {pipeline_mode = #tpu.pipeline_mode<synchronous>, transform_indices = @transform_4, window_bounds = array<i64: 2, 64, 192>}, {pipeline_mode = #tpu.pipeline_mode<synchronous>, transform_indices = @transform_5, window_bounds = array<i64: 2, 1, 192>}, {pipeline_mode = #tpu.pipeline_mode<synchronous>, transform_indices = @transform_6, window_bounds = array<i64: 2, 64, 64>}, {pipeline_mode = #tpu.pipeline_mode<synchronous>, transform_indices = @transform_7, window_bounds = array<i64: 2, 1, 64>}, {pipeline_mode = #tpu.pipeline_mode<synchronous>, transform_indices = @transform_8, window_bounds = array<i64: 2, 1, 64>}, {pipeline_mode = #tpu.pipeline_mode<synchronous>, transform_indices = @transform_9, window_bounds = array<i64: 2, 1, 64>}, {pipeline_mode = #tpu.pipeline_mode<synchronous>, transform_indices = @transform_10, window_bounds = array<i64: 2, 64, 128>}, {pipeline_mode = #tpu.pipeline_mode<synchronous>, transform_indices = @transform_11, window_bounds = array<i64: 2, 1, 128>}, {pipeline_mode = #tpu.pipeline_mode<synchronous>, transform_indices = @transform_12, window_bounds = array<i64: 2, 128, 64>}, {pipeline_mode = #tpu.pipeline_mode<synchronous>, transform_indices = @transform_13, window_bounds = array<i64: 2, 1, 64>}, {pipeline_mode = #tpu.pipeline_mode<synchronous>, transform_indices = @transform_14, window_bounds = array<i64: 2, 1, 64>}, {pipeline_mode = #tpu.pipeline_mode<synchronous>, transform_indices = @transform_15, window_bounds = array<i64: 2, 1, 64>}, {pipeline_mode = #tpu.pipeline_mode<synchronous>, transform_indices = @transform_16, window_bounds = array<i64: 64, 64>}, {pipeline_mode = #tpu.pipeline_mode<synchronous>, transform_indices = @transform_17, window_bounds = array<i64: 1, 64>}, {pipeline_mode = #tpu.pipeline_mode<synchronous>, transform_indices = @transform_18, window_bounds = array<i64: 64, 128>}, {pipeline_mode = #tpu.pipeline_mode<synchronous>, transform_indices = @transform_19, window_bounds = array<i64: 1, 128>}, {pipeline_mode = #tpu.pipeline_mode<synchronous>, transform_indices = @transform_20, window_bounds = array<i64: 2, 128>}]} {
    %c0 = arith.constant 0 : index
    %c0_0 = arith.constant 0 : index
    %0 = vector.load %arg2[%c0, %c0_0] : memref<2x8xf32, #tpu.memory_space<vmem>>, vector<2x8xf32>
    %c0_1 = arith.constant 0 : index
    %c0_2 = arith.constant 0 : index
    %1 = vector.load %arg1[%c0_1, %c0_2] : memref<16x64xf32, #tpu.memory_space<vmem>>, vector<16x64xf32>
    %c0_3 = arith.constant 0 : index
    %c0_4 = arith.constant 0 : index
    %2 = vector.load %arg3[%c0_3, %c0_4] : memref<1x64xf32, #tpu.memory_space<vmem>>, vector<1x64xf32>
    %c0_5 = arith.constant 0 : index
    %c0_6 = arith.constant 0 : index
    %3 = vector.load %arg4[%c0_5, %c0_6] : memref<1x64xf32, #tpu.memory_space<vmem>>, vector<1x64xf32>
    %cst = arith.constant dense<0.000000e+00> : vector<16xf32>
    %4 = vector.multi_reduction <add>, %1, %cst [1] : vector<16x64xf32> to vector<16xf32>
    %5 = vector.shape_cast %4 : vector<16xf32> to vector<16x1xf32>
    %cst_7 = arith.constant 6.400000e+01 : f32
    %6 = vector.broadcast %cst_7 : f32 to vector<16x1xf32>
    %7 = arith.divf %5, %6 : vector<16x1xf32>
    %8 = vector.broadcast %7 : vector<16x1xf32> to vector<16x64xf32>
    %9 = arith.subf %1, %8 : vector<16x64xf32>
    %10 = arith.mulf %9, %9 : vector<16x64xf32>
    %cst_8 = arith.constant dense<0.000000e+00> : vector<16xf32>
    %11 = vector.multi_reduction <add>, %10, %cst_8 [1] : vector<16x64xf32> to vector<16xf32>
    %12 = vector.shape_cast %11 : vector<16xf32> to vector<16x1xf32>
    %cst_9 = arith.constant 6.400000e+01 : f32
    %13 = vector.broadcast %cst_9 : f32 to vector<16x1xf32>
    %14 = arith.divf %12, %13 : vector<16x1xf32>
    %15 = vector.broadcast %7 : vector<16x1xf32> to vector<16x64xf32>
    %16 = arith.subf %1, %15 : vector<16x64xf32>
    %cst_10 = arith.constant 9.99999996E-13 : f32
    %17 = vector.broadcast %cst_10 : f32 to vector<16x1xf32>
    %18 = arith.addf %14, %17 : vector<16x1xf32>
    %19 = math.rsqrt %18 : vector<16x1xf32>
    %20 = vector.broadcast %19 : vector<16x1xf32> to vector<16x64xf32>
    %21 = arith.mulf %16, %20 : vector<16x64xf32>
    %22 = vector.broadcast %2 : vector<1x64xf32> to vector<16x64xf32>
    %23 = arith.mulf %21, %22 : vector<16x64xf32>
    %24 = vector.broadcast %3 : vector<1x64xf32> to vector<16x64xf32>
    %25 = arith.addf %23, %24 : vector<16x64xf32>
    %c0_11 = arith.constant 0 : index
    %c0_12 = arith.constant 0 : index
    %c0_13 = arith.constant 0 : index
    %26 = vector.load %arg5[%c0_11, %c0_12, %c0_13] : memref<2x64x192xf32, #tpu.memory_space<vmem>>, vector<1x64x192xf32>
    %27 = vector.shape_cast %26 : vector<1x64x192xf32> to vector<64x192xf32>
    %cst_14 = arith.constant dense<0.000000e+00> : vector<16x192xf32>
    %28 = tpu.matmul %25, %27, %cst_14 {dimension_numbers = #tpu.dot_dimension_numbers<[1], [0], [0], [1], [0, 0, 1, 1], [], []>} : vector<16x64xf32>, vector<64x192xf32>, vector<16x192xf32> -> vector<16x192xf32>
    %c0_15 = arith.constant 0 : index
    %c0_16 = arith.constant 0 : index
    %c0_17 = arith.constant 0 : index
    %29 = vector.load %arg6[%c0_15, %c0_16, %c0_17] : memref<2x1x192xf32, #tpu.memory_space<vmem>>, vector<1x1x192xf32>
    %30 = vector.shape_cast %29 : vector<1x1x192xf32> to vector<1x192xf32>
    %31 = vector.broadcast %30 : vector<1x192xf32> to vector<16x192xf32>
    %32 = arith.addf %28, %31 : vector<16x192xf32>
    %33 = vector.extract_strided_slice %32 {offsets = [0, 0], sizes = [16, 64], strides = [1, 1]} : vector<16x192xf32> to vector<16x64xf32>
    %34 = vector.extract_strided_slice %32 {offsets = [0, 64], sizes = [16, 64], strides = [1, 1]} : vector<16x192xf32> to vector<16x64xf32>
    %35 = vector.extract_strided_slice %32 {offsets = [0, 128], sizes = [16, 64], strides = [1, 1]} : vector<16x192xf32> to vector<16x64xf32>
    %36 = vector.extract_strided_slice %33 {offsets = [0, 0], sizes = [8, 64], strides = [1, 1]} : vector<16x64xf32> to vector<8x64xf32>
    %37 = vector.extract_strided_slice %34 {offsets = [0, 0], sizes = [8, 64], strides = [1, 1]} : vector<16x64xf32> to vector<8x64xf32>
    %38 = vector.extract_strided_slice %35 {offsets = [0, 0], sizes = [8, 64], strides = [1, 1]} : vector<16x64xf32> to vector<8x64xf32>
    %39 = vector.extract_strided_slice %0 {offsets = [0, 0], sizes = [1, 8], strides = [1, 1]} : vector<2x8xf32> to vector<1x8xf32>
    %40 = vector.extract_strided_slice %36 {offsets = [0, 0], sizes = [8, 32], strides = [1, 1]} : vector<8x64xf32> to vector<8x32xf32>
    %41 = vector.extract_strided_slice %37 {offsets = [0, 0], sizes = [8, 32], strides = [1, 1]} : vector<8x64xf32> to vector<8x32xf32>
    %42 = vector.extract_strided_slice %38 {offsets = [0, 0], sizes = [8, 32], strides = [1, 1]} : vector<8x64xf32> to vector<8x32xf32>
    %cst_18 = arith.constant dense<0.000000e+00> : vector<8x8xf32>
    %43 = tpu.matmul %40, %41, %cst_18 {dimension_numbers = #tpu.dot_dimension_numbers<[1], [1], [0], [0], [0, 0, 1, 0], [], []>} : vector<8x32xf32>, vector<8x32xf32>, vector<8x8xf32> -> vector<8x8xf32>
    %cst_19 = arith.constant 0.176776692 : f32
    %44 = vector.broadcast %cst_19 : f32 to vector<8x8xf32>
    %45 = arith.mulf %43, %44 : vector<8x8xf32>
    %46 = vector.broadcast %39 : vector<1x8xf32> to vector<8x8xf32>
    %47 = arith.addf %45, %46 : vector<8x8xf32>
    %cst_20 = arith.constant dense<0xFF800000> : vector<8xf32>
    %48 = vector.multi_reduction <maximumf>, %47, %cst_20 [1] : vector<8x8xf32> to vector<8xf32>
    %49 = vector.shape_cast %48 : vector<8xf32> to vector<8x1xf32>
    %50 = vector.broadcast %49 : vector<8x1xf32> to vector<8x8xf32>
    %51 = arith.subf %47, %50 : vector<8x8xf32>
    %52 = math.exp %51 : vector<8x8xf32>
    %cst_21 = arith.constant dense<0.000000e+00> : vector<8xf32>
    %53 = vector.multi_reduction <add>, %52, %cst_21 [1] : vector<8x8xf32> to vector<8xf32>
    %54 = vector.shape_cast %53 : vector<8xf32> to vector<8x1xf32>
    %55 = vector.broadcast %54 : vector<8x1xf32> to vector<8x8xf32>
    %56 = arith.divf %52, %55 : vector<8x8xf32>
    %cst_22 = arith.constant dense<0.000000e+00> : vector<8x32xf32>
    %57 = tpu.matmul %56, %42, %cst_22 {dimension_numbers = #tpu.dot_dimension_numbers<[1], [0], [0], [1], [0, 0, 1, 1], [], []>} : vector<8x8xf32>, vector<8x32xf32>, vector<8x32xf32> -> vector<8x32xf32>
    %58 = vector.extract_strided_slice %36 {offsets = [0, 32], sizes = [8, 32], strides = [1, 1]} : vector<8x64xf32> to vector<8x32xf32>
    %59 = vector.extract_strided_slice %37 {offsets = [0, 32], sizes = [8, 32], strides = [1, 1]} : vector<8x64xf32> to vector<8x32xf32>
    %60 = vector.extract_strided_slice %38 {offsets = [0, 32], sizes = [8, 32], strides = [1, 1]} : vector<8x64xf32> to vector<8x32xf32>
    %cst_23 = arith.constant dense<0.000000e+00> : vector<8x8xf32>
    %61 = tpu.matmul %58, %59, %cst_23 {dimension_numbers = #tpu.dot_dimension_numbers<[1], [1], [0], [0], [0, 0, 1, 0], [], []>} : vector<8x32xf32>, vector<8x32xf32>, vector<8x8xf32> -> vector<8x8xf32>
    %cst_24 = arith.constant 0.176776692 : f32
    %62 = vector.broadcast %cst_24 : f32 to vector<8x8xf32>
    %63 = arith.mulf %61, %62 : vector<8x8xf32>
    %64 = vector.broadcast %39 : vector<1x8xf32> to vector<8x8xf32>
    %65 = arith.addf %63, %64 : vector<8x8xf32>
    %cst_25 = arith.constant dense<0xFF800000> : vector<8xf32>
    %66 = vector.multi_reduction <maximumf>, %65, %cst_25 [1] : vector<8x8xf32> to vector<8xf32>
    %67 = vector.shape_cast %66 : vector<8xf32> to vector<8x1xf32>
    %68 = vector.broadcast %67 : vector<8x1xf32> to vector<8x8xf32>
    %69 = arith.subf %65, %68 : vector<8x8xf32>
    %70 = math.exp %69 : vector<8x8xf32>
    %cst_26 = arith.constant dense<0.000000e+00> : vector<8xf32>
    %71 = vector.multi_reduction <add>, %70, %cst_26 [1] : vector<8x8xf32> to vector<8xf32>
    %72 = vector.shape_cast %71 : vector<8xf32> to vector<8x1xf32>
    %73 = vector.broadcast %72 : vector<8x1xf32> to vector<8x8xf32>
    %74 = arith.divf %70, %73 : vector<8x8xf32>
    %cst_27 = arith.constant dense<0.000000e+00> : vector<8x32xf32>
    %75 = tpu.matmul %74, %60, %cst_27 {dimension_numbers = #tpu.dot_dimension_numbers<[1], [0], [0], [1], [0, 0, 1, 1], [], []>} : vector<8x8xf32>, vector<8x32xf32>, vector<8x32xf32> -> vector<8x32xf32>
    %76 = tpu.concatenate %57, %75 in 1 : vector<8x32xf32>, vector<8x32xf32> -> vector<8x64xf32>
    %77 = vector.extract_strided_slice %33 {offsets = [8, 0], sizes = [8, 64], strides = [1, 1]} : vector<16x64xf32> to vector<8x64xf32>
    %78 = vector.extract_strided_slice %34 {offsets = [8, 0], sizes = [8, 64], strides = [1, 1]} : vector<16x64xf32> to vector<8x64xf32>
    %79 = vector.extract_strided_slice %35 {offsets = [8, 0], sizes = [8, 64], strides = [1, 1]} : vector<16x64xf32> to vector<8x64xf32>
    %80 = vector.extract_strided_slice %0 {offsets = [1, 0], sizes = [1, 8], strides = [1, 1]} : vector<2x8xf32> to vector<1x8xf32>
    %81 = vector.extract_strided_slice %77 {offsets = [0, 0], sizes = [8, 32], strides = [1, 1]} : vector<8x64xf32> to vector<8x32xf32>
    %82 = vector.extract_strided_slice %78 {offsets = [0, 0], sizes = [8, 32], strides = [1, 1]} : vector<8x64xf32> to vector<8x32xf32>
    %83 = vector.extract_strided_slice %79 {offsets = [0, 0], sizes = [8, 32], strides = [1, 1]} : vector<8x64xf32> to vector<8x32xf32>
    %cst_28 = arith.constant dense<0.000000e+00> : vector<8x8xf32>
    %84 = tpu.matmul %81, %82, %cst_28 {dimension_numbers = #tpu.dot_dimension_numbers<[1], [1], [0], [0], [0, 0, 1, 0], [], []>} : vector<8x32xf32>, vector<8x32xf32>, vector<8x8xf32> -> vector<8x8xf32>
    %cst_29 = arith.constant 0.176776692 : f32
    %85 = vector.broadcast %cst_29 : f32 to vector<8x8xf32>
    %86 = arith.mulf %84, %85 : vector<8x8xf32>
    %87 = vector.broadcast %80 : vector<1x8xf32> to vector<8x8xf32>
    %88 = arith.addf %86, %87 : vector<8x8xf32>
    %cst_30 = arith.constant dense<0xFF800000> : vector<8xf32>
    %89 = vector.multi_reduction <maximumf>, %88, %cst_30 [1] : vector<8x8xf32> to vector<8xf32>
    %90 = vector.shape_cast %89 : vector<8xf32> to vector<8x1xf32>
    %91 = vector.broadcast %90 : vector<8x1xf32> to vector<8x8xf32>
    %92 = arith.subf %88, %91 : vector<8x8xf32>
    %93 = math.exp %92 : vector<8x8xf32>
    %cst_31 = arith.constant dense<0.000000e+00> : vector<8xf32>
    %94 = vector.multi_reduction <add>, %93, %cst_31 [1] : vector<8x8xf32> to vector<8xf32>
    %95 = vector.shape_cast %94 : vector<8xf32> to vector<8x1xf32>
    %96 = vector.broadcast %95 : vector<8x1xf32> to vector<8x8xf32>
    %97 = arith.divf %93, %96 : vector<8x8xf32>
    %cst_32 = arith.constant dense<0.000000e+00> : vector<8x32xf32>
    %98 = tpu.matmul %97, %83, %cst_32 {dimension_numbers = #tpu.dot_dimension_numbers<[1], [0], [0], [1], [0, 0, 1, 1], [], []>} : vector<8x8xf32>, vector<8x32xf32>, vector<8x32xf32> -> vector<8x32xf32>
    %99 = vector.extract_strided_slice %77 {offsets = [0, 32], sizes = [8, 32], strides = [1, 1]} : vector<8x64xf32> to vector<8x32xf32>
    %100 = vector.extract_strided_slice %78 {offsets = [0, 32], sizes = [8, 32], strides = [1, 1]} : vector<8x64xf32> to vector<8x32xf32>
    %101 = vector.extract_strided_slice %79 {offsets = [0, 32], sizes = [8, 32], strides = [1, 1]} : vector<8x64xf32> to vector<8x32xf32>
    %cst_33 = arith.constant dense<0.000000e+00> : vector<8x8xf32>
    %102 = tpu.matmul %99, %100, %cst_33 {dimension_numbers = #tpu.dot_dimension_numbers<[1], [1], [0], [0], [0, 0, 1, 0], [], []>} : vector<8x32xf32>, vector<8x32xf32>, vector<8x8xf32> -> vector<8x8xf32>
    %cst_34 = arith.constant 0.176776692 : f32
    %103 = vector.broadcast %cst_34 : f32 to vector<8x8xf32>
    %104 = arith.mulf %102, %103 : vector<8x8xf32>
    %105 = vector.broadcast %80 : vector<1x8xf32> to vector<8x8xf32>
    %106 = arith.addf %104, %105 : vector<8x8xf32>
    %cst_35 = arith.constant dense<0xFF800000> : vector<8xf32>
    %107 = vector.multi_reduction <maximumf>, %106, %cst_35 [1] : vector<8x8xf32> to vector<8xf32>
    %108 = vector.shape_cast %107 : vector<8xf32> to vector<8x1xf32>
    %109 = vector.broadcast %108 : vector<8x1xf32> to vector<8x8xf32>
    %110 = arith.subf %106, %109 : vector<8x8xf32>
    %111 = math.exp %110 : vector<8x8xf32>
    %cst_36 = arith.constant dense<0.000000e+00> : vector<8xf32>
    %112 = vector.multi_reduction <add>, %111, %cst_36 [1] : vector<8x8xf32> to vector<8xf32>
    %113 = vector.shape_cast %112 : vector<8xf32> to vector<8x1xf32>
    %114 = vector.broadcast %113 : vector<8x1xf32> to vector<8x8xf32>
    %115 = arith.divf %111, %114 : vector<8x8xf32>
    %cst_37 = arith.constant dense<0.000000e+00> : vector<8x32xf32>
    %116 = tpu.matmul %115, %101, %cst_37 {dimension_numbers = #tpu.dot_dimension_numbers<[1], [0], [0], [1], [0, 0, 1, 1], [], []>} : vector<8x8xf32>, vector<8x32xf32>, vector<8x32xf32> -> vector<8x32xf32>
    %117 = tpu.concatenate %98, %116 in 1 : vector<8x32xf32>, vector<8x32xf32> -> vector<8x64xf32>
    %118 = tpu.concatenate %76, %117 in 0 : vector<8x64xf32>, vector<8x64xf32> -> vector<16x64xf32>
    %c0_38 = arith.constant 0 : index
    %c0_39 = arith.constant 0 : index
    %c0_40 = arith.constant 0 : index
    %119 = vector.load %arg7[%c0_38, %c0_39, %c0_40] : memref<2x64x64xf32, #tpu.memory_space<vmem>>, vector<1x64x64xf32>
    %120 = vector.shape_cast %119 : vector<1x64x64xf32> to vector<64x64xf32>
    %cst_41 = arith.constant dense<0.000000e+00> : vector<16x64xf32>
    %121 = tpu.matmul %118, %120, %cst_41 {dimension_numbers = #tpu.dot_dimension_numbers<[1], [0], [0], [1], [0, 0, 1, 1], [], []>} : vector<16x64xf32>, vector<64x64xf32>, vector<16x64xf32> -> vector<16x64xf32>
    %c0_42 = arith.constant 0 : index
    %c0_43 = arith.constant 0 : index
    %c0_44 = arith.constant 0 : index
    %122 = vector.load %arg8[%c0_42, %c0_43, %c0_44] : memref<2x1x64xf32, #tpu.memory_space<vmem>>, vector<1x1x64xf32>
    %123 = vector.shape_cast %122 : vector<1x1x64xf32> to vector<1x64xf32>
    %124 = vector.broadcast %123 : vector<1x64xf32> to vector<16x64xf32>
    %125 = arith.addf %121, %124 : vector<16x64xf32>
    %126 = arith.addf %125, %25 : vector<16x64xf32>
    %c0_45 = arith.constant 0 : index
    %c0_46 = arith.constant 0 : index
    %c0_47 = arith.constant 0 : index
    %127 = vector.load %arg9[%c0_45, %c0_46, %c0_47] : memref<2x1x64xf32, #tpu.memory_space<vmem>>, vector<1x1x64xf32>
    %128 = vector.shape_cast %127 : vector<1x1x64xf32> to vector<1x64xf32>
    %c0_48 = arith.constant 0 : index
    %c0_49 = arith.constant 0 : index
    %c0_50 = arith.constant 0 : index
    %129 = vector.load %arg10[%c0_48, %c0_49, %c0_50] : memref<2x1x64xf32, #tpu.memory_space<vmem>>, vector<1x1x64xf32>
    %130 = vector.shape_cast %129 : vector<1x1x64xf32> to vector<1x64xf32>
    %cst_51 = arith.constant dense<0.000000e+00> : vector<16xf32>
    %131 = vector.multi_reduction <add>, %126, %cst_51 [1] : vector<16x64xf32> to vector<16xf32>
    %132 = vector.shape_cast %131 : vector<16xf32> to vector<16x1xf32>
    %cst_52 = arith.constant 6.400000e+01 : f32
    %133 = vector.broadcast %cst_52 : f32 to vector<16x1xf32>
    %134 = arith.divf %132, %133 : vector<16x1xf32>
    %135 = vector.broadcast %134 : vector<16x1xf32> to vector<16x64xf32>
    %136 = arith.subf %126, %135 : vector<16x64xf32>
    %137 = arith.mulf %136, %136 : vector<16x64xf32>
    %cst_53 = arith.constant dense<0.000000e+00> : vector<16xf32>
    %138 = vector.multi_reduction <add>, %137, %cst_53 [1] : vector<16x64xf32> to vector<16xf32>
    %139 = vector.shape_cast %138 : vector<16xf32> to vector<16x1xf32>
    %cst_54 = arith.constant 6.400000e+01 : f32
    %140 = vector.broadcast %cst_54 : f32 to vector<16x1xf32>
    %141 = arith.divf %139, %140 : vector<16x1xf32>
    %142 = vector.broadcast %134 : vector<16x1xf32> to vector<16x64xf32>
    %143 = arith.subf %126, %142 : vector<16x64xf32>
    %cst_55 = arith.constant 9.99999996E-13 : f32
    %144 = vector.broadcast %cst_55 : f32 to vector<16x1xf32>
    %145 = arith.addf %141, %144 : vector<16x1xf32>
    %146 = math.rsqrt %145 : vector<16x1xf32>
    %147 = vector.broadcast %146 : vector<16x1xf32> to vector<16x64xf32>
    %148 = arith.mulf %143, %147 : vector<16x64xf32>
    %149 = vector.broadcast %128 : vector<1x64xf32> to vector<16x64xf32>
    %150 = arith.mulf %148, %149 : vector<16x64xf32>
    %151 = vector.broadcast %130 : vector<1x64xf32> to vector<16x64xf32>
    %152 = arith.addf %150, %151 : vector<16x64xf32>
    %c0_56 = arith.constant 0 : index
    %c0_57 = arith.constant 0 : index
    %c0_58 = arith.constant 0 : index
    %153 = vector.load %arg11[%c0_56, %c0_57, %c0_58] : memref<2x64x128xf32, #tpu.memory_space<vmem>>, vector<1x64x128xf32>
    %154 = vector.shape_cast %153 : vector<1x64x128xf32> to vector<64x128xf32>
    %cst_59 = arith.constant dense<0.000000e+00> : vector<16x128xf32>
    %155 = tpu.matmul %152, %154, %cst_59 {dimension_numbers = #tpu.dot_dimension_numbers<[1], [0], [0], [1], [0, 0, 1, 1], [], []>} : vector<16x64xf32>, vector<64x128xf32>, vector<16x128xf32> -> vector<16x128xf32>
    %c0_60 = arith.constant 0 : index
    %c0_61 = arith.constant 0 : index
    %c0_62 = arith.constant 0 : index
    %156 = vector.load %arg12[%c0_60, %c0_61, %c0_62] : memref<2x1x128xf32, #tpu.memory_space<vmem>>, vector<1x1x128xf32>
    %157 = vector.shape_cast %156 : vector<1x1x128xf32> to vector<1x128xf32>
    %158 = vector.broadcast %157 : vector<1x128xf32> to vector<16x128xf32>
    %159 = arith.addf %155, %158 : vector<16x128xf32>
    %cst_63 = arith.constant 5.000000e-01 : f32
    %160 = vector.broadcast %cst_63 : f32 to vector<16x128xf32>
    %161 = arith.mulf %160, %159 : vector<16x128xf32>
    %cst_64 = arith.constant 0.707106769 : f32
    %162 = vector.broadcast %cst_64 : f32 to vector<16x128xf32>
    %163 = arith.mulf %159, %162 : vector<16x128xf32>
    %164 = math.erf %163 : vector<16x128xf32>
    %cst_65 = arith.constant 1.000000e+00 : f32
    %165 = vector.broadcast %cst_65 : f32 to vector<16x128xf32>
    %166 = arith.addf %165, %164 : vector<16x128xf32>
    %167 = arith.mulf %161, %166 : vector<16x128xf32>
    %c0_66 = arith.constant 0 : index
    %c0_67 = arith.constant 0 : index
    %c0_68 = arith.constant 0 : index
    %168 = vector.load %arg13[%c0_66, %c0_67, %c0_68] : memref<2x128x64xf32, #tpu.memory_space<vmem>>, vector<1x128x64xf32>
    %169 = vector.shape_cast %168 : vector<1x128x64xf32> to vector<128x64xf32>
    %cst_69 = arith.constant dense<0.000000e+00> : vector<16x64xf32>
    %170 = tpu.matmul %167, %169, %cst_69 {dimension_numbers = #tpu.dot_dimension_numbers<[1], [0], [0], [1], [0, 0, 1, 1], [], []>} : vector<16x128xf32>, vector<128x64xf32>, vector<16x64xf32> -> vector<16x64xf32>
    %c0_70 = arith.constant 0 : index
    %c0_71 = arith.constant 0 : index
    %c0_72 = arith.constant 0 : index
    %171 = vector.load %arg14[%c0_70, %c0_71, %c0_72] : memref<2x1x64xf32, #tpu.memory_space<vmem>>, vector<1x1x64xf32>
    %172 = vector.shape_cast %171 : vector<1x1x64xf32> to vector<1x64xf32>
    %173 = vector.broadcast %172 : vector<1x64xf32> to vector<16x64xf32>
    %174 = arith.addf %170, %173 : vector<16x64xf32>
    %175 = arith.addf %174, %152 : vector<16x64xf32>
    %c0_73 = arith.constant 0 : index
    %c0_74 = arith.constant 0 : index
    %c0_75 = arith.constant 0 : index
    %176 = vector.load %arg15[%c0_73, %c0_74, %c0_75] : memref<2x1x64xf32, #tpu.memory_space<vmem>>, vector<1x1x64xf32>
    %177 = vector.shape_cast %176 : vector<1x1x64xf32> to vector<1x64xf32>
    %c0_76 = arith.constant 0 : index
    %c0_77 = arith.constant 0 : index
    %c0_78 = arith.constant 0 : index
    %178 = vector.load %arg16[%c0_76, %c0_77, %c0_78] : memref<2x1x64xf32, #tpu.memory_space<vmem>>, vector<1x1x64xf32>
    %179 = vector.shape_cast %178 : vector<1x1x64xf32> to vector<1x64xf32>
    %cst_79 = arith.constant dense<0.000000e+00> : vector<16xf32>
    %180 = vector.multi_reduction <add>, %175, %cst_79 [1] : vector<16x64xf32> to vector<16xf32>
    %181 = vector.shape_cast %180 : vector<16xf32> to vector<16x1xf32>
    %cst_80 = arith.constant 6.400000e+01 : f32
    %182 = vector.broadcast %cst_80 : f32 to vector<16x1xf32>
    %183 = arith.divf %181, %182 : vector<16x1xf32>
    %184 = vector.broadcast %183 : vector<16x1xf32> to vector<16x64xf32>
    %185 = arith.subf %175, %184 : vector<16x64xf32>
    %186 = arith.mulf %185, %185 : vector<16x64xf32>
    %cst_81 = arith.constant dense<0.000000e+00> : vector<16xf32>
    %187 = vector.multi_reduction <add>, %186, %cst_81 [1] : vector<16x64xf32> to vector<16xf32>
    %188 = vector.shape_cast %187 : vector<16xf32> to vector<16x1xf32>
    %cst_82 = arith.constant 6.400000e+01 : f32
    %189 = vector.broadcast %cst_82 : f32 to vector<16x1xf32>
    %190 = arith.divf %188, %189 : vector<16x1xf32>
    %191 = vector.broadcast %183 : vector<16x1xf32> to vector<16x64xf32>
    %192 = arith.subf %175, %191 : vector<16x64xf32>
    %cst_83 = arith.constant 9.99999996E-13 : f32
    %193 = vector.broadcast %cst_83 : f32 to vector<16x1xf32>
    %194 = arith.addf %190, %193 : vector<16x1xf32>
    %195 = math.rsqrt %194 : vector<16x1xf32>
    %196 = vector.broadcast %195 : vector<16x1xf32> to vector<16x64xf32>
    %197 = arith.mulf %192, %196 : vector<16x64xf32>
    %198 = vector.broadcast %177 : vector<1x64xf32> to vector<16x64xf32>
    %199 = arith.mulf %197, %198 : vector<16x64xf32>
    %200 = vector.broadcast %179 : vector<1x64xf32> to vector<16x64xf32>
    %201 = arith.addf %199, %200 : vector<16x64xf32>
    %c1 = arith.constant 1 : index
    %c0_84 = arith.constant 0 : index
    %c0_85 = arith.constant 0 : index
    %202 = vector.load %arg5[%c1, %c0_84, %c0_85] : memref<2x64x192xf32, #tpu.memory_space<vmem>>, vector<1x64x192xf32>
    %203 = vector.shape_cast %202 : vector<1x64x192xf32> to vector<64x192xf32>
    %cst_86 = arith.constant dense<0.000000e+00> : vector<16x192xf32>
    %204 = tpu.matmul %201, %203, %cst_86 {dimension_numbers = #tpu.dot_dimension_numbers<[1], [0], [0], [1], [0, 0, 1, 1], [], []>} : vector<16x64xf32>, vector<64x192xf32>, vector<16x192xf32> -> vector<16x192xf32>
    %c1_87 = arith.constant 1 : index
    %c0_88 = arith.constant 0 : index
    %c0_89 = arith.constant 0 : index
    %205 = vector.load %arg6[%c1_87, %c0_88, %c0_89] : memref<2x1x192xf32, #tpu.memory_space<vmem>>, vector<1x1x192xf32>
    %206 = vector.shape_cast %205 : vector<1x1x192xf32> to vector<1x192xf32>
    %207 = vector.broadcast %206 : vector<1x192xf32> to vector<16x192xf32>
    %208 = arith.addf %204, %207 : vector<16x192xf32>
    %209 = vector.extract_strided_slice %208 {offsets = [0, 0], sizes = [16, 64], strides = [1, 1]} : vector<16x192xf32> to vector<16x64xf32>
    %210 = vector.extract_strided_slice %208 {offsets = [0, 64], sizes = [16, 64], strides = [1, 1]} : vector<16x192xf32> to vector<16x64xf32>
    %211 = vector.extract_strided_slice %208 {offsets = [0, 128], sizes = [16, 64], strides = [1, 1]} : vector<16x192xf32> to vector<16x64xf32>
    %212 = vector.extract_strided_slice %209 {offsets = [0, 0], sizes = [8, 64], strides = [1, 1]} : vector<16x64xf32> to vector<8x64xf32>
    %213 = vector.extract_strided_slice %210 {offsets = [0, 0], sizes = [8, 64], strides = [1, 1]} : vector<16x64xf32> to vector<8x64xf32>
    %214 = vector.extract_strided_slice %211 {offsets = [0, 0], sizes = [8, 64], strides = [1, 1]} : vector<16x64xf32> to vector<8x64xf32>
    %215 = vector.extract_strided_slice %0 {offsets = [0, 0], sizes = [1, 8], strides = [1, 1]} : vector<2x8xf32> to vector<1x8xf32>
    %216 = vector.extract_strided_slice %212 {offsets = [0, 0], sizes = [8, 32], strides = [1, 1]} : vector<8x64xf32> to vector<8x32xf32>
    %217 = vector.extract_strided_slice %213 {offsets = [0, 0], sizes = [8, 32], strides = [1, 1]} : vector<8x64xf32> to vector<8x32xf32>
    %218 = vector.extract_strided_slice %214 {offsets = [0, 0], sizes = [8, 32], strides = [1, 1]} : vector<8x64xf32> to vector<8x32xf32>
    %cst_90 = arith.constant dense<0.000000e+00> : vector<8x8xf32>
    %219 = tpu.matmul %216, %217, %cst_90 {dimension_numbers = #tpu.dot_dimension_numbers<[1], [1], [0], [0], [0, 0, 1, 0], [], []>} : vector<8x32xf32>, vector<8x32xf32>, vector<8x8xf32> -> vector<8x8xf32>
    %cst_91 = arith.constant 0.176776692 : f32
    %220 = vector.broadcast %cst_91 : f32 to vector<8x8xf32>
    %221 = arith.mulf %219, %220 : vector<8x8xf32>
    %222 = vector.broadcast %215 : vector<1x8xf32> to vector<8x8xf32>
    %223 = arith.addf %221, %222 : vector<8x8xf32>
    %cst_92 = arith.constant dense<0xFF800000> : vector<8xf32>
    %224 = vector.multi_reduction <maximumf>, %223, %cst_92 [1] : vector<8x8xf32> to vector<8xf32>
    %225 = vector.shape_cast %224 : vector<8xf32> to vector<8x1xf32>
    %226 = vector.broadcast %225 : vector<8x1xf32> to vector<8x8xf32>
    %227 = arith.subf %223, %226 : vector<8x8xf32>
    %228 = math.exp %227 : vector<8x8xf32>
    %cst_93 = arith.constant dense<0.000000e+00> : vector<8xf32>
    %229 = vector.multi_reduction <add>, %228, %cst_93 [1] : vector<8x8xf32> to vector<8xf32>
    %230 = vector.shape_cast %229 : vector<8xf32> to vector<8x1xf32>
    %231 = vector.broadcast %230 : vector<8x1xf32> to vector<8x8xf32>
    %232 = arith.divf %228, %231 : vector<8x8xf32>
    %cst_94 = arith.constant dense<0.000000e+00> : vector<8x32xf32>
    %233 = tpu.matmul %232, %218, %cst_94 {dimension_numbers = #tpu.dot_dimension_numbers<[1], [0], [0], [1], [0, 0, 1, 1], [], []>} : vector<8x8xf32>, vector<8x32xf32>, vector<8x32xf32> -> vector<8x32xf32>
    %234 = vector.extract_strided_slice %212 {offsets = [0, 32], sizes = [8, 32], strides = [1, 1]} : vector<8x64xf32> to vector<8x32xf32>
    %235 = vector.extract_strided_slice %213 {offsets = [0, 32], sizes = [8, 32], strides = [1, 1]} : vector<8x64xf32> to vector<8x32xf32>
    %236 = vector.extract_strided_slice %214 {offsets = [0, 32], sizes = [8, 32], strides = [1, 1]} : vector<8x64xf32> to vector<8x32xf32>
    %cst_95 = arith.constant dense<0.000000e+00> : vector<8x8xf32>
    %237 = tpu.matmul %234, %235, %cst_95 {dimension_numbers = #tpu.dot_dimension_numbers<[1], [1], [0], [0], [0, 0, 1, 0], [], []>} : vector<8x32xf32>, vector<8x32xf32>, vector<8x8xf32> -> vector<8x8xf32>
    %cst_96 = arith.constant 0.176776692 : f32
    %238 = vector.broadcast %cst_96 : f32 to vector<8x8xf32>
    %239 = arith.mulf %237, %238 : vector<8x8xf32>
    %240 = vector.broadcast %215 : vector<1x8xf32> to vector<8x8xf32>
    %241 = arith.addf %239, %240 : vector<8x8xf32>
    %cst_97 = arith.constant dense<0xFF800000> : vector<8xf32>
    %242 = vector.multi_reduction <maximumf>, %241, %cst_97 [1] : vector<8x8xf32> to vector<8xf32>
    %243 = vector.shape_cast %242 : vector<8xf32> to vector<8x1xf32>
    %244 = vector.broadcast %243 : vector<8x1xf32> to vector<8x8xf32>
    %245 = arith.subf %241, %244 : vector<8x8xf32>
    %246 = math.exp %245 : vector<8x8xf32>
    %cst_98 = arith.constant dense<0.000000e+00> : vector<8xf32>
    %247 = vector.multi_reduction <add>, %246, %cst_98 [1] : vector<8x8xf32> to vector<8xf32>
    %248 = vector.shape_cast %247 : vector<8xf32> to vector<8x1xf32>
    %249 = vector.broadcast %248 : vector<8x1xf32> to vector<8x8xf32>
    %250 = arith.divf %246, %249 : vector<8x8xf32>
    %cst_99 = arith.constant dense<0.000000e+00> : vector<8x32xf32>
    %251 = tpu.matmul %250, %236, %cst_99 {dimension_numbers = #tpu.dot_dimension_numbers<[1], [0], [0], [1], [0, 0, 1, 1], [], []>} : vector<8x8xf32>, vector<8x32xf32>, vector<8x32xf32> -> vector<8x32xf32>
    %252 = tpu.concatenate %233, %251 in 1 : vector<8x32xf32>, vector<8x32xf32> -> vector<8x64xf32>
    %253 = vector.extract_strided_slice %209 {offsets = [8, 0], sizes = [8, 64], strides = [1, 1]} : vector<16x64xf32> to vector<8x64xf32>
    %254 = vector.extract_strided_slice %210 {offsets = [8, 0], sizes = [8, 64], strides = [1, 1]} : vector<16x64xf32> to vector<8x64xf32>
    %255 = vector.extract_strided_slice %211 {offsets = [8, 0], sizes = [8, 64], strides = [1, 1]} : vector<16x64xf32> to vector<8x64xf32>
    %256 = vector.extract_strided_slice %0 {offsets = [1, 0], sizes = [1, 8], strides = [1, 1]} : vector<2x8xf32> to vector<1x8xf32>
    %257 = vector.extract_strided_slice %253 {offsets = [0, 0], sizes = [8, 32], strides = [1, 1]} : vector<8x64xf32> to vector<8x32xf32>
    %258 = vector.extract_strided_slice %254 {offsets = [0, 0], sizes = [8, 32], strides = [1, 1]} : vector<8x64xf32> to vector<8x32xf32>
    %259 = vector.extract_strided_slice %255 {offsets = [0, 0], sizes = [8, 32], strides = [1, 1]} : vector<8x64xf32> to vector<8x32xf32>
    %cst_100 = arith.constant dense<0.000000e+00> : vector<8x8xf32>
    %260 = tpu.matmul %257, %258, %cst_100 {dimension_numbers = #tpu.dot_dimension_numbers<[1], [1], [0], [0], [0, 0, 1, 0], [], []>} : vector<8x32xf32>, vector<8x32xf32>, vector<8x8xf32> -> vector<8x8xf32>
    %cst_101 = arith.constant 0.176776692 : f32
    %261 = vector.broadcast %cst_101 : f32 to vector<8x8xf32>
    %262 = arith.mulf %260, %261 : vector<8x8xf32>
    %263 = vector.broadcast %256 : vector<1x8xf32> to vector<8x8xf32>
    %264 = arith.addf %262, %263 : vector<8x8xf32>
    %cst_102 = arith.constant dense<0xFF800000> : vector<8xf32>
    %265 = vector.multi_reduction <maximumf>, %264, %cst_102 [1] : vector<8x8xf32> to vector<8xf32>
    %266 = vector.shape_cast %265 : vector<8xf32> to vector<8x1xf32>
    %267 = vector.broadcast %266 : vector<8x1xf32> to vector<8x8xf32>
    %268 = arith.subf %264, %267 : vector<8x8xf32>
    %269 = math.exp %268 : vector<8x8xf32>
    %cst_103 = arith.constant dense<0.000000e+00> : vector<8xf32>
    %270 = vector.multi_reduction <add>, %269, %cst_103 [1] : vector<8x8xf32> to vector<8xf32>
    %271 = vector.shape_cast %270 : vector<8xf32> to vector<8x1xf32>
    %272 = vector.broadcast %271 : vector<8x1xf32> to vector<8x8xf32>
    %273 = arith.divf %269, %272 : vector<8x8xf32>
    %cst_104 = arith.constant dense<0.000000e+00> : vector<8x32xf32>
    %274 = tpu.matmul %273, %259, %cst_104 {dimension_numbers = #tpu.dot_dimension_numbers<[1], [0], [0], [1], [0, 0, 1, 1], [], []>} : vector<8x8xf32>, vector<8x32xf32>, vector<8x32xf32> -> vector<8x32xf32>
    %275 = vector.extract_strided_slice %253 {offsets = [0, 32], sizes = [8, 32], strides = [1, 1]} : vector<8x64xf32> to vector<8x32xf32>
    %276 = vector.extract_strided_slice %254 {offsets = [0, 32], sizes = [8, 32], strides = [1, 1]} : vector<8x64xf32> to vector<8x32xf32>
    %277 = vector.extract_strided_slice %255 {offsets = [0, 32], sizes = [8, 32], strides = [1, 1]} : vector<8x64xf32> to vector<8x32xf32>
    %cst_105 = arith.constant dense<0.000000e+00> : vector<8x8xf32>
    %278 = tpu.matmul %275, %276, %cst_105 {dimension_numbers = #tpu.dot_dimension_numbers<[1], [1], [0], [0], [0, 0, 1, 0], [], []>} : vector<8x32xf32>, vector<8x32xf32>, vector<8x8xf32> -> vector<8x8xf32>
    %cst_106 = arith.constant 0.176776692 : f32
    %279 = vector.broadcast %cst_106 : f32 to vector<8x8xf32>
    %280 = arith.mulf %278, %279 : vector<8x8xf32>
    %281 = vector.broadcast %256 : vector<1x8xf32> to vector<8x8xf32>
    %282 = arith.addf %280, %281 : vector<8x8xf32>
    %cst_107 = arith.constant dense<0xFF800000> : vector<8xf32>
    %283 = vector.multi_reduction <maximumf>, %282, %cst_107 [1] : vector<8x8xf32> to vector<8xf32>
    %284 = vector.shape_cast %283 : vector<8xf32> to vector<8x1xf32>
    %285 = vector.broadcast %284 : vector<8x1xf32> to vector<8x8xf32>
    %286 = arith.subf %282, %285 : vector<8x8xf32>
    %287 = math.exp %286 : vector<8x8xf32>
    %cst_108 = arith.constant dense<0.000000e+00> : vector<8xf32>
    %288 = vector.multi_reduction <add>, %287, %cst_108 [1] : vector<8x8xf32> to vector<8xf32>
    %289 = vector.shape_cast %288 : vector<8xf32> to vector<8x1xf32>
    %290 = vector.broadcast %289 : vector<8x1xf32> to vector<8x8xf32>
    %291 = arith.divf %287, %290 : vector<8x8xf32>
    %cst_109 = arith.constant dense<0.000000e+00> : vector<8x32xf32>
    %292 = tpu.matmul %291, %277, %cst_109 {dimension_numbers = #tpu.dot_dimension_numbers<[1], [0], [0], [1], [0, 0, 1, 1], [], []>} : vector<8x8xf32>, vector<8x32xf32>, vector<8x32xf32> -> vector<8x32xf32>
    %293 = tpu.concatenate %274, %292 in 1 : vector<8x32xf32>, vector<8x32xf32> -> vector<8x64xf32>
    %294 = tpu.concatenate %252, %293 in 0 : vector<8x64xf32>, vector<8x64xf32> -> vector<16x64xf32>
    %c1_110 = arith.constant 1 : index
    %c0_111 = arith.constant 0 : index
    %c0_112 = arith.constant 0 : index
    %295 = vector.load %arg7[%c1_110, %c0_111, %c0_112] : memref<2x64x64xf32, #tpu.memory_space<vmem>>, vector<1x64x64xf32>
    %296 = vector.shape_cast %295 : vector<1x64x64xf32> to vector<64x64xf32>
    %cst_113 = arith.constant dense<0.000000e+00> : vector<16x64xf32>
    %297 = tpu.matmul %294, %296, %cst_113 {dimension_numbers = #tpu.dot_dimension_numbers<[1], [0], [0], [1], [0, 0, 1, 1], [], []>} : vector<16x64xf32>, vector<64x64xf32>, vector<16x64xf32> -> vector<16x64xf32>
    %c1_114 = arith.constant 1 : index
    %c0_115 = arith.constant 0 : index
    %c0_116 = arith.constant 0 : index
    %298 = vector.load %arg8[%c1_114, %c0_115, %c0_116] : memref<2x1x64xf32, #tpu.memory_space<vmem>>, vector<1x1x64xf32>
    %299 = vector.shape_cast %298 : vector<1x1x64xf32> to vector<1x64xf32>
    %300 = vector.broadcast %299 : vector<1x64xf32> to vector<16x64xf32>
    %301 = arith.addf %297, %300 : vector<16x64xf32>
    %302 = arith.addf %301, %201 : vector<16x64xf32>
    %c1_117 = arith.constant 1 : index
    %c0_118 = arith.constant 0 : index
    %c0_119 = arith.constant 0 : index
    %303 = vector.load %arg9[%c1_117, %c0_118, %c0_119] : memref<2x1x64xf32, #tpu.memory_space<vmem>>, vector<1x1x64xf32>
    %304 = vector.shape_cast %303 : vector<1x1x64xf32> to vector<1x64xf32>
    %c1_120 = arith.constant 1 : index
    %c0_121 = arith.constant 0 : index
    %c0_122 = arith.constant 0 : index
    %305 = vector.load %arg10[%c1_120, %c0_121, %c0_122] : memref<2x1x64xf32, #tpu.memory_space<vmem>>, vector<1x1x64xf32>
    %306 = vector.shape_cast %305 : vector<1x1x64xf32> to vector<1x64xf32>
    %cst_123 = arith.constant dense<0.000000e+00> : vector<16xf32>
    %307 = vector.multi_reduction <add>, %302, %cst_123 [1] : vector<16x64xf32> to vector<16xf32>
    %308 = vector.shape_cast %307 : vector<16xf32> to vector<16x1xf32>
    %cst_124 = arith.constant 6.400000e+01 : f32
    %309 = vector.broadcast %cst_124 : f32 to vector<16x1xf32>
    %310 = arith.divf %308, %309 : vector<16x1xf32>
    %311 = vector.broadcast %310 : vector<16x1xf32> to vector<16x64xf32>
    %312 = arith.subf %302, %311 : vector<16x64xf32>
    %313 = arith.mulf %312, %312 : vector<16x64xf32>
    %cst_125 = arith.constant dense<0.000000e+00> : vector<16xf32>
    %314 = vector.multi_reduction <add>, %313, %cst_125 [1] : vector<16x64xf32> to vector<16xf32>
    %315 = vector.shape_cast %314 : vector<16xf32> to vector<16x1xf32>
    %cst_126 = arith.constant 6.400000e+01 : f32
    %316 = vector.broadcast %cst_126 : f32 to vector<16x1xf32>
    %317 = arith.divf %315, %316 : vector<16x1xf32>
    %318 = vector.broadcast %310 : vector<16x1xf32> to vector<16x64xf32>
    %319 = arith.subf %302, %318 : vector<16x64xf32>
    %cst_127 = arith.constant 9.99999996E-13 : f32
    %320 = vector.broadcast %cst_127 : f32 to vector<16x1xf32>
    %321 = arith.addf %317, %320 : vector<16x1xf32>
    %322 = math.rsqrt %321 : vector<16x1xf32>
    %323 = vector.broadcast %322 : vector<16x1xf32> to vector<16x64xf32>
    %324 = arith.mulf %319, %323 : vector<16x64xf32>
    %325 = vector.broadcast %304 : vector<1x64xf32> to vector<16x64xf32>
    %326 = arith.mulf %324, %325 : vector<16x64xf32>
    %327 = vector.broadcast %306 : vector<1x64xf32> to vector<16x64xf32>
    %328 = arith.addf %326, %327 : vector<16x64xf32>
    %c1_128 = arith.constant 1 : index
    %c0_129 = arith.constant 0 : index
    %c0_130 = arith.constant 0 : index
    %329 = vector.load %arg11[%c1_128, %c0_129, %c0_130] : memref<2x64x128xf32, #tpu.memory_space<vmem>>, vector<1x64x128xf32>
    %330 = vector.shape_cast %329 : vector<1x64x128xf32> to vector<64x128xf32>
    %cst_131 = arith.constant dense<0.000000e+00> : vector<16x128xf32>
    %331 = tpu.matmul %328, %330, %cst_131 {dimension_numbers = #tpu.dot_dimension_numbers<[1], [0], [0], [1], [0, 0, 1, 1], [], []>} : vector<16x64xf32>, vector<64x128xf32>, vector<16x128xf32> -> vector<16x128xf32>
    %c1_132 = arith.constant 1 : index
    %c0_133 = arith.constant 0 : index
    %c0_134 = arith.constant 0 : index
    %332 = vector.load %arg12[%c1_132, %c0_133, %c0_134] : memref<2x1x128xf32, #tpu.memory_space<vmem>>, vector<1x1x128xf32>
    %333 = vector.shape_cast %332 : vector<1x1x128xf32> to vector<1x128xf32>
    %334 = vector.broadcast %333 : vector<1x128xf32> to vector<16x128xf32>
    %335 = arith.addf %331, %334 : vector<16x128xf32>
    %cst_135 = arith.constant 5.000000e-01 : f32
    %336 = vector.broadcast %cst_135 : f32 to vector<16x128xf32>
    %337 = arith.mulf %336, %335 : vector<16x128xf32>
    %cst_136 = arith.constant 0.707106769 : f32
    %338 = vector.broadcast %cst_136 : f32 to vector<16x128xf32>
    %339 = arith.mulf %335, %338 : vector<16x128xf32>
    %340 = math.erf %339 : vector<16x128xf32>
    %cst_137 = arith.constant 1.000000e+00 : f32
    %341 = vector.broadcast %cst_137 : f32 to vector<16x128xf32>
    %342 = arith.addf %341, %340 : vector<16x128xf32>
    %343 = arith.mulf %337, %342 : vector<16x128xf32>
    %c1_138 = arith.constant 1 : index
    %c0_139 = arith.constant 0 : index
    %c0_140 = arith.constant 0 : index
    %344 = vector.load %arg13[%c1_138, %c0_139, %c0_140] : memref<2x128x64xf32, #tpu.memory_space<vmem>>, vector<1x128x64xf32>
    %345 = vector.shape_cast %344 : vector<1x128x64xf32> to vector<128x64xf32>
    %cst_141 = arith.constant dense<0.000000e+00> : vector<16x64xf32>
    %346 = tpu.matmul %343, %345, %cst_141 {dimension_numbers = #tpu.dot_dimension_numbers<[1], [0], [0], [1], [0, 0, 1, 1], [], []>} : vector<16x128xf32>, vector<128x64xf32>, vector<16x64xf32> -> vector<16x64xf32>
    %c1_142 = arith.constant 1 : index
    %c0_143 = arith.constant 0 : index
    %c0_144 = arith.constant 0 : index
    %347 = vector.load %arg14[%c1_142, %c0_143, %c0_144] : memref<2x1x64xf32, #tpu.memory_space<vmem>>, vector<1x1x64xf32>
    %348 = vector.shape_cast %347 : vector<1x1x64xf32> to vector<1x64xf32>
    %349 = vector.broadcast %348 : vector<1x64xf32> to vector<16x64xf32>
    %350 = arith.addf %346, %349 : vector<16x64xf32>
    %351 = arith.addf %350, %328 : vector<16x64xf32>
    %c1_145 = arith.constant 1 : index
    %c0_146 = arith.constant 0 : index
    %c0_147 = arith.constant 0 : index
    %352 = vector.load %arg15[%c1_145, %c0_146, %c0_147] : memref<2x1x64xf32, #tpu.memory_space<vmem>>, vector<1x1x64xf32>
    %353 = vector.shape_cast %352 : vector<1x1x64xf32> to vector<1x64xf32>
    %c1_148 = arith.constant 1 : index
    %c0_149 = arith.constant 0 : index
    %c0_150 = arith.constant 0 : index
    %354 = vector.load %arg16[%c1_148, %c0_149, %c0_150] : memref<2x1x64xf32, #tpu.memory_space<vmem>>, vector<1x1x64xf32>
    %355 = vector.shape_cast %354 : vector<1x1x64xf32> to vector<1x64xf32>
    %cst_151 = arith.constant dense<0.000000e+00> : vector<16xf32>
    %356 = vector.multi_reduction <add>, %351, %cst_151 [1] : vector<16x64xf32> to vector<16xf32>
    %357 = vector.shape_cast %356 : vector<16xf32> to vector<16x1xf32>
    %cst_152 = arith.constant 6.400000e+01 : f32
    %358 = vector.broadcast %cst_152 : f32 to vector<16x1xf32>
    %359 = arith.divf %357, %358 : vector<16x1xf32>
    %360 = vector.broadcast %359 : vector<16x1xf32> to vector<16x64xf32>
    %361 = arith.subf %351, %360 : vector<16x64xf32>
    %362 = arith.mulf %361, %361 : vector<16x64xf32>
    %cst_153 = arith.constant dense<0.000000e+00> : vector<16xf32>
    %363 = vector.multi_reduction <add>, %362, %cst_153 [1] : vector<16x64xf32> to vector<16xf32>
    %364 = vector.shape_cast %363 : vector<16xf32> to vector<16x1xf32>
    %cst_154 = arith.constant 6.400000e+01 : f32
    %365 = vector.broadcast %cst_154 : f32 to vector<16x1xf32>
    %366 = arith.divf %364, %365 : vector<16x1xf32>
    %367 = vector.broadcast %359 : vector<16x1xf32> to vector<16x64xf32>
    %368 = arith.subf %351, %367 : vector<16x64xf32>
    %cst_155 = arith.constant 9.99999996E-13 : f32
    %369 = vector.broadcast %cst_155 : f32 to vector<16x1xf32>
    %370 = arith.addf %366, %369 : vector<16x1xf32>
    %371 = math.rsqrt %370 : vector<16x1xf32>
    %372 = vector.broadcast %371 : vector<16x1xf32> to vector<16x64xf32>
    %373 = arith.mulf %368, %372 : vector<16x64xf32>
    %374 = vector.broadcast %353 : vector<1x64xf32> to vector<16x64xf32>
    %375 = arith.mulf %373, %374 : vector<16x64xf32>
    %376 = vector.broadcast %355 : vector<1x64xf32> to vector<16x64xf32>
    %377 = arith.addf %375, %376 : vector<16x64xf32>
    %378 = vector.extract_strided_slice %377 {offsets = [0, 0], sizes = [1, 64], strides = [1, 1]} : vector<16x64xf32> to vector<1x64xf32>
    %379 = vector.extract_strided_slice %377 {offsets = [8, 0], sizes = [1, 64], strides = [1, 1]} : vector<16x64xf32> to vector<1x64xf32>
    %380 = tpu.concatenate %378, %379 in 0 : vector<1x64xf32>, vector<1x64xf32> -> vector<2x64xf32>
    %c0_156 = arith.constant 0 : index
    %c0_157 = arith.constant 0 : index
    %381 = vector.load %arg17[%c0_156, %c0_157] : memref<64x64xf32, #tpu.memory_space<vmem>>, vector<64x64xf32>
    %cst_158 = arith.constant dense<0.000000e+00> : vector<2x64xf32>
    %382 = tpu.matmul %380, %381, %cst_158 {dimension_numbers = #tpu.dot_dimension_numbers<[1], [0], [0], [1], [0, 0, 1, 1], [], []>} : vector<2x64xf32>, vector<64x64xf32>, vector<2x64xf32> -> vector<2x64xf32>
    %c0_159 = arith.constant 0 : index
    %c0_160 = arith.constant 0 : index
    %383 = vector.load %arg18[%c0_159, %c0_160] : memref<1x64xf32, #tpu.memory_space<vmem>>, vector<1x64xf32>
    %384 = vector.broadcast %383 : vector<1x64xf32> to vector<2x64xf32>
    %385 = arith.addf %382, %384 : vector<2x64xf32>
    %386 = math.tanh %385 : vector<2x64xf32>
    %c0_161 = arith.constant 0 : index
    %c0_162 = arith.constant 0 : index
    %387 = vector.load %arg19[%c0_161, %c0_162] : memref<64x128xf32, #tpu.memory_space<vmem>>, vector<64x128xf32>
    %cst_163 = arith.constant dense<0.000000e+00> : vector<2x128xf32>
    %388 = tpu.matmul %386, %387, %cst_163 {dimension_numbers = #tpu.dot_dimension_numbers<[1], [0], [0], [1], [0, 0, 1, 1], [], []>} : vector<2x64xf32>, vector<64x128xf32>, vector<2x128xf32> -> vector<2x128xf32>
    %c0_164 = arith.constant 0 : index
    %c0_165 = arith.constant 0 : index
    %389 = vector.load %arg20[%c0_164, %c0_165] : memref<1x128xf32, #tpu.memory_space<vmem>>, vector<1x128xf32>
    %390 = vector.broadcast %389 : vector<1x128xf32> to vector<2x128xf32>
    %391 = arith.addf %388, %390 : vector<2x128xf32>
    %c0_166 = arith.constant 0 : index
    %c0_167 = arith.constant 0 : index
    %392 = vector.load %arg21[%c0_166, %c0_167] : memref<2x128xf32, #tpu.memory_space<vmem>>, vector<2x128xf32>
    tpu.vector_store %arg21[%c0_166, %c0_167], %391 {strides = array<i32>} : memref<2x128xf32, #tpu.memory_space<vmem>>, vector<2x128xf32>,
    return
  }
  func.func @transform_0(%arg0: i32) -> (i32, i32) {
    %c0_i32 = arith.constant 0 : i32
    %c0_i32_0 = arith.constant 0 : i32
    %c0_i32_1 = arith.constant 0 : i32
    return %c0_i32, %c0_i32_0 : i32, i32
  }
  func.func @transform_1(%arg0: i32) -> (i32, i32) {
    %c0_i32 = arith.constant 0 : i32
    %c0_i32_0 = arith.constant 0 : i32
    %c0_i32_1 = arith.constant 0 : i32
    return %c0_i32, %c0_i32_0 : i32, i32
  }
  func.func @transform_2(%arg0: i32) -> (i32, i32) {
    %c0_i32 = arith.constant 0 : i32
    %c0_i32_0 = arith.constant 0 : i32
    %c0_i32_1 = arith.constant 0 : i32
    return %c0_i32, %c0_i32_0 : i32, i32
  }
  func.func @transform_3(%arg0: i32) -> (i32, i32) {
    %c0_i32 = arith.constant 0 : i32
    %c0_i32_0 = arith.constant 0 : i32
    %c0_i32_1 = arith.constant 0 : i32
    return %c0_i32, %c0_i32_0 : i32, i32
  }
  func.func @transform_4(%arg0: i32) -> (i32, i32, i32) {
    %c0_i32 = arith.constant 0 : i32
    %c0_i32_0 = arith.constant 0 : i32
    %c0_i32_1 = arith.constant 0 : i32
    %c0_i32_2 = arith.constant 0 : i32
    return %c0_i32, %c0_i32_0, %c0_i32_1 : i32, i32, i32
  }
  func.func @transform_5(%arg0: i32) -> (i32, i32, i32) {
    %c0_i32 = arith.constant 0 : i32
    %c0_i32_0 = arith.constant 0 : i32
    %c0_i32_1 = arith.constant 0 : i32
    %c0_i32_2 = arith.constant 0 : i32
    return %c0_i32, %c0_i32_0, %c0_i32_1 : i32, i32, i32
  }
  func.func @transform_6(%arg0: i32) -> (i32, i32, i32) {
    %c0_i32 = arith.constant 0 : i32
    %c0_i32_0 = arith.constant 0 : i32
    %c0_i32_1 = arith.constant 0 : i32
    %c0_i32_2 = arith.constant 0 : i32
    return %c0_i32, %c0_i32_0, %c0_i32_1 : i32, i32, i32
  }
  func.func @transform_7(%arg0: i32) -> (i32, i32, i32) {
    %c0_i32 = arith.constant 0 : i32
    %c0_i32_0 = arith.constant 0 : i32
    %c0_i32_1 = arith.constant 0 : i32
    %c0_i32_2 = arith.constant 0 : i32
    return %c0_i32, %c0_i32_0, %c0_i32_1 : i32, i32, i32
  }
  func.func @transform_8(%arg0: i32) -> (i32, i32, i32) {
    %c0_i32 = arith.constant 0 : i32
    %c0_i32_0 = arith.constant 0 : i32
    %c0_i32_1 = arith.constant 0 : i32
    %c0_i32_2 = arith.constant 0 : i32
    return %c0_i32, %c0_i32_0, %c0_i32_1 : i32, i32, i32
  }
  func.func @transform_9(%arg0: i32) -> (i32, i32, i32) {
    %c0_i32 = arith.constant 0 : i32
    %c0_i32_0 = arith.constant 0 : i32
    %c0_i32_1 = arith.constant 0 : i32
    %c0_i32_2 = arith.constant 0 : i32
    return %c0_i32, %c0_i32_0, %c0_i32_1 : i32, i32, i32
  }
  func.func @transform_10(%arg0: i32) -> (i32, i32, i32) {
    %c0_i32 = arith.constant 0 : i32
    %c0_i32_0 = arith.constant 0 : i32
    %c0_i32_1 = arith.constant 0 : i32
    %c0_i32_2 = arith.constant 0 : i32
    return %c0_i32, %c0_i32_0, %c0_i32_1 : i32, i32, i32
  }
  func.func @transform_11(%arg0: i32) -> (i32, i32, i32) {
    %c0_i32 = arith.constant 0 : i32
    %c0_i32_0 = arith.constant 0 : i32
    %c0_i32_1 = arith.constant 0 : i32
    %c0_i32_2 = arith.constant 0 : i32
    return %c0_i32, %c0_i32_0, %c0_i32_1 : i32, i32, i32
  }
  func.func @transform_12(%arg0: i32) -> (i32, i32, i32) {
    %c0_i32 = arith.constant 0 : i32
    %c0_i32_0 = arith.constant 0 : i32
    %c0_i32_1 = arith.constant 0 : i32
    %c0_i32_2 = arith.constant 0 : i32
    return %c0_i32, %c0_i32_0, %c0_i32_1 : i32, i32, i32
  }
  func.func @transform_13(%arg0: i32) -> (i32, i32, i32) {
    %c0_i32 = arith.constant 0 : i32
    %c0_i32_0 = arith.constant 0 : i32
    %c0_i32_1 = arith.constant 0 : i32
    %c0_i32_2 = arith.constant 0 : i32
    return %c0_i32, %c0_i32_0, %c0_i32_1 : i32, i32, i32
  }
  func.func @transform_14(%arg0: i32) -> (i32, i32, i32) {
    %c0_i32 = arith.constant 0 : i32
    %c0_i32_0 = arith.constant 0 : i32
    %c0_i32_1 = arith.constant 0 : i32
    %c0_i32_2 = arith.constant 0 : i32
    return %c0_i32, %c0_i32_0, %c0_i32_1 : i32, i32, i32
  }
  func.func @transform_15(%arg0: i32) -> (i32, i32, i32) {
    %c0_i32 = arith.constant 0 : i32
    %c0_i32_0 = arith.constant 0 : i32
    %c0_i32_1 = arith.constant 0 : i32
    %c0_i32_2 = arith.constant 0 : i32
    return %c0_i32, %c0_i32_0, %c0_i32_1 : i32, i32, i32
  }
  func.func @transform_16(%arg0: i32) -> (i32, i32) {
    %c0_i32 = arith.constant 0 : i32
    %c0_i32_0 = arith.constant 0 : i32
    %c0_i32_1 = arith.constant 0 : i32
    return %c0_i32, %c0_i32_0 : i32, i32
  }
  func.func @transform_17(%arg0: i32) -> (i32, i32) {
    %c0_i32 = arith.constant 0 : i32
    %c0_i32_0 = arith.constant 0 : i32
    %c0_i32_1 = arith.constant 0 : i32
    return %c0_i32, %c0_i32_0 : i32, i32
  }
  func.func @transform_18(%arg0: i32) -> (i32, i32) {
    %c0_i32 = arith.constant 0 : i32
    %c0_i32_0 = arith.constant 0 : i32
    %c0_i32_1 = arith.constant 0 : i32
    return %c0_i32, %c0_i32_0 : i32, i32
  }
  func.func @transform_19(%arg0: i32) -> (i32, i32) {
    %c0_i32 = arith.constant 0 : i32
    %c0_i32_0 = arith.constant 0 : i32
    %c0_i32_1 = arith.constant 0 : i32
    return %c0_i32, %c0_i32_0 : i32, i32
  }
  func.func @transform_20(%arg0: i32) -> (i32, i32) {
    %c0_i32 = arith.constant 0 : i32
    %c0_i32_0 = arith.constant 0 : i32
    %c0_i32_1 = arith.constant 0 : i32
    return %c0_i32, %c0_i32_0 : i32, i32
  }
}

</mosaic_0001>

<llo_original>
// kernel: bert_classification_forward.1
$region0: #{bert_classification_forward.1}
  #allocation0 [shape = 'u32[]', space=smem, size = 0x4, offset = 0x4, fixed_abs, tag = 'smem constant byte address 0x4 - core index']
  #allocation1 [shape = 'u32[144,128]{1,0:T(1,128)}', space=vmem, size = 0x12000, scoped, tag = 'internal scratch']
  %s0 = inlined_call_operand.vmem [shape: f32[16,64], index: 0, kind: input, shape index: {}]
  %s1 = inlined_call_operand.vmem [shape: f32[2,8], index: 1, kind: input, shape index: {}]
  %s2 = inlined_call_operand.vmem [shape: f32[1,64], index: 2, kind: input, shape index: {}]
  %s3 = inlined_call_operand.vmem [shape: f32[1,64], index: 3, kind: input, shape index: {}]
  %s4 = inlined_call_operand.vmem [shape: f32[2,64,192], index: 4, kind: input, shape index: {}]
  %s5 = inlined_call_operand.vmem [shape: f32[2,1,192], index: 5, kind: input, shape index: {}]
  %s6 = inlined_call_operand.vmem [shape: f32[2,64,64], index: 6, kind: input, shape index: {}]
  %s7 = inlined_call_operand.vmem [shape: f32[2,1,64], index: 7, kind: input, shape index: {}]
  %s8 = inlined_call_operand.vmem [shape: f32[2,1,64], index: 8, kind: input, shape index: {}]
  %s9 = inlined_call_operand.vmem [shape: f32[2,1,64], index: 9, kind: input, shape index: {}]
  %s10 = inlined_call_operand.vmem [shape: f32[2,64,128], index: 10, kind: input, shape index: {}]
  %s11 = inlined_call_operand.vmem [shape: f32[2,1,128], index: 11, kind: input, shape index: {}]
  %s12 = inlined_call_operand.vmem [shape: f32[2,128,64], index: 12, kind: input, shape index: {}]
  %s13 = inlined_call_operand.vmem [shape: f32[2,1,64], index: 13, kind: input, shape index: {}]
  %s14 = inlined_call_operand.vmem [shape: f32[2,1,64], index: 14, kind: input, shape index: {}]
  %s15 = inlined_call_operand.vmem [shape: f32[2,1,64], index: 15, kind: input, shape index: {}]
  %s16 = inlined_call_operand.vmem [shape: f32[64,64], index: 16, kind: input, shape index: {}]
  %s17 = inlined_call_operand.vmem [shape: f32[1,64], index: 17, kind: input, shape index: {}]
  %s18 = inlined_call_operand.vmem [shape: f32[64,128], index: 18, kind: input, shape index: {}]
  %s19 = inlined_call_operand.vmem [shape: f32[1,128], index: 19, kind: input, shape index: {}]
  %s20 = inlined_call_operand.hbm [shape: f32[2,128], index: 20, kind: output, shape index: {}]
  %s21 = sld [smem:[#allocation0]]
  $region90: #{bert_classification_forward.1} parent=0
    _
  %s23 = ssub.s32 1, %s21
  %s24 = scalar_select 0, %s23, %s21
  $region1: #{bert_classification_forward.1} parent=0
    #allocation2 [shape = 'u8[1024]{0}', space=vmem, size = 0x400, scoped, tag = 'output window, operand 0, single buffered']
    #allocation3 [shape = 's32[1]{0}', space=sflag, size = 0x4, scoped, tag = 'scoped memory for bert_classification_forward.1']
    %25 = vsyncpa [#allocation3], 0
    // Predicated region
    $region2: #{bert_classification_forward.1} parent=1 // pred_check
      _
    $region3: #{bert_classification_forward.1} parent=1 // pred_check_branch
      %27 = sbr.rel (0) target = $region5
    $region4: #{bert_classification_forward.1} parent=1 // pred_region
      _
    $region5: #{bert_classification_forward.1} parent=1 // pred_fallthru
      _
    // Predicated region
    $region6: #{bert_classification_forward.1} parent=1 // pred_check
      _
    $region7: #{bert_classification_forward.1} parent=1 // pred_check_branch
      %29 = sbr.rel (0) target = $region9
    $region8: #{bert_classification_forward.1} parent=1 // pred_region
      _
    $region9: #{bert_classification_forward.1} parent=1 // pred_fallthru
      _
    // Predicated region
    $region10: #{bert_classification_forward.1} parent=1 // pred_check
      _
    $region11: #{bert_classification_forward.1} parent=1 // pred_check_branch
      %31 = sbr.rel (0) target = $region13
    $region12: #{bert_classification_forward.1} parent=1 // pred_region
      _
    $region13: #{bert_classification_forward.1} parent=1 // pred_fallthru
      _
    // Predicated region
    $region14: #{bert_classification_forward.1} parent=1 // pred_check
      _
    $region15: #{bert_classification_forward.1} parent=1 // pred_check_branch
      %33 = sbr.rel (0) target = $region17
    $region16: #{bert_classification_forward.1} parent=1 // pred_region
      _
    $region17: #{bert_classification_forward.1} parent=1 // pred_fallthru
      _
    // Predicated region
    $region18: #{bert_classification_forward.1} parent=1 // pred_check
      _
    $region19: #{bert_classification_forward.1} parent=1 // pred_check_branch
      %35 = sbr.rel (0) target = $region21
    $region20: #{bert_classification_forward.1} parent=1 // pred_region
      _
    $region21: #{bert_classification_forward.1} parent=1 // pred_fallthru
      _
    // Predicated region
    $region22: #{bert_classification_forward.1} parent=1 // pred_check
      _
    $region23: #{bert_classification_forward.1} parent=1 // pred_check_branch
      %37 = sbr.rel (0) target = $region25
    $region24: #{bert_classification_forward.1} parent=1 // pred_region
      _
    $region25: #{bert_classification_forward.1} parent=1 // pred_fallthru
      _
    // Predicated region
    $region26: #{bert_classification_forward.1} parent=1 // pred_check
      _
    $region27: #{bert_classification_forward.1} parent=1 // pred_check_branch
      %39 = sbr.rel (0) target = $region29
    $region28: #{bert_classification_forward.1} parent=1 // pred_region
      _
    $region29: #{bert_classification_forward.1} parent=1 // pred_fallthru
      _
    // Predicated region
    $region30: #{bert_classification_forward.1} parent=1 // pred_check
      _
    $region31: #{bert_classification_forward.1} parent=1 // pred_check_branch
      %41 = sbr.rel (0) target = $region33
    $region32: #{bert_classification_forward.1} parent=1 // pred_region
      _
    $region33: #{bert_classification_forward.1} parent=1 // pred_fallthru
      _
    // Predicated region
    $region34: #{bert_classification_forward.1} parent=1 // pred_check
      _
    $region35: #{bert_classification_forward.1} parent=1 // pred_check_branch
      %43 = sbr.rel (0) target = $region37
    $region36: #{bert_classification_forward.1} parent=1 // pred_region
      _
    $region37: #{bert_classification_forward.1} parent=1 // pred_fallthru
      _
    // Predicated region
    $region38: #{bert_classification_forward.1} parent=1 // pred_check
      _
    $region39: #{bert_classification_forward.1} parent=1 // pred_check_branch
      %45 = sbr.rel (0) target = $region41
    $region40: #{bert_classification_forward.1} parent=1 // pred_region
      _
    $region41: #{bert_classification_forward.1} parent=1 // pred_fallthru
      _
    // Predicated region
    $region42: #{bert_classification_forward.1} parent=1 // pred_check
      _
    $region43: #{bert_classification_forward.1} parent=1 // pred_check_branch
      %47 = sbr.rel (0) target = $region45
    $region44: #{bert_classification_forward.1} parent=1 // pred_region
      _
    $region45: #{bert_classification_forward.1} parent=1 // pred_fallthru
      _
    // Predicated region
    $region46: #{bert_classification_forward.1} parent=1 // pred_check
      _
    $region47: #{bert_classification_forward.1} parent=1 // pred_check_branch
      %49 = sbr.rel (0) target = $region49
    $region48: #{bert_classification_forward.1} parent=1 // pred_region
      _
    $region49: #{bert_classification_forward.1} parent=1 // pred_fallthru
      _
    // Predicated region
    $region50: #{bert_classification_forward.1} parent=1 // pred_check
      _
    $region51: #{bert_classification_forward.1} parent=1 // pred_check_branch
      %51 = sbr.rel (0) target = $region53
    $region52: #{bert_classification_forward.1} parent=1 // pred_region
      _
    $region53: #{bert_classification_forward.1} parent=1 // pred_fallthru
      _
    // Predicated region
    $region54: #{bert_classification_forward.1} parent=1 // pred_check
      _
    $region55: #{bert_classification_forward.1} parent=1 // pred_check_branch
      %53 = sbr.rel (0) target = $region57
    $region56: #{bert_classification_forward.1} parent=1 // pred_region
      _
    $region57: #{bert_classification_forward.1} parent=1 // pred_fallthru
      _
    // Predicated region
    $region58: #{bert_classification_forward.1} parent=1 // pred_check
      _
    $region59: #{bert_classification_forward.1} parent=1 // pred_check_branch
      %55 = sbr.rel (0) target = $region61
    $region60: #{bert_classification_forward.1} parent=1 // pred_region
      _
    $region61: #{bert_classification_forward.1} parent=1 // pred_fallthru
      _
    // Predicated region
    $region62: #{bert_classification_forward.1} parent=1 // pred_check
      _
    $region63: #{bert_classification_forward.1} parent=1 // pred_check_branch
      %57 = sbr.rel (0) target = $region65
    $region64: #{bert_classification_forward.1} parent=1 // pred_region
      _
    $region65: #{bert_classification_forward.1} parent=1 // pred_fallthru
      _
    // Predicated region
    $region66: #{bert_classification_forward.1} parent=1 // pred_check
      _
    $region67: #{bert_classification_forward.1} parent=1 // pred_check_branch
      %59 = sbr.rel (0) target = $region69
    $region68: #{bert_classification_forward.1} parent=1 // pred_region
      _
    $region69: #{bert_classification_forward.1} parent=1 // pred_fallthru
      _
    // Predicated region
    $region70: #{bert_classification_forward.1} parent=1 // pred_check
      _
    $region71: #{bert_classification_forward.1} parent=1 // pred_check_branch
      %61 = sbr.rel (0) target = $region73
    $region72: #{bert_classification_forward.1} parent=1 // pred_region
      _
    $region73: #{bert_classification_forward.1} parent=1 // pred_fallthru
      _
    // Predicated region
    $region74: #{bert_classification_forward.1} parent=1 // pred_check
      _
    $region75: #{bert_classification_forward.1} parent=1 // pred_check_branch
      %63 = sbr.rel (0) target = $region77
    $region76: #{bert_classification_forward.1} parent=1 // pred_region
      _
    $region77: #{bert_classification_forward.1} parent=1 // pred_fallthru
      _
    // Predicated region
    $region78: #{bert_classification_forward.1} parent=1 // pred_check
      _
    $region79: #{bert_classification_forward.1} parent=1 // pred_check_branch
      %65 = sbr.rel (0) target = $region81
    $region80: #{bert_classification_forward.1} parent=1 // pred_region
      _
    $region81: #{bert_classification_forward.1} parent=1 // pred_fallthru
      _
    %v66 = vld [vmem:[%s1] sm:$0x3]
    %v67 = vld [vmem:[%s0] sm:$0xff]
    %v68 = vld [vmem:[%s0 + $0x8] sm:$0xff]
    %v69 = vld [vmem:[%s2] sm:$0x1]
    %v70 = vld [vmem:[%s3] sm:$0x1]
    %vm71 = vcmask 523264
    %v72 = vsel %vm71, %v67, 0.0
    %73 = vadd.xlane.f32.xlu0 %v72
    %v74 = vpop.xlane.xlu0 %73
    %v75 = vsel %vm71, %v68, 0.0
    %76 = vadd.xlane.f32.xlu0 %v75
    %v77 = vpop.xlane.xlu0 %76
    %v78 = vrcp.pop 64.0
    %v79 = vmul.f32 %v74, %v78
    %v80 = vmul.f32 %v77, %v78
    %v81 = vsub.f32 %v67, %v79
    %v82 = vsub.f32 %v68, %v80
    %v83 = vmul.f32 %v81, %v81
    %v84 = vmul.f32 %v82, %v82
    %v85 = vsel %vm71, %v83, 0.0
    %86 = vadd.xlane.f32.xlu0 %v85
    %v87 = vpop.xlane.xlu0 %86
    %v88 = vsel %vm71, %v84, 0.0
    %89 = vadd.xlane.f32.xlu0 %v88
    %v90 = vpop.xlane.xlu0 %89
    %v91 = vmul.f32 %v87, %v78
    %v92 = vmul.f32 %v90, %v78
    %v93 = vadd.f32 %v91, 1e-12
    %v94 = vadd.f32 %v92, 1e-12
    %v95 = vrsqrt.pop %v93
    %v96 = vrsqrt.pop %v94
    %v97 = vmul.f32 %v81, %v95
    %v98 = vmul.f32 %v82, %v96
    %v100 = vlaneseq
    %v101 = vshrl.u32 %v100, 7
    %v102 = vsub.s32 0, %v101
    %v103 = vrot.slane %v69, %v102
    %v105 = vmul.f32 %v97, %v103
    %v106 = vmul.f32 %v98, %v103
    %v108 = vlaneseq
    %v109 = vshrl.u32 %v108, 7
    %v110 = vsub.s32 0, %v109
    %v111 = vrot.slane %v70, %v110
    %v113 = vadd.f32 %v105, %v111
    %v114 = vadd.f32 %v106, %v111
    %v115 = vld [vmem:[%s4] sm:$0xff]
    %v116 = vld [vmem:[%s4 + $0x8] sm:$0xff]
    %v117 = vld [vmem:[%s4 + $0x10] sm:$0xff]
    %v118 = vld [vmem:[%s4 + $0x18] sm:$0xff]
    %v119 = vld [vmem:[%s4 + $0x20] sm:$0xff]
    %v120 = vld [vmem:[%s4 + $0x28] sm:$0xff]
    %v121 = vld [vmem:[%s4 + $0x30] sm:$0xff]
    %v122 = vld [vmem:[%s4 + $0x38] sm:$0xff]
    %v123 = vld [vmem:[%s4 + $0x40] sm:$0xff]
    %v124 = vld [vmem:[%s4 + $0x48] sm:$0xff]
    %v125 = vld [vmem:[%s4 + $0x50] sm:$0xff]
    %v126 = vld [vmem:[%s4 + $0x58] sm:$0xff]
    %v127 = vld [vmem:[%s4 + $0x60] sm:$0xff]
    %v128 = vld [vmem:[%s4 + $0x68] sm:$0xff]
    %v129 = vld [vmem:[%s4 + $0x70] sm:$0xff]
    %v130 = vld [vmem:[%s4 + $0x78] sm:$0xff]
    %v131 = vld [vmem:[%s5] sm:$0x3]
    %v133 = vlaneseq
    %v134 = vshrl.u32 %v133, 7
    %v135 = vsub.s32 0, %v134
    %v136 = vrot.slane %v131, %v135
    %v137 = vlaneseq
    %v138 = vshrl.u32 %v137, 7
    %v139 = vsub.s32 1, %v138
    %v140 = vrot.slane %v131, %v139
    %v144 = vsel %vm71, %v113, 0
    %v147 = vsel %vm71, %v114, 0
    %149 = vmatprep.subr.mxu0 0.0
    %150 = vmatpush1.msra.mxu0 0.0
    %151 = vmatprep.subr.mxu0 0.0
    %152 = vmatpush1.msra.mxu0 0.0
    %153 = vmatprep.subr.mxu0 0.0
    %154 = vmatpush1.msra.mxu0 0.0
    %155 = vmatprep.subr.mxu0 0.0
    %156 = vmatpush1.msra.mxu0 0.0
    %157 = vmatprep.subr.mxu0 0.0
    %158 = vmatpush1.msra.mxu0 0.0
    %159 = vmatprep.subr.mxu0 0.0
    %160 = vmatpush1.msra.mxu0 0.0
    %161 = vmatprep.subr.mxu0 0.0
    %162 = vmatpush1.msra.mxu0 0.0
    %163 = vmatprep.subr.mxu0 0.0
    %164 = vmatpush1.msra.mxu0 0.0
    %165 = vmatprep.subr.mxu0 %v130
    %166 = vmatpush1.msra.mxu0 %v129
    %167 = vmatprep.subr.mxu0 %v128
    %168 = vmatpush1.msra.mxu0 %v127
    %169 = vmatprep.subr.mxu0 %v126
    %170 = vmatpush1.msra.mxu0 %v125
    %171 = vmatprep.subr.mxu0 %v124
    %172 = vmatpush1.msra.mxu0 %v123
    %173 = vmatprep.subr.mxu0 %v122
    %174 = vmatpush1.msra.mxu0 %v121
    %175 = vmatprep.subr.mxu0 %v120
    %176 = vmatpush1.msra.mxu0 %v119
    %177 = vmatprep.subr.mxu0 %v118
    %178 = vmatpush1.msra.mxu0 %v117
    %179 = vmatprep.subr.mxu0 %v116
    %180 = vmatpush1.msra.mxu0 %v115
    %181 = vmatprep.subr.mxu0 0.0
    %182 = vmatpush2.msra.mxu0 0.0
    %183 = vmatprep.subr.mxu0 0.0
    %184 = vmatpush2.msra.mxu0 0.0
    %185 = vmatprep.subr.mxu0 0.0
    %186 = vmatpush2.msra.mxu0 0.0
    %187 = vmatprep.subr.mxu0 0.0
    %188 = vmatpush2.msra.mxu0 0.0
    %189 = vmatprep.subr.mxu0 0.0
    %190 = vmatpush2.msra.mxu0 0.0
    %191 = vmatprep.subr.mxu0 0.0
    %192 = vmatpush2.msra.mxu0 0.0
    %193 = vmatprep.subr.mxu0 0.0
    %194 = vmatpush2.msra.mxu0 0.0
    %195 = vmatprep.subr.mxu0 0.0
    %196 = vmatpush2.msra.mxu0 0.0
    %197 = vmatprep.subr.mxu0 0.0
    %198 = vmatpush2.msra.mxu0 0.0
    %199 = vmatprep.subr.mxu0 0.0
    %200 = vmatpush2.msra.mxu0 0.0
    %201 = vmatprep.subr.mxu0 0.0
    %202 = vmatpush2.msra.mxu0 0.0
    %203 = vmatprep.subr.mxu0 0.0
    %204 = vmatpush2.msra.mxu0 0.0
    %205 = vmatprep.subr.mxu0 0.0
    %206 = vmatpush2.msra.mxu0 0.0
    %207 = vmatprep.subr.mxu0 0.0
    %208 = vmatpush2.msra.mxu0 0.0
    %209 = vmatprep.subr.mxu0 0.0
    %210 = vmatpush2.msra.mxu0 0.0
    %211 = vmatprep.subr.mxu0 0.0
    %212 = vmatpush2.msra.mxu0 0.0
    %213 = vmatprep.mubr.f32.mxu0 0.0
    %214 = vmatmul.mubr.f32.gmra.mxu0 %v144
    %v215 = vpop.f32.mrf.mxu0
    %v216 = vadd.f32 %v136, %v215
    %v217 = vpop.f32.mrf.mxu0
    %v218 = vadd.f32 %v140, %v217
    %219 = vmatprep.mubr.f32.mxu0 0.0
    %220 = vmatmul.mubr.f32.gmra.mxu0 %v147
    %v221 = vpop.f32.mrf.mxu0
    %v222 = vadd.f32 %v136, %v221
    %v223 = vpop.f32.mrf.mxu0
    %v224 = vadd.f32 %v140, %v223
    %225 = vdwg.mxu0
    %227 = vrot.lane.b32.xlu0 %v216, 64
    %v228 = vpop.permute.xlu0 %227
    %vm229 = vcmask 261120
    %v230 = vsel %vm229, %v216, 0
    %v232 = vsel %vm229, %v228, 0
    %234 = vmatprep.subr.mxu0 0.0
    %235 = vmatpush1.xpose.msra.mxu0 0.0
    %236 = vmatprep.subr.mxu0 0.0
    %237 = vmatpush1.xpose.msra.mxu0 0.0
    %238 = vmatprep.subr.mxu0 0.0
    %239 = vmatpush1.xpose.msra.mxu0 0.0
    %240 = vmatprep.subr.mxu0 0.0
    %241 = vmatpush1.xpose.msra.mxu0 0.0
    %242 = vmatprep.subr.mxu0 0.0
    %243 = vmatpush1.xpose.msra.mxu0 0.0
    %244 = vmatprep.subr.mxu0 0.0
    %245 = vmatpush1.xpose.msra.mxu0 0.0
    %246 = vmatprep.subr.mxu0 0.0
    %247 = vmatpush1.xpose.msra.mxu0 0.0
    %248 = vmatprep.subr.mxu0 0.0
    %249 = vmatpush1.xpose.msra.mxu0 0.0
    %250 = vmatprep.subr.mxu0 0.0
    %251 = vmatpush1.xpose.msra.mxu0 0.0
    %252 = vmatprep.subr.mxu0 0.0
    %253 = vmatpush1.xpose.msra.mxu0 0.0
    %254 = vmatprep.subr.mxu0 0.0
    %255 = vmatpush1.xpose.msra.mxu0 0.0
    %256 = vmatprep.subr.mxu0 0.0
    %257 = vmatpush1.xpose.msra.mxu0 0.0
    %258 = vmatprep.subr.mxu0 0.0
    %259 = vmatpush1.xpose.msra.mxu0 0.0
    %260 = vmatprep.subr.mxu0 0.0
    %261 = vmatpush1.xpose.msra.mxu0 0.0
    %262 = vmatprep.subr.mxu0 0.0
    %263 = vmatpush1.xpose.msra.mxu0 0.0
    %264 = vmatprep.subr.mxu0 0.0
    %265 = vmatpush1.xpose.msra.mxu0 %v232
    %266 = vmatprep.subr.mxu0 0.0
    %267 = vmatpush2.xpose.msra.mxu0 0.0
    %268 = vmatprep.subr.mxu0 0.0
    %269 = vmatpush2.xpose.msra.mxu0 0.0
    %270 = vmatprep.subr.mxu0 0.0
    %271 = vmatpush2.xpose.msra.mxu0 0.0
    %272 = vmatprep.subr.mxu0 0.0
    %273 = vmatpush2.xpose.msra.mxu0 0.0
    %274 = vmatprep.subr.mxu0 0.0
    %275 = vmatpush2.xpose.msra.mxu0 0.0
    %276 = vmatprep.subr.mxu0 0.0
    %277 = vmatpush2.xpose.msra.mxu0 0.0
    %278 = vmatprep.subr.mxu0 0.0
    %279 = vmatpush2.xpose.msra.mxu0 0.0
    %280 = vmatprep.subr.mxu0 0.0
    %281 = vmatpush2.xpose.msra.mxu0 0.0
    %282 = vmatprep.subr.mxu0 0.0
    %283 = vmatpush2.xpose.msra.mxu0 0.0
    %284 = vmatprep.subr.mxu0 0.0
    %285 = vmatpush2.xpose.msra.mxu0 0.0
    %286 = vmatprep.subr.mxu0 0.0
    %287 = vmatpush2.xpose.msra.mxu0 0.0
    %288 = vmatprep.subr.mxu0 0.0
    %289 = vmatpush2.xpose.msra.mxu0 0.0
    %290 = vmatprep.subr.mxu0 0.0
    %291 = vmatpush2.xpose.msra.mxu0 0.0
    %292 = vmatprep.subr.mxu0 0.0
    %293 = vmatpush2.xpose.msra.mxu0 0.0
    %294 = vmatprep.subr.mxu0 0.0
    %295 = vmatpush2.xpose.msra.mxu0 0.0
    %296 = vmatprep.subr.mxu0 0.0
    %297 = vmatpush2.xpose.msra.mxu0 0.0
    %298 = vmatprep.mubr.f32.mxu0 0.0
    %299 = vmatmul.mubr.f32.gmra.mxu0 %v230
    %v300 = vpop.f32.mrf.mxu0
    %v301 = vadd.f32 0.0, %v300
    %v302 = vpop.f32.mrf.mxu0
    %303 = vdwg.mxu0
    %v304 = vmul.f32 %v301, 0.17677669
    %v305 = vlaneseq
    %v306 = vshrl.u32 %v305, 7
    %v307 = vsub.s32 0, %v306
    %v308 = vrot.slane %v66, %v307
    %v309 = vadd.f32 %v304, %v308
    %vm310 = vcmask 64512
    %v311 = vsel %vm310, %v309, -inf
    %312 = vmax.xlane.f32.xlu0 %v311
    %v313 = vpop.xlane.xlu0 %312
    %v314 = vsub.f32 %v309, %v313
    %v315 = vmul.f32 %v314, 1.442695
    %v316 = vpow.pop %v315
    %v317 = vsel %vm310, %v316, 0.0
    %318 = vadd.xlane.f32.xlu0 %v317
    %v319 = vpop.xlane.xlu0 %318
    %v320 = vrcp.pop %v319
    %v321 = vmul.f32 %v316, %v320
    %v323 = vsel %vm310, %v321, 0
    %325 = vmatprep.subr.mxu0 0.0
    %326 = vmatpush1.msra.mxu0 0.0
    %327 = vmatprep.subr.mxu0 0.0
    %328 = vmatpush1.msra.mxu0 0.0
    %329 = vmatprep.subr.mxu0 0.0
    %330 = vmatpush1.msra.mxu0 0.0
    %331 = vmatprep.subr.mxu0 0.0
    %332 = vmatpush1.msra.mxu0 0.0
    %333 = vmatprep.subr.mxu0 0.0
    %334 = vmatpush1.msra.mxu0 0.0
    %335 = vmatprep.subr.mxu0 0.0
    %336 = vmatpush1.msra.mxu0 0.0
    %337 = vmatprep.subr.mxu0 0.0
    %338 = vmatpush1.msra.mxu0 0.0
    %339 = vmatprep.subr.mxu0 0.0
    %340 = vmatpush1.msra.mxu0 0.0
    %341 = vmatprep.subr.mxu0 0.0
    %342 = vmatpush1.msra.mxu0 0.0
    %343 = vmatprep.subr.mxu0 0.0
    %344 = vmatpush1.msra.mxu0 0.0
    %345 = vmatprep.subr.mxu0 0.0
    %346 = vmatpush1.msra.mxu0 0.0
    %347 = vmatprep.subr.mxu0 0.0
    %348 = vmatpush1.msra.mxu0 0.0
    %349 = vmatprep.subr.mxu0 0.0
    %350 = vmatpush1.msra.mxu0 0.0
    %351 = vmatprep.subr.mxu0 0.0
    %352 = vmatpush1.msra.mxu0 0.0
    %353 = vmatprep.subr.mxu0 0.0
    %354 = vmatpush1.msra.mxu0 0.0
    %355 = vmatprep.subr.mxu0 0.0
    %356 = vmatpush1.msra.mxu0 %v218
    %357 = vmatprep.subr.mxu0 0.0
    %358 = vmatpush2.msra.mxu0 0.0
    %359 = vmatprep.subr.mxu0 0.0
    %360 = vmatpush2.msra.mxu0 0.0
    %361 = vmatprep.subr.mxu0 0.0
    %362 = vmatpush2.msra.mxu0 0.0
    %363 = vmatprep.subr.mxu0 0.0
    %364 = vmatpush2.msra.mxu0 0.0
    %365 = vmatprep.subr.mxu0 0.0
    %366 = vmatpush2.msra.mxu0 0.0
    %367 = vmatprep.subr.mxu0 0.0
    %368 = vmatpush2.msra.mxu0 0.0
    %369 = vmatprep.subr.mxu0 0.0
    %370 = vmatpush2.msra.mxu0 0.0
    %371 = vmatprep.subr.mxu0 0.0
    %372 = vmatpush2.msra.mxu0 0.0
    %373 = vmatprep.subr.mxu0 0.0
    %374 = vmatpush2.msra.mxu0 0.0
    %375 = vmatprep.subr.mxu0 0.0
    %376 = vmatpush2.msra.mxu0 0.0
    %377 = vmatprep.subr.mxu0 0.0
    %378 = vmatpush2.msra.mxu0 0.0
    %379 = vmatprep.subr.mxu0 0.0
    %380 = vmatpush2.msra.mxu0 0.0
    %381 = vmatprep.subr.mxu0 0.0
    %382 = vmatpush2.msra.mxu0 0.0
    %383 = vmatprep.subr.mxu0 0.0
    %384 = vmatpush2.msra.mxu0 0.0
    %385 = vmatprep.subr.mxu0 0.0
    %386 = vmatpush2.msra.mxu0 0.0
    %387 = vmatprep.subr.mxu0 0.0
    %388 = vmatpush2.msra.mxu0 0.0
    %389 = vmatprep.mubr.f32.mxu0 0.0
    %390 = vmatmul.mubr.f32.gmra.mxu0 %v323
    %v391 = vpop.f32.mrf.mxu0
    %v392 = vadd.f32 0.0, %v391
    %v393 = vpop.f32.mrf.mxu0
    %394 = vdwg.mxu0
    %395 = vrot.lane.b32.xlu0 %v216, 96
    %v396 = vpop.permute.xlu0 %395
    %397 = vrot.lane.b32.xlu0 %v216, 32
    %v398 = vpop.permute.xlu0 %397
    %v399 = vsel %vm229, %v396, 0
    %v401 = vsel %vm229, %v398, 0
    %403 = vmatprep.subr.mxu0 0.0
    %404 = vmatpush1.xpose.msra.mxu0 0.0
    %405 = vmatprep.subr.mxu0 0.0
    %406 = vmatpush1.xpose.msra.mxu0 0.0
    %407 = vmatprep.subr.mxu0 0.0
    %408 = vmatpush1.xpose.msra.mxu0 0.0
    %409 = vmatprep.subr.mxu0 0.0
    %410 = vmatpush1.xpose.msra.mxu0 0.0
    %411 = vmatprep.subr.mxu0 0.0
    %412 = vmatpush1.xpose.msra.mxu0 0.0
    %413 = vmatprep.subr.mxu0 0.0
    %414 = vmatpush1.xpose.msra.mxu0 0.0
    %415 = vmatprep.subr.mxu0 0.0
    %416 = vmatpush1.xpose.msra.mxu0 0.0
    %417 = vmatprep.subr.mxu0 0.0
    %418 = vmatpush1.xpose.msra.mxu0 0.0
    %419 = vmatprep.subr.mxu0 0.0
    %420 = vmatpush1.xpose.msra.mxu0 0.0
    %421 = vmatprep.subr.mxu0 0.0
    %422 = vmatpush1.xpose.msra.mxu0 0.0
    %423 = vmatprep.subr.mxu0 0.0
    %424 = vmatpush1.xpose.msra.mxu0 0.0
    %425 = vmatprep.subr.mxu0 0.0
    %426 = vmatpush1.xpose.msra.mxu0 0.0
    %427 = vmatprep.subr.mxu0 0.0
    %428 = vmatpush1.xpose.msra.mxu0 0.0
    %429 = vmatprep.subr.mxu0 0.0
    %430 = vmatpush1.xpose.msra.mxu0 0.0
    %431 = vmatprep.subr.mxu0 0.0
    %432 = vmatpush1.xpose.msra.mxu0 0.0
    %433 = vmatprep.subr.mxu0 0.0
    %434 = vmatpush1.xpose.msra.mxu0 %v401
    %435 = vmatprep.subr.mxu0 0.0
    %436 = vmatpush2.xpose.msra.mxu0 0.0
    %437 = vmatprep.subr.mxu0 0.0
    %438 = vmatpush2.xpose.msra.mxu0 0.0
    %439 = vmatprep.subr.mxu0 0.0
    %440 = vmatpush2.xpose.msra.mxu0 0.0
    %441 = vmatprep.subr.mxu0 0.0
    %442 = vmatpush2.xpose.msra.mxu0 0.0
    %443 = vmatprep.subr.mxu0 0.0
    %444 = vmatpush2.xpose.msra.mxu0 0.0
    %445 = vmatprep.subr.mxu0 0.0
    %446 = vmatpush2.xpose.msra.mxu0 0.0
    %447 = vmatprep.subr.mxu0 0.0
    %448 = vmatpush2.xpose.msra.mxu0 0.0
    %449 = vmatprep.subr.mxu0 0.0
    %450 = vmatpush2.xpose.msra.mxu0 0.0
    %451 = vmatprep.subr.mxu0 0.0
    %452 = vmatpush2.xpose.msra.mxu0 0.0
    %453 = vmatprep.subr.mxu0 0.0
    %454 = vmatpush2.xpose.msra.mxu0 0.0
    %455 = vmatprep.subr.mxu0 0.0
    %456 = vmatpush2.xpose.msra.mxu0 0.0
    %457 = vmatprep.subr.mxu0 0.0
    %458 = vmatpush2.xpose.msra.mxu0 0.0
    %459 = vmatprep.subr.mxu0 0.0
    %460 = vmatpush2.xpose.msra.mxu0 0.0
    %461 = vmatprep.subr.mxu0 0.0
    %462 = vmatpush2.xpose.msra.mxu0 0.0
    %463 = vmatprep.subr.mxu0 0.0
    %464 = vmatpush2.xpose.msra.mxu0 0.0
    %465 = vmatprep.subr.mxu0 0.0
    %466 = vmatpush2.xpose.msra.mxu0 0.0
    %467 = vmatprep.mubr.f32.mxu0 0.0
    %468 = vmatmul.mubr.f32.gmra.mxu0 %v399
    %v469 = vpop.f32.mrf.mxu0
    %v470 = vadd.f32 0.0, %v469
    %v471 = vpop.f32.mrf.mxu0
    %472 = vdwg.mxu0
    %v473 = vmul.f32 %v470, 0.17677669
    %v474 = vadd.f32 %v473, %v308
    %v475 = vsel %vm310, %v474, -inf
    %476 = vmax.xlane.f32.xlu0 %v475
    %v477 = vpop.xlane.xlu0 %476
    %v478 = vsub.f32 %v474, %v477
    %v479 = vmul.f32 %v478, 1.442695
    %v480 = vpow.pop %v479
    %v481 = vsel %vm310, %v480, 0.0
    %482 = vadd.xlane.f32.xlu0 %v481
    %v483 = vpop.xlane.xlu0 %482
    %v484 = vrcp.pop %v483
    %v485 = vmul.f32 %v480, %v484
    %487 = vrot.lane.b32.xlu0 %v218, 96
    %v488 = vpop.permute.xlu0 %487
    %v491 = vsel %vm310, %v485, 0
    %493 = vmatprep.subr.mxu0 0.0
    %494 = vmatpush1.msra.mxu0 0.0
    %495 = vmatprep.subr.mxu0 0.0
    %496 = vmatpush1.msra.mxu0 0.0
    %497 = vmatprep.subr.mxu0 0.0
    %498 = vmatpush1.msra.mxu0 0.0
    %499 = vmatprep.subr.mxu0 0.0
    %500 = vmatpush1.msra.mxu0 0.0
    %501 = vmatprep.subr.mxu0 0.0
    %502 = vmatpush1.msra.mxu0 0.0
    %503 = vmatprep.subr.mxu0 0.0
    %504 = vmatpush1.msra.mxu0 0.0
    %505 = vmatprep.subr.mxu0 0.0
    %506 = vmatpush1.msra.mxu0 0.0
    %507 = vmatprep.subr.mxu0 0.0
    %508 = vmatpush1.msra.mxu0 0.0
    %509 = vmatprep.subr.mxu0 0.0
    %510 = vmatpush1.msra.mxu0 0.0
    %511 = vmatprep.subr.mxu0 0.0
    %512 = vmatpush1.msra.mxu0 0.0
    %513 = vmatprep.subr.mxu0 0.0
    %514 = vmatpush1.msra.mxu0 0.0
    %515 = vmatprep.subr.mxu0 0.0
    %516 = vmatpush1.msra.mxu0 0.0
    %517 = vmatprep.subr.mxu0 0.0
    %518 = vmatpush1.msra.mxu0 0.0
    %519 = vmatprep.subr.mxu0 0.0
    %520 = vmatpush1.msra.mxu0 0.0
    %521 = vmatprep.subr.mxu0 0.0
    %522 = vmatpush1.msra.mxu0 0.0
    %523 = vmatprep.subr.mxu0 0.0
    %524 = vmatpush1.msra.mxu0 %v488
    %525 = vmatprep.subr.mxu0 0.0
    %526 = vmatpush2.msra.mxu0 0.0
    %527 = vmatprep.subr.mxu0 0.0
    %528 = vmatpush2.msra.mxu0 0.0
    %529 = vmatprep.subr.mxu0 0.0
    %530 = vmatpush2.msra.mxu0 0.0
    %531 = vmatprep.subr.mxu0 0.0
    %532 = vmatpush2.msra.mxu0 0.0
    %533 = vmatprep.subr.mxu0 0.0
    %534 = vmatpush2.msra.mxu0 0.0
    %535 = vmatprep.subr.mxu0 0.0
    %536 = vmatpush2.msra.mxu0 0.0
    %537 = vmatprep.subr.mxu0 0.0
    %538 = vmatpush2.msra.mxu0 0.0
    %539 = vmatprep.subr.mxu0 0.0
    %540 = vmatpush2.msra.mxu0 0.0
    %541 = vmatprep.subr.mxu0 0.0
    %542 = vmatpush2.msra.mxu0 0.0
    %543 = vmatprep.subr.mxu0 0.0
    %544 = vmatpush2.msra.mxu0 0.0
    %545 = vmatprep.subr.mxu0 0.0
    %546 = vmatpush2.msra.mxu0 0.0
    %547 = vmatprep.subr.mxu0 0.0
    %548 = vmatpush2.msra.mxu0 0.0
    %549 = vmatprep.subr.mxu0 0.0
    %550 = vmatpush2.msra.mxu0 0.0
    %551 = vmatprep.subr.mxu0 0.0
    %552 = vmatpush2.msra.mxu0 0.0
    %553 = vmatprep.subr.mxu0 0.0
    %554 = vmatpush2.msra.mxu0 0.0
    %555 = vmatprep.subr.mxu0 0.0
    %556 = vmatpush2.msra.mxu0 0.0
    %557 = vmatprep.mubr.f32.mxu0 0.0
    %558 = vmatmul.mubr.f32.gmra.mxu0 %v491
    %v559 = vpop.f32.mrf.mxu0
    %v560 = vadd.f32 0.0, %v559
    %v561 = vpop.f32.mrf.mxu0
    %562 = vdwg.mxu0
    %564 = vrot.lane.b32.xlu0 %v560, 32
    %v565 = vpop.permute.xlu0 %564
    %v567 = vsel %vm229, %v392, %v565
    %569 = vrot.lane.b32.xlu0 %v222, 64
    %v570 = vpop.permute.xlu0 %569
    %v571 = vsel %vm229, %v222, 0
    %v573 = vsel %vm229, %v570, 0
    %575 = vmatprep.subr.mxu0 0.0
    %576 = vmatpush1.xpose.msra.mxu0 0.0
    %577 = vmatprep.subr.mxu0 0.0
    %578 = vmatpush1.xpose.msra.mxu0 0.0
    %579 = vmatprep.subr.mxu0 0.0
    %580 = vmatpush1.xpose.msra.mxu0 0.0
    %581 = vmatprep.subr.mxu0 0.0
    %582 = vmatpush1.xpose.msra.mxu0 0.0
    %583 = vmatprep.subr.mxu0 0.0
    %584 = vmatpush1.xpose.msra.mxu0 0.0
    %585 = vmatprep.subr.mxu0 0.0
    %586 = vmatpush1.xpose.msra.mxu0 0.0
    %587 = vmatprep.subr.mxu0 0.0
    %588 = vmatpush1.xpose.msra.mxu0 0.0
    %589 = vmatprep.subr.mxu0 0.0
    %590 = vmatpush1.xpose.msra.mxu0 0.0
    %591 = vmatprep.subr.mxu0 0.0
    %592 = vmatpush1.xpose.msra.mxu0 0.0
    %593 = vmatprep.subr.mxu0 0.0
    %594 = vmatpush1.xpose.msra.mxu0 0.0
    %595 = vmatprep.subr.mxu0 0.0
    %596 = vmatpush1.xpose.msra.mxu0 0.0
    %597 = vmatprep.subr.mxu0 0.0
    %598 = vmatpush1.xpose.msra.mxu0 0.0
    %599 = vmatprep.subr.mxu0 0.0
    %600 = vmatpush1.xpose.msra.mxu0 0.0
    %601 = vmatprep.subr.mxu0 0.0
    %602 = vmatpush1.xpose.msra.mxu0 0.0
    %603 = vmatprep.subr.mxu0 0.0
    %604 = vmatpush1.xpose.msra.mxu0 0.0
    %605 = vmatprep.subr.mxu0 0.0
    %606 = vmatpush1.xpose.msra.mxu0 %v573
    %607 = vmatprep.subr.mxu0 0.0
    %608 = vmatpush2.xpose.msra.mxu0 0.0
    %609 = vmatprep.subr.mxu0 0.0
    %610 = vmatpush2.xpose.msra.mxu0 0.0
    %611 = vmatprep.subr.mxu0 0.0
    %612 = vmatpush2.xpose.msra.mxu0 0.0
    %613 = vmatprep.subr.mxu0 0.0
    %614 = vmatpush2.xpose.msra.mxu0 0.0
    %615 = vmatprep.subr.mxu0 0.0
    %616 = vmatpush2.xpose.msra.mxu0 0.0
    %617 = vmatprep.subr.mxu0 0.0
    %618 = vmatpush2.xpose.msra.mxu0 0.0
    %619 = vmatprep.subr.mxu0 0.0
    %620 = vmatpush2.xpose.msra.mxu0 0.0
    %621 = vmatprep.subr.mxu0 0.0
    %622 = vmatpush2.xpose.msra.mxu0 0.0
    %623 = vmatprep.subr.mxu0 0.0
    %624 = vmatpush2.xpose.msra.mxu0 0.0
    %625 = vmatprep.subr.mxu0 0.0
    %626 = vmatpush2.xpose.msra.mxu0 0.0
    %627 = vmatprep.subr.mxu0 0.0
    %628 = vmatpush2.xpose.msra.mxu0 0.0
    %629 = vmatprep.subr.mxu0 0.0
    %630 = vmatpush2.xpose.msra.mxu0 0.0
    %631 = vmatprep.subr.mxu0 0.0
    %632 = vmatpush2.xpose.msra.mxu0 0.0
    %633 = vmatprep.subr.mxu0 0.0
    %634 = vmatpush2.xpose.msra.mxu0 0.0
    %635 = vmatprep.subr.mxu0 0.0
    %636 = vmatpush2.xpose.msra.mxu0 0.0
    %637 = vmatprep.subr.mxu0 0.0
    %638 = vmatpush2.xpose.msra.mxu0 0.0
    %639 = vmatprep.mubr.f32.mxu0 0.0
    %640 = vmatmul.mubr.f32.gmra.mxu0 %v571
    %v641 = vpop.f32.mrf.mxu0
    %v642 = vadd.f32 0.0, %v641
    %v643 = vpop.f32.mrf.mxu0
    %644 = vdwg.mxu0
    %v645 = vmul.f32 %v642, 0.17677669
    %v646 = vlaneseq
    %v647 = vshrl.u32 %v646, 7
    %v648 = vsub.s32 1, %v647
    %v649 = vrot.slane %v66, %v648
    %v650 = vadd.f32 %v645, %v649
    %v651 = vsel %vm310, %v650, -inf
    %652 = vmax.xlane.f32.xlu0 %v651
    %v653 = vpop.xlane.xlu0 %652
    %v654 = vsub.f32 %v650, %v653
    %v655 = vmul.f32 %v654, 1.442695
    %v656 = vpow.pop %v655
    %v657 = vsel %vm310, %v656, 0.0
    %658 = vadd.xlane.f32.xlu0 %v657
    %v659 = vpop.xlane.xlu0 %658
    %v660 = vrcp.pop %v659
    %v661 = vmul.f32 %v656, %v660
    %v663 = vsel %vm310, %v661, 0
    %665 = vmatprep.subr.mxu0 0.0
    %666 = vmatpush1.msra.mxu0 0.0
    %667 = vmatprep.subr.mxu0 0.0
    %668 = vmatpush1.msra.mxu0 0.0
    %669 = vmatprep.subr.mxu0 0.0
    %670 = vmatpush1.msra.mxu0 0.0
    %671 = vmatprep.subr.mxu0 0.0
    %672 = vmatpush1.msra.mxu0 0.0
    %673 = vmatprep.subr.mxu0 0.0
    %674 = vmatpush1.msra.mxu0 0.0
    %675 = vmatprep.subr.mxu0 0.0
    %676 = vmatpush1.msra.mxu0 0.0
    %677 = vmatprep.subr.mxu0 0.0
    %678 = vmatpush1.msra.mxu0 0.0
    %679 = vmatprep.subr.mxu0 0.0
    %680 = vmatpush1.msra.mxu0 0.0
    %681 = vmatprep.subr.mxu0 0.0
    %682 = vmatpush1.msra.mxu0 0.0
    %683 = vmatprep.subr.mxu0 0.0
    %684 = vmatpush1.msra.mxu0 0.0
    %685 = vmatprep.subr.mxu0 0.0
    %686 = vmatpush1.msra.mxu0 0.0
    %687 = vmatprep.subr.mxu0 0.0
    %688 = vmatpush1.msra.mxu0 0.0
    %689 = vmatprep.subr.mxu0 0.0
    %690 = vmatpush1.msra.mxu0 0.0
    %691 = vmatprep.subr.mxu0 0.0
    %692 = vmatpush1.msra.mxu0 0.0
    %693 = vmatprep.subr.mxu0 0.0
    %694 = vmatpush1.msra.mxu0 0.0
    %695 = vmatprep.subr.mxu0 0.0
    %696 = vmatpush1.msra.mxu0 %v224
    %697 = vmatprep.subr.mxu0 0.0
    %698 = vmatpush2.msra.mxu0 0.0
    %699 = vmatprep.subr.mxu0 0.0
    %700 = vmatpush2.msra.mxu0 0.0
    %701 = vmatprep.subr.mxu0 0.0
    %702 = vmatpush2.msra.mxu0 0.0
    %703 = vmatprep.subr.mxu0 0.0
    %704 = vmatpush2.msra.mxu0 0.0
    %705 = vmatprep.subr.mxu0 0.0
    %706 = vmatpush2.msra.mxu0 0.0
    %707 = vmatprep.subr.mxu0 0.0
    %708 = vmatpush2.msra.mxu0 0.0
    %709 = vmatprep.subr.mxu0 0.0
    %710 = vmatpush2.msra.mxu0 0.0
    %711 = vmatprep.subr.mxu0 0.0
    %712 = vmatpush2.msra.mxu0 0.0
    %713 = vmatprep.subr.mxu0 0.0
    %714 = vmatpush2.msra.mxu0 0.0
    %715 = vmatprep.subr.mxu0 0.0
    %716 = vmatpush2.msra.mxu0 0.0
    %717 = vmatprep.subr.mxu0 0.0
    %718 = vmatpush2.msra.mxu0 0.0
    %719 = vmatprep.subr.mxu0 0.0
    %720 = vmatpush2.msra.mxu0 0.0
    %721 = vmatprep.subr.mxu0 0.0
    %722 = vmatpush2.msra.mxu0 0.0
    %723 = vmatprep.subr.mxu0 0.0
    %724 = vmatpush2.msra.mxu0 0.0
    %725 = vmatprep.subr.mxu0 0.0
    %726 = vmatpush2.msra.mxu0 0.0
    %727 = vmatprep.subr.mxu0 0.0
    %728 = vmatpush2.msra.mxu0 0.0
    %729 = vmatprep.mubr.f32.mxu0 0.0
    %730 = vmatmul.mubr.f32.gmra.mxu0 %v663
    %v731 = vpop.f32.mrf.mxu0
    %v732 = vadd.f32 0.0, %v731
    %v733 = vpop.f32.mrf.mxu0
    %734 = vdwg.mxu0
    %735 = vrot.lane.b32.xlu0 %v222, 96
    %v736 = vpop.permute.xlu0 %735
    %737 = vrot.lane.b32.xlu0 %v222, 32
    %v738 = vpop.permute.xlu0 %737
    %v739 = vsel %vm229, %v736, 0
    %v741 = vsel %vm229, %v738, 0
    %743 = vmatprep.subr.mxu0 0.0
    %744 = vmatpush1.xpose.msra.mxu0 0.0
    %745 = vmatprep.subr.mxu0 0.0
    %746 = vmatpush1.xpose.msra.mxu0 0.0
    %747 = vmatprep.subr.mxu0 0.0
    %748 = vmatpush1.xpose.msra.mxu0 0.0
    %749 = vmatprep.subr.mxu0 0.0
    %750 = vmatpush1.xpose.msra.mxu0 0.0
    %751 = vmatprep.subr.mxu0 0.0
    %752 = vmatpush1.xpose.msra.mxu0 0.0
    %753 = vmatprep.subr.mxu0 0.0
    %754 = vmatpush1.xpose.msra.mxu0 0.0
    %755 = vmatprep.subr.mxu0 0.0
    %756 = vmatpush1.xpose.msra.mxu0 0.0
    %757 = vmatprep.subr.mxu0 0.0
    %758 = vmatpush1.xpose.msra.mxu0 0.0
    %759 = vmatprep.subr.mxu0 0.0
    %760 = vmatpush1.xpose.msra.mxu0 0.0
    %761 = vmatprep.subr.mxu0 0.0
    %762 = vmatpush1.xpose.msra.mxu0 0.0
    %763 = vmatprep.subr.mxu0 0.0
    %764 = vmatpush1.xpose.msra.mxu0 0.0
    %765 = vmatprep.subr.mxu0 0.0
    %766 = vmatpush1.xpose.msra.mxu0 0.0
    %767 = vmatprep.subr.mxu0 0.0
    %768 = vmatpush1.xpose.msra.mxu0 0.0
    %769 = vmatprep.subr.mxu0 0.0
    %770 = vmatpush1.xpose.msra.mxu0 0.0
    %771 = vmatprep.subr.mxu0 0.0
    %772 = vmatpush1.xpose.msra.mxu0 0.0
    %773 = vmatprep.subr.mxu0 0.0
    %774 = vmatpush1.xpose.msra.mxu0 %v741
    %775 = vmatprep.subr.mxu0 0.0
    %776 = vmatpush2.xpose.msra.mxu0 0.0
    %777 = vmatprep.subr.mxu0 0.0
    %778 = vmatpush2.xpose.msra.mxu0 0.0
    %779 = vmatprep.subr.mxu0 0.0
    %780 = vmatpush2.xpose.msra.mxu0 0.0
    %781 = vmatprep.subr.mxu0 0.0
    %782 = vmatpush2.xpose.msra.mxu0 0.0
    %783 = vmatprep.subr.mxu0 0.0
    %784 = vmatpush2.xpose.msra.mxu0 0.0
    %785 = vmatprep.subr.mxu0 0.0
    %786 = vmatpush2.xpose.msra.mxu0 0.0
    %787 = vmatprep.subr.mxu0 0.0
    %788 = vmatpush2.xpose.msra.mxu0 0.0
    %789 = vmatprep.subr.mxu0 0.0
    %790 = vmatpush2.xpose.msra.mxu0 0.0
    %791 = vmatprep.subr.mxu0 0.0
    %792 = vmatpush2.xpose.msra.mxu0 0.0
    %793 = vmatprep.subr.mxu0 0.0
    %794 = vmatpush2.xpose.msra.mxu0 0.0
    %795 = vmatprep.subr.mxu0 0.0
    %796 = vmatpush2.xpose.msra.mxu0 0.0
    %797 = vmatprep.subr.mxu0 0.0
    %798 = vmatpush2.xpose.msra.mxu0 0.0
    %799 = vmatprep.subr.mxu0 0.0
    %800 = vmatpush2.xpose.msra.mxu0 0.0
    %801 = vmatprep.subr.mxu0 0.0
    %802 = vmatpush2.xpose.msra.mxu0 0.0
    %803 = vmatprep.subr.mxu0 0.0
    %804 = vmatpush2.xpose.msra.mxu0 0.0
    %805 = vmatprep.subr.mxu0 0.0
    %806 = vmatpush2.xpose.msra.mxu0 0.0
    %807 = vmatprep.mubr.f32.mxu0 0.0
    %808 = vmatmul.mubr.f32.gmra.mxu0 %v739
    %v809 = vpop.f32.mrf.mxu0
    %v810 = vadd.f32 0.0, %v809
    %v811 = vpop.f32.mrf.mxu0
    %812 = vdwg.mxu0
    %v813 = vmul.f32 %v810, 0.17677669
    %v814 = vadd.f32 %v813, %v649
    %v815 = vsel %vm310, %v814, -inf
    %816 = vmax.xlane.f32.xlu0 %v815
    %v817 = vpop.xlane.xlu0 %816
    %v818 = vsub.f32 %v814, %v817
    %v819 = vmul.f32 %v818, 1.442695
    %v820 = vpow.pop %v819
    %v821 = vsel %vm310, %v820, 0.0
    %822 = vadd.xlane.f32.xlu0 %v821
    %v823 = vpop.xlane.xlu0 %822
    %v824 = vrcp.pop %v823
    %v825 = vmul.f32 %v820, %v824
    %827 = vrot.lane.b32.xlu0 %v224, 96
    %v828 = vpop.permute.xlu0 %827
    %v831 = vsel %vm310, %v825, 0
    %833 = vmatprep.subr.mxu0 0.0
    %834 = vmatpush1.msra.mxu0 0.0
    %835 = vmatprep.subr.mxu0 0.0
    %836 = vmatpush1.msra.mxu0 0.0
    %837 = vmatprep.subr.mxu0 0.0
    %838 = vmatpush1.msra.mxu0 0.0
    %839 = vmatprep.subr.mxu0 0.0
    %840 = vmatpush1.msra.mxu0 0.0
    %841 = vmatprep.subr.mxu0 0.0
    %842 = vmatpush1.msra.mxu0 0.0
    %843 = vmatprep.subr.mxu0 0.0
    %844 = vmatpush1.msra.mxu0 0.0
    %845 = vmatprep.subr.mxu0 0.0
    %846 = vmatpush1.msra.mxu0 0.0
    %847 = vmatprep.subr.mxu0 0.0
    %848 = vmatpush1.msra.mxu0 0.0
    %849 = vmatprep.subr.mxu0 0.0
    %850 = vmatpush1.msra.mxu0 0.0
    %851 = vmatprep.subr.mxu0 0.0
    %852 = vmatpush1.msra.mxu0 0.0
    %853 = vmatprep.subr.mxu0 0.0
    %854 = vmatpush1.msra.mxu0 0.0
    %855 = vmatprep.subr.mxu0 0.0
    %856 = vmatpush1.msra.mxu0 0.0
    %857 = vmatprep.subr.mxu0 0.0
    %858 = vmatpush1.msra.mxu0 0.0
    %859 = vmatprep.subr.mxu0 0.0
    %860 = vmatpush1.msra.mxu0 0.0
    %861 = vmatprep.subr.mxu0 0.0
    %862 = vmatpush1.msra.mxu0 0.0
    %863 = vmatprep.subr.mxu0 0.0
    %864 = vmatpush1.msra.mxu0 %v828
    %865 = vmatprep.subr.mxu0 0.0
    %866 = vmatpush2.msra.mxu0 0.0
    %867 = vmatprep.subr.mxu0 0.0
    %868 = vmatpush2.msra.mxu0 0.0
    %869 = vmatprep.subr.mxu0 0.0
    %870 = vmatpush2.msra.mxu0 0.0
    %871 = vmatprep.subr.mxu0 0.0
    %872 = vmatpush2.msra.mxu0 0.0
    %873 = vmatprep.subr.mxu0 0.0
    %874 = vmatpush2.msra.mxu0 0.0
    %875 = vmatprep.subr.mxu0 0.0
    %876 = vmatpush2.msra.mxu0 0.0
    %877 = vmatprep.subr.mxu0 0.0
    %878 = vmatpush2.msra.mxu0 0.0
    %879 = vmatprep.subr.mxu0 0.0
    %880 = vmatpush2.msra.mxu0 0.0
    %881 = vmatprep.subr.mxu0 0.0
    %882 = vmatpush2.msra.mxu0 0.0
    %883 = vmatprep.subr.mxu0 0.0
    %884 = vmatpush2.msra.mxu0 0.0
    %885 = vmatprep.subr.mxu0 0.0
    %886 = vmatpush2.msra.mxu0 0.0
    %887 = vmatprep.subr.mxu0 0.0
    %888 = vmatpush2.msra.mxu0 0.0
    %889 = vmatprep.subr.mxu0 0.0
    %890 = vmatpush2.msra.mxu0 0.0
    %891 = vmatprep.subr.mxu0 0.0
    %892 = vmatpush2.msra.mxu0 0.0
    %893 = vmatprep.subr.mxu0 0.0
    %894 = vmatpush2.msra.mxu0 0.0
    %895 = vmatprep.subr.mxu0 0.0
    %896 = vmatpush2.msra.mxu0 0.0
    %897 = vmatprep.mubr.f32.mxu0 0.0
    %898 = vmatmul.mubr.f32.gmra.mxu0 %v831
    %v899 = vpop.f32.mrf.mxu0
    %v900 = vadd.f32 0.0, %v899
    %v901 = vpop.f32.mrf.mxu0
    %902 = vdwg.mxu0
    %904 = vrot.lane.b32.xlu0 %v900, 32
    %v905 = vpop.permute.xlu0 %904
    %v907 = vsel %vm229, %v732, %v905
    %v908 = vld [vmem:[%s6] sm:$0xff]
    %v909 = vld [vmem:[%s6 + $0x8] sm:$0xff]
    %v910 = vld [vmem:[%s6 + $0x10] sm:$0xff]
    %v911 = vld [vmem:[%s6 + $0x18] sm:$0xff]
    %v912 = vld [vmem:[%s6 + $0x20] sm:$0xff]
    %v913 = vld [vmem:[%s6 + $0x28] sm:$0xff]
    %v914 = vld [vmem:[%s6 + $0x30] sm:$0xff]
    %v915 = vld [vmem:[%s6 + $0x38] sm:$0xff]
    %v916 = vld [vmem:[%s7] sm:$0x1]
    %v918 = vlaneseq
    %v919 = vshrl.u32 %v918, 7
    %v920 = vsub.s32 0, %v919
    %v921 = vrot.slane %v916, %v920
    %v924 = vsel %vm71, %v567, 0
    %v927 = vsel %vm71, %v907, 0
    %929 = vmatprep.subr.mxu0 0.0
    %930 = vmatpush1.msra.mxu0 0.0
    %931 = vmatprep.subr.mxu0 0.0
    %932 = vmatpush1.msra.mxu0 0.0
    %933 = vmatprep.subr.mxu0 0.0
    %934 = vmatpush1.msra.mxu0 0.0
    %935 = vmatprep.subr.mxu0 0.0
    %936 = vmatpush1.msra.mxu0 0.0
    %937 = vmatprep.subr.mxu0 0.0
    %938 = vmatpush1.msra.mxu0 0.0
    %939 = vmatprep.subr.mxu0 0.0
    %940 = vmatpush1.msra.mxu0 0.0
    %941 = vmatprep.subr.mxu0 0.0
    %942 = vmatpush1.msra.mxu0 0.0
    %943 = vmatprep.subr.mxu0 0.0
    %944 = vmatpush1.msra.mxu0 0.0
    %945 = vmatprep.subr.mxu0 0.0
    %946 = vmatpush1.msra.mxu0 %v915
    %947 = vmatprep.subr.mxu0 0.0
    %948 = vmatpush1.msra.mxu0 %v914
    %949 = vmatprep.subr.mxu0 0.0
    %950 = vmatpush1.msra.mxu0 %v913
    %951 = vmatprep.subr.mxu0 0.0
    %952 = vmatpush1.msra.mxu0 %v912
    %953 = vmatprep.subr.mxu0 0.0
    %954 = vmatpush1.msra.mxu0 %v911
    %955 = vmatprep.subr.mxu0 0.0
    %956 = vmatpush1.msra.mxu0 %v910
    %957 = vmatprep.subr.mxu0 0.0
    %958 = vmatpush1.msra.mxu0 %v909
    %959 = vmatprep.subr.mxu0 0.0
    %960 = vmatpush1.msra.mxu0 %v908
    %961 = vmatprep.subr.mxu0 0.0
    %962 = vmatpush2.msra.mxu0 0.0
    %963 = vmatprep.subr.mxu0 0.0
    %964 = vmatpush2.msra.mxu0 0.0
    %965 = vmatprep.subr.mxu0 0.0
    %966 = vmatpush2.msra.mxu0 0.0
    %967 = vmatprep.subr.mxu0 0.0
    %968 = vmatpush2.msra.mxu0 0.0
    %969 = vmatprep.subr.mxu0 0.0
    %970 = vmatpush2.msra.mxu0 0.0
    %971 = vmatprep.subr.mxu0 0.0
    %972 = vmatpush2.msra.mxu0 0.0
    %973 = vmatprep.subr.mxu0 0.0
    %974 = vmatpush2.msra.mxu0 0.0
    %975 = vmatprep.subr.mxu0 0.0
    %976 = vmatpush2.msra.mxu0 0.0
    %977 = vmatprep.subr.mxu0 0.0
    %978 = vmatpush2.msra.mxu0 0.0
    %979 = vmatprep.subr.mxu0 0.0
    %980 = vmatpush2.msra.mxu0 0.0
    %981 = vmatprep.subr.mxu0 0.0
    %982 = vmatpush2.msra.mxu0 0.0
    %983 = vmatprep.subr.mxu0 0.0
    %984 = vmatpush2.msra.mxu0 0.0
    %985 = vmatprep.subr.mxu0 0.0
    %986 = vmatpush2.msra.mxu0 0.0
    %987 = vmatprep.subr.mxu0 0.0
    %988 = vmatpush2.msra.mxu0 0.0
    %989 = vmatprep.subr.mxu0 0.0
    %990 = vmatpush2.msra.mxu0 0.0
    %991 = vmatprep.subr.mxu0 0.0
    %992 = vmatpush2.msra.mxu0 0.0
    %993 = vmatprep.mubr.f32.mxu0 0.0
    %994 = vmatmul.mubr.f32.gmra.mxu0 %v924
    %v995 = vpop.f32.mrf.mxu0
    %v996 = vadd.f32 %v921, %v995
    %v997 = vpop.f32.mrf.mxu0
    %998 = vmatprep.mubr.f32.mxu0 0.0
    %999 = vmatmul.mubr.f32.gmra.mxu0 %v927
    %v1000 = vpop.f32.mrf.mxu0
    %v1001 = vadd.f32 %v921, %v1000
    %v1002 = vpop.f32.mrf.mxu0
    %1003 = vdwg.mxu0
    %v1004 = vadd.f32 %v996, %v113
    %v1005 = vadd.f32 %v1001, %v114
    %v1006 = vld [vmem:[%s8] sm:$0x1]
    %v1007 = vld [vmem:[%s9] sm:$0x1]
    %v1008 = vsel %vm71, %v1004, 0.0
    %1009 = vadd.xlane.f32.xlu0 %v1008
    %v1010 = vpop.xlane.xlu0 %1009
    %v1011 = vsel %vm71, %v1005, 0.0
    %1012 = vadd.xlane.f32.xlu0 %v1011
    %v1013 = vpop.xlane.xlu0 %1012
    %v1014 = vmul.f32 %v1010, %v78
    %v1015 = vmul.f32 %v1013, %v78
    %v1016 = vsub.f32 %v1004, %v1014
    %v1017 = vsub.f32 %v1005, %v1015
    %v1018 = vmul.f32 %v1016, %v1016
    %v1019 = vmul.f32 %v1017, %v1017
    %v1020 = vsel %vm71, %v1018, 0.0
    %1021 = vadd.xlane.f32.xlu0 %v1020
    %v1022 = vpop.xlane.xlu0 %1021
    %v1023 = vsel %vm71, %v1019, 0.0
    %1024 = vadd.xlane.f32.xlu0 %v1023
    %v1025 = vpop.xlane.xlu0 %1024
    %v1026 = vmul.f32 %v1022, %v78
    %v1027 = vmul.f32 %v1025, %v78
    %v1028 = vadd.f32 %v1026, 1e-12
    %v1029 = vadd.f32 %v1027, 1e-12
    %v1030 = vrsqrt.pop %v1028
    %v1031 = vrsqrt.pop %v1029
    %v1032 = vmul.f32 %v1016, %v1030
    %v1033 = vmul.f32 %v1017, %v1031
    %v1035 = vlaneseq
    %v1036 = vshrl.u32 %v1035, 7
    %v1037 = vsub.s32 0, %v1036
    %v1038 = vrot.slane %v1006, %v1037
    %v1040 = vmul.f32 %v1032, %v1038
    %v1041 = vmul.f32 %v1033, %v1038
    %v1043 = vlaneseq
    %v1044 = vshrl.u32 %v1043, 7
    %v1045 = vsub.s32 0, %v1044
    %v1046 = vrot.slane %v1007, %v1045
    %v1048 = vadd.f32 %v1040, %v1046
    %v1049 = vadd.f32 %v1041, %v1046
    %v1050 = vld [vmem:[%s10] sm:$0xff]
    %v1051 = vld [vmem:[%s10 + $0x8] sm:$0xff]
    %v1052 = vld [vmem:[%s10 + $0x10] sm:$0xff]
    %v1053 = vld [vmem:[%s10 + $0x18] sm:$0xff]
    %v1054 = vld [vmem:[%s10 + $0x20] sm:$0xff]
    %v1055 = vld [vmem:[%s10 + $0x28] sm:$0xff]
    %v1056 = vld [vmem:[%s10 + $0x30] sm:$0xff]
    %v1057 = vld [vmem:[%s10 + $0x38] sm:$0xff]
    %v1058 = vld [vmem:[%s11] sm:$0x1]
    %v1060 = vlaneseq
    %v1061 = vshrl.u32 %v1060, 7
    %v1062 = vsub.s32 0, %v1061
    %v1063 = vrot.slane %v1058, %v1062
    %v1066 = vsel %vm71, %v1048, 0
    %v1069 = vsel %vm71, %v1049, 0
    %1071 = vmatprep.subr.mxu0 0.0
    %1072 = vmatpush1.msra.mxu0 0.0
    %1073 = vmatprep.subr.mxu0 0.0
    %1074 = vmatpush1.msra.mxu0 0.0
    %1075 = vmatprep.subr.mxu0 0.0
    %1076 = vmatpush1.msra.mxu0 0.0
    %1077 = vmatprep.subr.mxu0 0.0
    %1078 = vmatpush1.msra.mxu0 0.0
    %1079 = vmatprep.subr.mxu0 0.0
    %1080 = vmatpush1.msra.mxu0 0.0
    %1081 = vmatprep.subr.mxu0 0.0
    %1082 = vmatpush1.msra.mxu0 0.0
    %1083 = vmatprep.subr.mxu0 0.0
    %1084 = vmatpush1.msra.mxu0 0.0
    %1085 = vmatprep.subr.mxu0 0.0
    %1086 = vmatpush1.msra.mxu0 0.0
    %1087 = vmatprep.subr.mxu0 0.0
    %1088 = vmatpush1.msra.mxu0 %v1057
    %1089 = vmatprep.subr.mxu0 0.0
    %1090 = vmatpush1.msra.mxu0 %v1056
    %1091 = vmatprep.subr.mxu0 0.0
    %1092 = vmatpush1.msra.mxu0 %v1055
    %1093 = vmatprep.subr.mxu0 0.0
    %1094 = vmatpush1.msra.mxu0 %v1054
    %1095 = vmatprep.subr.mxu0 0.0
    %1096 = vmatpush1.msra.mxu0 %v1053
    %1097 = vmatprep.subr.mxu0 0.0
    %1098 = vmatpush1.msra.mxu0 %v1052
    %1099 = vmatprep.subr.mxu0 0.0
    %1100 = vmatpush1.msra.mxu0 %v1051
    %1101 = vmatprep.subr.mxu0 0.0
    %1102 = vmatpush1.msra.mxu0 %v1050
    %1103 = vmatprep.subr.mxu0 0.0
    %1104 = vmatpush2.msra.mxu0 0.0
    %1105 = vmatprep.subr.mxu0 0.0
    %1106 = vmatpush2.msra.mxu0 0.0
    %1107 = vmatprep.subr.mxu0 0.0
    %1108 = vmatpush2.msra.mxu0 0.0
    %1109 = vmatprep.subr.mxu0 0.0
    %1110 = vmatpush2.msra.mxu0 0.0
    %1111 = vmatprep.subr.mxu0 0.0
    %1112 = vmatpush2.msra.mxu0 0.0
    %1113 = vmatprep.subr.mxu0 0.0
    %1114 = vmatpush2.msra.mxu0 0.0
    %1115 = vmatprep.subr.mxu0 0.0
    %1116 = vmatpush2.msra.mxu0 0.0
    %1117 = vmatprep.subr.mxu0 0.0
    %1118 = vmatpush2.msra.mxu0 0.0
    %1119 = vmatprep.subr.mxu0 0.0
    %1120 = vmatpush2.msra.mxu0 0.0
    %1121 = vmatprep.subr.mxu0 0.0
    %1122 = vmatpush2.msra.mxu0 0.0
    %1123 = vmatprep.subr.mxu0 0.0
    %1124 = vmatpush2.msra.mxu0 0.0
    %1125 = vmatprep.subr.mxu0 0.0
    %1126 = vmatpush2.msra.mxu0 0.0
    %1127 = vmatprep.subr.mxu0 0.0
    %1128 = vmatpush2.msra.mxu0 0.0
    %1129 = vmatprep.subr.mxu0 0.0
    %1130 = vmatpush2.msra.mxu0 0.0
    %1131 = vmatprep.subr.mxu0 0.0
    %1132 = vmatpush2.msra.mxu0 0.0
    %1133 = vmatprep.subr.mxu0 0.0
    %1134 = vmatpush2.msra.mxu0 0.0
    %1135 = vmatprep.mubr.f32.mxu0 0.0
    %1136 = vmatmul.mubr.f32.gmra.mxu0 %v1066
    %v1137 = vpop.f32.mrf.mxu0
    %v1138 = vadd.f32 %v1063, %v1137
    %v1139 = vpop.f32.mrf.mxu0
    %1140 = vmatprep.mubr.f32.mxu0 0.0
    %1141 = vmatmul.mubr.f32.gmra.mxu0 %v1069
    %v1142 = vpop.f32.mrf.mxu0
    %v1143 = vadd.f32 %v1063, %v1142
    %v1144 = vpop.f32.mrf.mxu0
    %1145 = vdwg.mxu0
    %v1146 = vmul.f32 %v1138, 0.5
    %v1147 = vmul.f32 %v1143, 0.5
    %v1148 = vmul.f32 %v1138, 0.70710677
    %v1149 = vmul.f32 %v1143, 0.70710677
    %v1150 = verf.f32.pop %v1148
    %v1151 = verf.f32.pop %v1149
    %v1152 = vadd.f32 %v1150, 1.0
    %v1153 = vadd.f32 %v1151, 1.0
    %v1154 = vmul.f32 %v1146, %v1152
    %v1155 = vmul.f32 %v1147, %v1153
    %v1156 = vld [vmem:[%s12] sm:$0xff]
    %v1157 = vld [vmem:[%s12 + $0x8] sm:$0xff]
    %v1158 = vld [vmem:[%s12 + $0x10] sm:$0xff]
    %v1159 = vld [vmem:[%s12 + $0x18] sm:$0xff]
    %v1160 = vld [vmem:[%s12 + $0x20] sm:$0xff]
    %v1161 = vld [vmem:[%s12 + $0x28] sm:$0xff]
    %v1162 = vld [vmem:[%s12 + $0x30] sm:$0xff]
    %v1163 = vld [vmem:[%s12 + $0x38] sm:$0xff]
    %v1164 = vld [vmem:[%s12 + $0x40] sm:$0xff]
    %v1165 = vld [vmem:[%s12 + $0x48] sm:$0xff]
    %v1166 = vld [vmem:[%s12 + $0x50] sm:$0xff]
    %v1167 = vld [vmem:[%s12 + $0x58] sm:$0xff]
    %v1168 = vld [vmem:[%s12 + $0x60] sm:$0xff]
    %v1169 = vld [vmem:[%s12 + $0x68] sm:$0xff]
    %v1170 = vld [vmem:[%s12 + $0x70] sm:$0xff]
    %v1171 = vld [vmem:[%s12 + $0x78] sm:$0xff]
    %v1172 = vld [vmem:[%s13] sm:$0x1]
    %v1174 = vlaneseq
    %v1175 = vshrl.u32 %v1174, 7
    %v1176 = vsub.s32 0, %v1175
    %v1177 = vrot.slane %v1172, %v1176
    %1179 = vmatprep.subr.mxu0 0.0
    %1180 = vmatpush1.msra.mxu0 %v1171
    %1181 = vmatprep.subr.mxu0 0.0
    %1182 = vmatpush1.msra.mxu0 %v1170
    %1183 = vmatprep.subr.mxu0 0.0
    %1184 = vmatpush1.msra.mxu0 %v1169
    %1185 = vmatprep.subr.mxu0 0.0
    %1186 = vmatpush1.msra.mxu0 %v1168
    %1187 = vmatprep.subr.mxu0 0.0
    %1188 = vmatpush1.msra.mxu0 %v1167
    %1189 = vmatprep.subr.mxu0 0.0
    %1190 = vmatpush1.msra.mxu0 %v1166
    %1191 = vmatprep.subr.mxu0 0.0
    %1192 = vmatpush1.msra.mxu0 %v1165
    %1193 = vmatprep.subr.mxu0 0.0
    %1194 = vmatpush1.msra.mxu0 %v1164
    %1195 = vmatprep.subr.mxu0 0.0
    %1196 = vmatpush1.msra.mxu0 %v1163
    %1197 = vmatprep.subr.mxu0 0.0
    %1198 = vmatpush1.msra.mxu0 %v1162
    %1199 = vmatprep.subr.mxu0 0.0
    %1200 = vmatpush1.msra.mxu0 %v1161
    %1201 = vmatprep.subr.mxu0 0.0
    %1202 = vmatpush1.msra.mxu0 %v1160
    %1203 = vmatprep.subr.mxu0 0.0
    %1204 = vmatpush1.msra.mxu0 %v1159
    %1205 = vmatprep.subr.mxu0 0.0
    %1206 = vmatpush1.msra.mxu0 %v1158
    %1207 = vmatprep.subr.mxu0 0.0
    %1208 = vmatpush1.msra.mxu0 %v1157
    %1209 = vmatprep.subr.mxu0 0.0
    %1210 = vmatpush1.msra.mxu0 %v1156
    %1211 = vmatprep.subr.mxu0 0.0
    %1212 = vmatpush2.msra.mxu0 0.0
    %1213 = vmatprep.subr.mxu0 0.0
    %1214 = vmatpush2.msra.mxu0 0.0
    %1215 = vmatprep.subr.mxu0 0.0
    %1216 = vmatpush2.msra.mxu0 0.0
    %1217 = vmatprep.subr.mxu0 0.0
    %1218 = vmatpush2.msra.mxu0 0.0
    %1219 = vmatprep.subr.mxu0 0.0
    %1220 = vmatpush2.msra.mxu0 0.0
    %1221 = vmatprep.subr.mxu0 0.0
    %1222 = vmatpush2.msra.mxu0 0.0
    %1223 = vmatprep.subr.mxu0 0.0
    %1224 = vmatpush2.msra.mxu0 0.0
    %1225 = vmatprep.subr.mxu0 0.0
    %1226 = vmatpush2.msra.mxu0 0.0
    %1227 = vmatprep.subr.mxu0 0.0
    %1228 = vmatpush2.msra.mxu0 0.0
    %1229 = vmatprep.subr.mxu0 0.0
    %1230 = vmatpush2.msra.mxu0 0.0
    %1231 = vmatprep.subr.mxu0 0.0
    %1232 = vmatpush2.msra.mxu0 0.0
    %1233 = vmatprep.subr.mxu0 0.0
    %1234 = vmatpush2.msra.mxu0 0.0
    %1235 = vmatprep.subr.mxu0 0.0
    %1236 = vmatpush2.msra.mxu0 0.0
    %1237 = vmatprep.subr.mxu0 0.0
    %1238 = vmatpush2.msra.mxu0 0.0
    %1239 = vmatprep.subr.mxu0 0.0
    %1240 = vmatpush2.msra.mxu0 0.0
    %1241 = vmatprep.subr.mxu0 0.0
    %1242 = vmatpush2.msra.mxu0 0.0
    %1243 = vmatprep.mubr.f32.mxu0 0.0
    %1244 = vmatmul.mubr.f32.gmra.mxu0 %v1154
    %v1245 = vpop.f32.mrf.mxu0
    %v1246 = vadd.f32 %v1177, %v1245
    %v1247 = vpop.f32.mrf.mxu0
    %1248 = vmatprep.mubr.f32.mxu0 0.0
    %1249 = vmatmul.mubr.f32.gmra.mxu0 %v1155
    %v1250 = vpop.f32.mrf.mxu0
    %v1251 = vadd.f32 %v1177, %v1250
    %v1252 = vpop.f32.mrf.mxu0
    %1253 = vdwg.mxu0
    %v1254 = vadd.f32 %v1246, %v1048
    %v1255 = vadd.f32 %v1251, %v1049
    %v1256 = vld [vmem:[%s14] sm:$0x1]
    %v1257 = vld [vmem:[%s15] sm:$0x1]
    %v1258 = vsel %vm71, %v1254, 0.0
    %1259 = vadd.xlane.f32.xlu0 %v1258
    %v1260 = vpop.xlane.xlu0 %1259
    %v1261 = vsel %vm71, %v1255, 0.0
    %1262 = vadd.xlane.f32.xlu0 %v1261
    %v1263 = vpop.xlane.xlu0 %1262
    %v1264 = vmul.f32 %v1260, %v78
    %v1265 = vmul.f32 %v1263, %v78
    %v1266 = vsub.f32 %v1254, %v1264
    %v1267 = vsub.f32 %v1255, %v1265
    %v1268 = vmul.f32 %v1266, %v1266
    %v1269 = vmul.f32 %v1267, %v1267
    %v1270 = vsel %vm71, %v1268, 0.0
    %1271 = vadd.xlane.f32.xlu0 %v1270
    %v1272 = vpop.xlane.xlu0 %1271
    %v1273 = vsel %vm71, %v1269, 0.0
    %1274 = vadd.xlane.f32.xlu0 %v1273
    %v1275 = vpop.xlane.xlu0 %1274
    %v1276 = vmul.f32 %v1272, %v78
    %v1277 = vmul.f32 %v1275, %v78
    %v1278 = vadd.f32 %v1276, 1e-12
    %v1279 = vadd.f32 %v1277, 1e-12
    %v1280 = vrsqrt.pop %v1278
    %v1281 = vrsqrt.pop %v1279
    %v1282 = vmul.f32 %v1266, %v1280
    %v1283 = vmul.f32 %v1267, %v1281
    %v1285 = vlaneseq
    %v1286 = vshrl.u32 %v1285, 7
    %v1287 = vsub.s32 0, %v1286
    %v1288 = vrot.slane %v1256, %v1287
    %v1290 = vmul.f32 %v1282, %v1288
    %v1291 = vmul.f32 %v1283, %v1288
    %v1293 = vlaneseq
    %v1294 = vshrl.u32 %v1293, 7
    %v1295 = vsub.s32 0, %v1294
    %v1296 = vrot.slane %v1257, %v1295
    %v1298 = vadd.f32 %v1290, %v1296
    %v1299 = vadd.f32 %v1291, %v1296
    %s1300 = scalar_lea.vmem %s4, 128
    %v1301 = vld [vmem:[%s1300] sm:$0xff]
    %v1302 = vld [vmem:[%s1300 + $0x8] sm:$0xff]
    %v1303 = vld [vmem:[%s1300 + $0x10] sm:$0xff]
    %v1304 = vld [vmem:[%s1300 + $0x18] sm:$0xff]
    %v1305 = vld [vmem:[%s1300 + $0x20] sm:$0xff]
    %v1306 = vld [vmem:[%s1300 + $0x28] sm:$0xff]
    %v1307 = vld [vmem:[%s1300 + $0x30] sm:$0xff]
    %v1308 = vld [vmem:[%s1300 + $0x38] sm:$0xff]
    %v1309 = vld [vmem:[%s1300 + $0x40] sm:$0xff]
    %v1310 = vld [vmem:[%s1300 + $0x48] sm:$0xff]
    %v1311 = vld [vmem:[%s1300 + $0x50] sm:$0xff]
    %v1312 = vld [vmem:[%s1300 + $0x58] sm:$0xff]
    %v1313 = vld [vmem:[%s1300 + $0x60] sm:$0xff]
    %v1314 = vld [vmem:[%s1300 + $0x68] sm:$0xff]
    %v1315 = vld [vmem:[%s1300 + $0x70] sm:$0xff]
    %v1316 = vld [vmem:[%s1300 + $0x78] sm:$0xff]
    %s1317 = scalar_lea.vmem %s5, 2
    %v1318 = vld [vmem:[%s1317] sm:$0x3]
    %v1320 = vlaneseq
    %v1321 = vshrl.u32 %v1320, 7
    %v1322 = vsub.s32 0, %v1321
    %v1323 = vrot.slane %v1318, %v1322
    %v1324 = vlaneseq
    %v1325 = vshrl.u32 %v1324, 7
    %v1326 = vsub.s32 1, %v1325
    %v1327 = vrot.slane %v1318, %v1326
    %v1331 = vsel %vm71, %v1298, 0
    %v1334 = vsel %vm71, %v1299, 0
    %1336 = vmatprep.subr.mxu0 0.0
    %1337 = vmatpush1.msra.mxu0 0.0
    %1338 = vmatprep.subr.mxu0 0.0
    %1339 = vmatpush1.msra.mxu0 0.0
    %1340 = vmatprep.subr.mxu0 0.0
    %1341 = vmatpush1.msra.mxu0 0.0
    %1342 = vmatprep.subr.mxu0 0.0
    %1343 = vmatpush1.msra.mxu0 0.0
    %1344 = vmatprep.subr.mxu0 0.0
    %1345 = vmatpush1.msra.mxu0 0.0
    %1346 = vmatprep.subr.mxu0 0.0
    %1347 = vmatpush1.msra.mxu0 0.0
    %1348 = vmatprep.subr.mxu0 0.0
    %1349 = vmatpush1.msra.mxu0 0.0
    %1350 = vmatprep.subr.mxu0 0.0
    %1351 = vmatpush1.msra.mxu0 0.0
    %1352 = vmatprep.subr.mxu0 %v1316
    %1353 = vmatpush1.msra.mxu0 %v1315
    %1354 = vmatprep.subr.mxu0 %v1314
    %1355 = vmatpush1.msra.mxu0 %v1313
    %1356 = vmatprep.subr.mxu0 %v1312
    %1357 = vmatpush1.msra.mxu0 %v1311
    %1358 = vmatprep.subr.mxu0 %v1310
    %1359 = vmatpush1.msra.mxu0 %v1309
    %1360 = vmatprep.subr.mxu0 %v1308
    %1361 = vmatpush1.msra.mxu0 %v1307
    %1362 = vmatprep.subr.mxu0 %v1306
    %1363 = vmatpush1.msra.mxu0 %v1305
    %1364 = vmatprep.subr.mxu0 %v1304
    %1365 = vmatpush1.msra.mxu0 %v1303
    %1366 = vmatprep.subr.mxu0 %v1302
    %1367 = vmatpush1.msra.mxu0 %v1301
    %1368 = vmatprep.subr.mxu0 0.0
    %1369 = vmatpush2.msra.mxu0 0.0
    %1370 = vmatprep.subr.mxu0 0.0
    %1371 = vmatpush2.msra.mxu0 0.0
    %1372 = vmatprep.subr.mxu0 0.0
    %1373 = vmatpush2.msra.mxu0 0.0
    %1374 = vmatprep.subr.mxu0 0.0
    %1375 = vmatpush2.msra.mxu0 0.0
    %1376 = vmatprep.subr.mxu0 0.0
    %1377 = vmatpush2.msra.mxu0 0.0
    %1378 = vmatprep.subr.mxu0 0.0
    %1379 = vmatpush2.msra.mxu0 0.0
    %1380 = vmatprep.subr.mxu0 0.0
    %1381 = vmatpush2.msra.mxu0 0.0
    %1382 = vmatprep.subr.mxu0 0.0
    %1383 = vmatpush2.msra.mxu0 0.0
    %1384 = vmatprep.subr.mxu0 0.0
    %1385 = vmatpush2.msra.mxu0 0.0
    %1386 = vmatprep.subr.mxu0 0.0
    %1387 = vmatpush2.msra.mxu0 0.0
    %1388 = vmatprep.subr.mxu0 0.0
    %1389 = vmatpush2.msra.mxu0 0.0
    %1390 = vmatprep.subr.mxu0 0.0
    %1391 = vmatpush2.msra.mxu0 0.0
    %1392 = vmatprep.subr.mxu0 0.0
    %1393 = vmatpush2.msra.mxu0 0.0
    %1394 = vmatprep.subr.mxu0 0.0
    %1395 = vmatpush2.msra.mxu0 0.0
    %1396 = vmatprep.subr.mxu0 0.0
    %1397 = vmatpush2.msra.mxu0 0.0
    %1398 = vmatprep.subr.mxu0 0.0
    %1399 = vmatpush2.msra.mxu0 0.0
    %1400 = vmatprep.mubr.f32.mxu0 0.0
    %1401 = vmatmul.mubr.f32.gmra.mxu0 %v1331
    %v1402 = vpop.f32.mrf.mxu0
    %v1403 = vadd.f32 %v1323, %v1402
    %v1404 = vpop.f32.mrf.mxu0
    %v1405 = vadd.f32 %v1327, %v1404
    %1406 = vmatprep.mubr.f32.mxu0 0.0
    %1407 = vmatmul.mubr.f32.gmra.mxu0 %v1334
    %v1408 = vpop.f32.mrf.mxu0
    %v1409 = vadd.f32 %v1323, %v1408
    %v1410 = vpop.f32.mrf.mxu0
    %v1411 = vadd.f32 %v1327, %v1410
    %1412 = vdwg.mxu0
    %1414 = vrot.lane.b32.xlu0 %v1403, 64
    %v1415 = vpop.permute.xlu0 %1414
    %v1416 = vsel %vm229, %v1403, 0
    %v1418 = vsel %vm229, %v1415, 0
    %1420 = vmatprep.subr.mxu0 0.0
    %1421 = vmatpush1.xpose.msra.mxu0 0.0
    %1422 = vmatprep.subr.mxu0 0.0
    %1423 = vmatpush1.xpose.msra.mxu0 0.0
    %1424 = vmatprep.subr.mxu0 0.0
    %1425 = vmatpush1.xpose.msra.mxu0 0.0
    %1426 = vmatprep.subr.mxu0 0.0
    %1427 = vmatpush1.xpose.msra.mxu0 0.0
    %1428 = vmatprep.subr.mxu0 0.0
    %1429 = vmatpush1.xpose.msra.mxu0 0.0
    %1430 = vmatprep.subr.mxu0 0.0
    %1431 = vmatpush1.xpose.msra.mxu0 0.0
    %1432 = vmatprep.subr.mxu0 0.0
    %1433 = vmatpush1.xpose.msra.mxu0 0.0
    %1434 = vmatprep.subr.mxu0 0.0
    %1435 = vmatpush1.xpose.msra.mxu0 0.0
    %1436 = vmatprep.subr.mxu0 0.0
    %1437 = vmatpush1.xpose.msra.mxu0 0.0
    %1438 = vmatprep.subr.mxu0 0.0
    %1439 = vmatpush1.xpose.msra.mxu0 0.0
    %1440 = vmatprep.subr.mxu0 0.0
    %1441 = vmatpush1.xpose.msra.mxu0 0.0
    %1442 = vmatprep.subr.mxu0 0.0
    %1443 = vmatpush1.xpose.msra.mxu0 0.0
    %1444 = vmatprep.subr.mxu0 0.0
    %1445 = vmatpush1.xpose.msra.mxu0 0.0
    %1446 = vmatprep.subr.mxu0 0.0
    %1447 = vmatpush1.xpose.msra.mxu0 0.0
    %1448 = vmatprep.subr.mxu0 0.0
    %1449 = vmatpush1.xpose.msra.mxu0 0.0
    %1450 = vmatprep.subr.mxu0 0.0
    %1451 = vmatpush1.xpose.msra.mxu0 %v1418
    %1452 = vmatprep.subr.mxu0 0.0
    %1453 = vmatpush2.xpose.msra.mxu0 0.0
    %1454 = vmatprep.subr.mxu0 0.0
    %1455 = vmatpush2.xpose.msra.mxu0 0.0
    %1456 = vmatprep.subr.mxu0 0.0
    %1457 = vmatpush2.xpose.msra.mxu0 0.0
    %1458 = vmatprep.subr.mxu0 0.0
    %1459 = vmatpush2.xpose.msra.mxu0 0.0
    %1460 = vmatprep.subr.mxu0 0.0
    %1461 = vmatpush2.xpose.msra.mxu0 0.0
    %1462 = vmatprep.subr.mxu0 0.0
    %1463 = vmatpush2.xpose.msra.mxu0 0.0
    %1464 = vmatprep.subr.mxu0 0.0
    %1465 = vmatpush2.xpose.msra.mxu0 0.0
    %1466 = vmatprep.subr.mxu0 0.0
    %1467 = vmatpush2.xpose.msra.mxu0 0.0
    %1468 = vmatprep.subr.mxu0 0.0
    %1469 = vmatpush2.xpose.msra.mxu0 0.0
    %1470 = vmatprep.subr.mxu0 0.0
    %1471 = vmatpush2.xpose.msra.mxu0 0.0
    %1472 = vmatprep.subr.mxu0 0.0
    %1473 = vmatpush2.xpose.msra.mxu0 0.0
    %1474 = vmatprep.subr.mxu0 0.0
    %1475 = vmatpush2.xpose.msra.mxu0 0.0
    %1476 = vmatprep.subr.mxu0 0.0
    %1477 = vmatpush2.xpose.msra.mxu0 0.0
    %1478 = vmatprep.subr.mxu0 0.0
    %1479 = vmatpush2.xpose.msra.mxu0 0.0
    %1480 = vmatprep.subr.mxu0 0.0
    %1481 = vmatpush2.xpose.msra.mxu0 0.0
    %1482 = vmatprep.subr.mxu0 0.0
    %1483 = vmatpush2.xpose.msra.mxu0 0.0
    %1484 = vmatprep.mubr.f32.mxu0 0.0
    %1485 = vmatmul.mubr.f32.gmra.mxu0 %v1416
    %v1486 = vpop.f32.mrf.mxu0
    %v1487 = vadd.f32 0.0, %v1486
    %v1488 = vpop.f32.mrf.mxu0
    %1489 = vdwg.mxu0
    %v1490 = vmul.f32 %v1487, 0.17677669
    %v1491 = vadd.f32 %v1490, %v308
    %v1492 = vsel %vm310, %v1491, -inf
    %1493 = vmax.xlane.f32.xlu0 %v1492
    %v1494 = vpop.xlane.xlu0 %1493
    %v1495 = vsub.f32 %v1491, %v1494
    %v1496 = vmul.f32 %v1495, 1.442695
    %v1497 = vpow.pop %v1496
    %v1498 = vsel %vm310, %v1497, 0.0
    %1499 = vadd.xlane.f32.xlu0 %v1498
    %v1500 = vpop.xlane.xlu0 %1499
    %v1501 = vrcp.pop %v1500
    %v1502 = vmul.f32 %v1497, %v1501
    %v1504 = vsel %vm310, %v1502, 0
    %1506 = vmatprep.subr.mxu0 0.0
    %1507 = vmatpush1.msra.mxu0 0.0
    %1508 = vmatprep.subr.mxu0 0.0
    %1509 = vmatpush1.msra.mxu0 0.0
    %1510 = vmatprep.subr.mxu0 0.0
    %1511 = vmatpush1.msra.mxu0 0.0
    %1512 = vmatprep.subr.mxu0 0.0
    %1513 = vmatpush1.msra.mxu0 0.0
    %1514 = vmatprep.subr.mxu0 0.0
    %1515 = vmatpush1.msra.mxu0 0.0
    %1516 = vmatprep.subr.mxu0 0.0
    %1517 = vmatpush1.msra.mxu0 0.0
    %1518 = vmatprep.subr.mxu0 0.0
    %1519 = vmatpush1.msra.mxu0 0.0
    %1520 = vmatprep.subr.mxu0 0.0
    %1521 = vmatpush1.msra.mxu0 0.0
    %1522 = vmatprep.subr.mxu0 0.0
    %1523 = vmatpush1.msra.mxu0 0.0
    %1524 = vmatprep.subr.mxu0 0.0
    %1525 = vmatpush1.msra.mxu0 0.0
    %1526 = vmatprep.subr.mxu0 0.0
    %1527 = vmatpush1.msra.mxu0 0.0
    %1528 = vmatprep.subr.mxu0 0.0
    %1529 = vmatpush1.msra.mxu0 0.0
    %1530 = vmatprep.subr.mxu0 0.0
    %1531 = vmatpush1.msra.mxu0 0.0
    %1532 = vmatprep.subr.mxu0 0.0
    %1533 = vmatpush1.msra.mxu0 0.0
    %1534 = vmatprep.subr.mxu0 0.0
    %1535 = vmatpush1.msra.mxu0 0.0
    %1536 = vmatprep.subr.mxu0 0.0
    %1537 = vmatpush1.msra.mxu0 %v1405
    %1538 = vmatprep.subr.mxu0 0.0
    %1539 = vmatpush2.msra.mxu0 0.0
    %1540 = vmatprep.subr.mxu0 0.0
    %1541 = vmatpush2.msra.mxu0 0.0
    %1542 = vmatprep.subr.mxu0 0.0
    %1543 = vmatpush2.msra.mxu0 0.0
    %1544 = vmatprep.subr.mxu0 0.0
    %1545 = vmatpush2.msra.mxu0 0.0
    %1546 = vmatprep.subr.mxu0 0.0
    %1547 = vmatpush2.msra.mxu0 0.0
    %1548 = vmatprep.subr.mxu0 0.0
    %1549 = vmatpush2.msra.mxu0 0.0
    %1550 = vmatprep.subr.mxu0 0.0
    %1551 = vmatpush2.msra.mxu0 0.0
    %1552 = vmatprep.subr.mxu0 0.0
    %1553 = vmatpush2.msra.mxu0 0.0
    %1554 = vmatprep.subr.mxu0 0.0
    %1555 = vmatpush2.msra.mxu0 0.0
    %1556 = vmatprep.subr.mxu0 0.0
    %1557 = vmatpush2.msra.mxu0 0.0
    %1558 = vmatprep.subr.mxu0 0.0
    %1559 = vmatpush2.msra.mxu0 0.0
    %1560 = vmatprep.subr.mxu0 0.0
    %1561 = vmatpush2.msra.mxu0 0.0
    %1562 = vmatprep.subr.mxu0 0.0
    %1563 = vmatpush2.msra.mxu0 0.0
    %1564 = vmatprep.subr.mxu0 0.0
    %1565 = vmatpush2.msra.mxu0 0.0
    %1566 = vmatprep.subr.mxu0 0.0
    %1567 = vmatpush2.msra.mxu0 0.0
    %1568 = vmatprep.subr.mxu0 0.0
    %1569 = vmatpush2.msra.mxu0 0.0
    %1570 = vmatprep.mubr.f32.mxu0 0.0
    %1571 = vmatmul.mubr.f32.gmra.mxu0 %v1504
    %v1572 = vpop.f32.mrf.mxu0
    %v1573 = vadd.f32 0.0, %v1572
    %v1574 = vpop.f32.mrf.mxu0
    %1575 = vdwg.mxu0
    %1576 = vrot.lane.b32.xlu0 %v1403, 96
    %v1577 = vpop.permute.xlu0 %1576
    %1578 = vrot.lane.b32.xlu0 %v1403, 32
    %v1579 = vpop.permute.xlu0 %1578
    %v1580 = vsel %vm229, %v1577, 0
    %v1582 = vsel %vm229, %v1579, 0
    %1584 = vmatprep.subr.mxu0 0.0
    %1585 = vmatpush1.xpose.msra.mxu0 0.0
    %1586 = vmatprep.subr.mxu0 0.0
    %1587 = vmatpush1.xpose.msra.mxu0 0.0
    %1588 = vmatprep.subr.mxu0 0.0
    %1589 = vmatpush1.xpose.msra.mxu0 0.0
    %1590 = vmatprep.subr.mxu0 0.0
    %1591 = vmatpush1.xpose.msra.mxu0 0.0
    %1592 = vmatprep.subr.mxu0 0.0
    %1593 = vmatpush1.xpose.msra.mxu0 0.0
    %1594 = vmatprep.subr.mxu0 0.0
    %1595 = vmatpush1.xpose.msra.mxu0 0.0
    %1596 = vmatprep.subr.mxu0 0.0
    %1597 = vmatpush1.xpose.msra.mxu0 0.0
    %1598 = vmatprep.subr.mxu0 0.0
    %1599 = vmatpush1.xpose.msra.mxu0 0.0
    %1600 = vmatprep.subr.mxu0 0.0
    %1601 = vmatpush1.xpose.msra.mxu0 0.0
    %1602 = vmatprep.subr.mxu0 0.0
    %1603 = vmatpush1.xpose.msra.mxu0 0.0
    %1604 = vmatprep.subr.mxu0 0.0
    %1605 = vmatpush1.xpose.msra.mxu0 0.0
    %1606 = vmatprep.subr.mxu0 0.0
    %1607 = vmatpush1.xpose.msra.mxu0 0.0
    %1608 = vmatprep.subr.mxu0 0.0
    %1609 = vmatpush1.xpose.msra.mxu0 0.0
    %1610 = vmatprep.subr.mxu0 0.0
    %1611 = vmatpush1.xpose.msra.mxu0 0.0
    %1612 = vmatprep.subr.mxu0 0.0
    %1613 = vmatpush1.xpose.msra.mxu0 0.0
    %1614 = vmatprep.subr.mxu0 0.0
    %1615 = vmatpush1.xpose.msra.mxu0 %v1582
    %1616 = vmatprep.subr.mxu0 0.0
    %1617 = vmatpush2.xpose.msra.mxu0 0.0
    %1618 = vmatprep.subr.mxu0 0.0
    %1619 = vmatpush2.xpose.msra.mxu0 0.0
    %1620 = vmatprep.subr.mxu0 0.0
    %1621 = vmatpush2.xpose.msra.mxu0 0.0
    %1622 = vmatprep.subr.mxu0 0.0
    %1623 = vmatpush2.xpose.msra.mxu0 0.0
    %1624 = vmatprep.subr.mxu0 0.0
    %1625 = vmatpush2.xpose.msra.mxu0 0.0
    %1626 = vmatprep.subr.mxu0 0.0
    %1627 = vmatpush2.xpose.msra.mxu0 0.0
    %1628 = vmatprep.subr.mxu0 0.0
    %1629 = vmatpush2.xpose.msra.mxu0 0.0
    %1630 = vmatprep.subr.mxu0 0.0
    %1631 = vmatpush2.xpose.msra.mxu0 0.0
    %1632 = vmatprep.subr.mxu0 0.0
    %1633 = vmatpush2.xpose.msra.mxu0 0.0
    %1634 = vmatprep.subr.mxu0 0.0
    %1635 = vmatpush2.xpose.msra.mxu0 0.0
    %1636 = vmatprep.subr.mxu0 0.0
    %1637 = vmatpush2.xpose.msra.mxu0 0.0
    %1638 = vmatprep.subr.mxu0 0.0
    %1639 = vmatpush2.xpose.msra.mxu0 0.0
    %1640 = vmatprep.subr.mxu0 0.0
    %1641 = vmatpush2.xpose.msra.mxu0 0.0
    %1642 = vmatprep.subr.mxu0 0.0
    %1643 = vmatpush2.xpose.msra.mxu0 0.0
    %1644 = vmatprep.subr.mxu0 0.0
    %1645 = vmatpush2.xpose.msra.mxu0 0.0
    %1646 = vmatprep.subr.mxu0 0.0
    %1647 = vmatpush2.xpose.msra.mxu0 0.0
    %1648 = vmatprep.mubr.f32.mxu0 0.0
    %1649 = vmatmul.mubr.f32.gmra.mxu0 %v1580
    %v1650 = vpop.f32.mrf.mxu0
    %v1651 = vadd.f32 0.0, %v1650
    %v1652 = vpop.f32.mrf.mxu0
    %1653 = vdwg.mxu0
    %v1654 = vmul.f32 %v1651, 0.17677669
    %v1655 = vadd.f32 %v1654, %v308
    %v1656 = vsel %vm310, %v1655, -inf
    %1657 = vmax.xlane.f32.xlu0 %v1656
    %v1658 = vpop.xlane.xlu0 %1657
    %v1659 = vsub.f32 %v1655, %v1658
    %v1660 = vmul.f32 %v1659, 1.442695
    %v1661 = vpow.pop %v1660
    %v1662 = vsel %vm310, %v1661, 0.0
    %1663 = vadd.xlane.f32.xlu0 %v1662
    %v1664 = vpop.xlane.xlu0 %1663
    %v1665 = vrcp.pop %v1664
    %v1666 = vmul.f32 %v1661, %v1665
    %1668 = vrot.lane.b32.xlu0 %v1405, 96
    %v1669 = vpop.permute.xlu0 %1668
    %v1672 = vsel %vm310, %v1666, 0
    %1674 = vmatprep.subr.mxu0 0.0
    %1675 = vmatpush1.msra.mxu0 0.0
    %1676 = vmatprep.subr.mxu0 0.0
    %1677 = vmatpush1.msra.mxu0 0.0
    %1678 = vmatprep.subr.mxu0 0.0
    %1679 = vmatpush1.msra.mxu0 0.0
    %1680 = vmatprep.subr.mxu0 0.0
    %1681 = vmatpush1.msra.mxu0 0.0
    %1682 = vmatprep.subr.mxu0 0.0
    %1683 = vmatpush1.msra.mxu0 0.0
    %1684 = vmatprep.subr.mxu0 0.0
    %1685 = vmatpush1.msra.mxu0 0.0
    %1686 = vmatprep.subr.mxu0 0.0
    %1687 = vmatpush1.msra.mxu0 0.0
    %1688 = vmatprep.subr.mxu0 0.0
    %1689 = vmatpush1.msra.mxu0 0.0
    %1690 = vmatprep.subr.mxu0 0.0
    %1691 = vmatpush1.msra.mxu0 0.0
    %1692 = vmatprep.subr.mxu0 0.0
    %1693 = vmatpush1.msra.mxu0 0.0
    %1694 = vmatprep.subr.mxu0 0.0
    %1695 = vmatpush1.msra.mxu0 0.0
    %1696 = vmatprep.subr.mxu0 0.0
    %1697 = vmatpush1.msra.mxu0 0.0
    %1698 = vmatprep.subr.mxu0 0.0
    %1699 = vmatpush1.msra.mxu0 0.0
    %1700 = vmatprep.subr.mxu0 0.0
    %1701 = vmatpush1.msra.mxu0 0.0
    %1702 = vmatprep.subr.mxu0 0.0
    %1703 = vmatpush1.msra.mxu0 0.0
    %1704 = vmatprep.subr.mxu0 0.0
    %1705 = vmatpush1.msra.mxu0 %v1669
    %1706 = vmatprep.subr.mxu0 0.0
    %1707 = vmatpush2.msra.mxu0 0.0
    %1708 = vmatprep.subr.mxu0 0.0
    %1709 = vmatpush2.msra.mxu0 0.0
    %1710 = vmatprep.subr.mxu0 0.0
    %1711 = vmatpush2.msra.mxu0 0.0
    %1712 = vmatprep.subr.mxu0 0.0
    %1713 = vmatpush2.msra.mxu0 0.0
    %1714 = vmatprep.subr.mxu0 0.0
    %1715 = vmatpush2.msra.mxu0 0.0
    %1716 = vmatprep.subr.mxu0 0.0
    %1717 = vmatpush2.msra.mxu0 0.0
    %1718 = vmatprep.subr.mxu0 0.0
    %1719 = vmatpush2.msra.mxu0 0.0
    %1720 = vmatprep.subr.mxu0 0.0
    %1721 = vmatpush2.msra.mxu0 0.0
    %1722 = vmatprep.subr.mxu0 0.0
    %1723 = vmatpush2.msra.mxu0 0.0
    %1724 = vmatprep.subr.mxu0 0.0
    %1725 = vmatpush2.msra.mxu0 0.0
    %1726 = vmatprep.subr.mxu0 0.0
    %1727 = vmatpush2.msra.mxu0 0.0
    %1728 = vmatprep.subr.mxu0 0.0
    %1729 = vmatpush2.msra.mxu0 0.0
    %1730 = vmatprep.subr.mxu0 0.0
    %1731 = vmatpush2.msra.mxu0 0.0
    %1732 = vmatprep.subr.mxu0 0.0
    %1733 = vmatpush2.msra.mxu0 0.0
    %1734 = vmatprep.subr.mxu0 0.0
    %1735 = vmatpush2.msra.mxu0 0.0
    %1736 = vmatprep.subr.mxu0 0.0
    %1737 = vmatpush2.msra.mxu0 0.0
    %1738 = vmatprep.mubr.f32.mxu0 0.0
    %1739 = vmatmul.mubr.f32.gmra.mxu0 %v1672
    %v1740 = vpop.f32.mrf.mxu0
    %v1741 = vadd.f32 0.0, %v1740
    %v1742 = vpop.f32.mrf.mxu0
    %1743 = vdwg.mxu0
    %1745 = vrot.lane.b32.xlu0 %v1741, 32
    %v1746 = vpop.permute.xlu0 %1745
    %v1748 = vsel %vm229, %v1573, %v1746
    %1750 = vrot.lane.b32.xlu0 %v1409, 64
    %v1751 = vpop.permute.xlu0 %1750
    %v1752 = vsel %vm229, %v1409, 0
    %v1754 = vsel %vm229, %v1751, 0
    %1756 = vmatprep.subr.mxu0 0.0
    %1757 = vmatpush1.xpose.msra.mxu0 0.0
    %1758 = vmatprep.subr.mxu0 0.0
    %1759 = vmatpush1.xpose.msra.mxu0 0.0
    %1760 = vmatprep.subr.mxu0 0.0
    %1761 = vmatpush1.xpose.msra.mxu0 0.0
    %1762 = vmatprep.subr.mxu0 0.0
    %1763 = vmatpush1.xpose.msra.mxu0 0.0
    %1764 = vmatprep.subr.mxu0 0.0
    %1765 = vmatpush1.xpose.msra.mxu0 0.0
    %1766 = vmatprep.subr.mxu0 0.0
    %1767 = vmatpush1.xpose.msra.mxu0 0.0
    %1768 = vmatprep.subr.mxu0 0.0
    %1769 = vmatpush1.xpose.msra.mxu0 0.0
    %1770 = vmatprep.subr.mxu0 0.0
    %1771 = vmatpush1.xpose.msra.mxu0 0.0
    %1772 = vmatprep.subr.mxu0 0.0
    %1773 = vmatpush1.xpose.msra.mxu0 0.0
    %1774 = vmatprep.subr.mxu0 0.0
    %1775 = vmatpush1.xpose.msra.mxu0 0.0
    %1776 = vmatprep.subr.mxu0 0.0
    %1777 = vmatpush1.xpose.msra.mxu0 0.0
    %1778 = vmatprep.subr.mxu0 0.0
    %1779 = vmatpush1.xpose.msra.mxu0 0.0
    %1780 = vmatprep.subr.mxu0 0.0
    %1781 = vmatpush1.xpose.msra.mxu0 0.0
    %1782 = vmatprep.subr.mxu0 0.0
    %1783 = vmatpush1.xpose.msra.mxu0 0.0
    %1784 = vmatprep.subr.mxu0 0.0
    %1785 = vmatpush1.xpose.msra.mxu0 0.0
    %1786 = vmatprep.subr.mxu0 0.0
    %1787 = vmatpush1.xpose.msra.mxu0 %v1754
    %1788 = vmatprep.subr.mxu0 0.0
    %1789 = vmatpush2.xpose.msra.mxu0 0.0
    %1790 = vmatprep.subr.mxu0 0.0
    %1791 = vmatpush2.xpose.msra.mxu0 0.0
    %1792 = vmatprep.subr.mxu0 0.0
    %1793 = vmatpush2.xpose.msra.mxu0 0.0
    %1794 = vmatprep.subr.mxu0 0.0
    %1795 = vmatpush2.xpose.msra.mxu0 0.0
    %1796 = vmatprep.subr.mxu0 0.0
    %1797 = vmatpush2.xpose.msra.mxu0 0.0
    %1798 = vmatprep.subr.mxu0 0.0
    %1799 = vmatpush2.xpose.msra.mxu0 0.0
    %1800 = vmatprep.subr.mxu0 0.0
    %1801 = vmatpush2.xpose.msra.mxu0 0.0
    %1802 = vmatprep.subr.mxu0 0.0
    %1803 = vmatpush2.xpose.msra.mxu0 0.0
    %1804 = vmatprep.subr.mxu0 0.0
    %1805 = vmatpush2.xpose.msra.mxu0 0.0
    %1806 = vmatprep.subr.mxu0 0.0
    %1807 = vmatpush2.xpose.msra.mxu0 0.0
    %1808 = vmatprep.subr.mxu0 0.0
    %1809 = vmatpush2.xpose.msra.mxu0 0.0
    %1810 = vmatprep.subr.mxu0 0.0
    %1811 = vmatpush2.xpose.msra.mxu0 0.0
    %1812 = vmatprep.subr.mxu0 0.0
    %1813 = vmatpush2.xpose.msra.mxu0 0.0
    %1814 = vmatprep.subr.mxu0 0.0
    %1815 = vmatpush2.xpose.msra.mxu0 0.0
    %1816 = vmatprep.subr.mxu0 0.0
    %1817 = vmatpush2.xpose.msra.mxu0 0.0
    %1818 = vmatprep.subr.mxu0 0.0
    %1819 = vmatpush2.xpose.msra.mxu0 0.0
    %1820 = vmatprep.mubr.f32.mxu0 0.0
    %1821 = vmatmul.mubr.f32.gmra.mxu0 %v1752
    %v1822 = vpop.f32.mrf.mxu0
    %v1823 = vadd.f32 0.0, %v1822
    %v1824 = vpop.f32.mrf.mxu0
    %1825 = vdwg.mxu0
    %v1826 = vmul.f32 %v1823, 0.17677669
    %v1827 = vadd.f32 %v1826, %v649
    %v1828 = vsel %vm310, %v1827, -inf
    %1829 = vmax.xlane.f32.xlu0 %v1828
    %v1830 = vpop.xlane.xlu0 %1829
    %v1831 = vsub.f32 %v1827, %v1830
    %v1832 = vmul.f32 %v1831, 1.442695
    %v1833 = vpow.pop %v1832
    %v1834 = vsel %vm310, %v1833, 0.0
    %1835 = vadd.xlane.f32.xlu0 %v1834
    %v1836 = vpop.xlane.xlu0 %1835
    %v1837 = vrcp.pop %v1836
    %v1838 = vmul.f32 %v1833, %v1837
    %v1840 = vsel %vm310, %v1838, 0
    %1842 = vmatprep.subr.mxu0 0.0
    %1843 = vmatpush1.msra.mxu0 0.0
    %1844 = vmatprep.subr.mxu0 0.0
    %1845 = vmatpush1.msra.mxu0 0.0
    %1846 = vmatprep.subr.mxu0 0.0
    %1847 = vmatpush1.msra.mxu0 0.0
    %1848 = vmatprep.subr.mxu0 0.0
    %1849 = vmatpush1.msra.mxu0 0.0
    %1850 = vmatprep.subr.mxu0 0.0
    %1851 = vmatpush1.msra.mxu0 0.0
    %1852 = vmatprep.subr.mxu0 0.0
    %1853 = vmatpush1.msra.mxu0 0.0
    %1854 = vmatprep.subr.mxu0 0.0
    %1855 = vmatpush1.msra.mxu0 0.0
    %1856 = vmatprep.subr.mxu0 0.0
    %1857 = vmatpush1.msra.mxu0 0.0
    %1858 = vmatprep.subr.mxu0 0.0
    %1859 = vmatpush1.msra.mxu0 0.0
    %1860 = vmatprep.subr.mxu0 0.0
    %1861 = vmatpush1.msra.mxu0 0.0
    %1862 = vmatprep.subr.mxu0 0.0
    %1863 = vmatpush1.msra.mxu0 0.0
    %1864 = vmatprep.subr.mxu0 0.0
    %1865 = vmatpush1.msra.mxu0 0.0
    %1866 = vmatprep.subr.mxu0 0.0
    %1867 = vmatpush1.msra.mxu0 0.0
    %1868 = vmatprep.subr.mxu0 0.0
    %1869 = vmatpush1.msra.mxu0 0.0
    %1870 = vmatprep.subr.mxu0 0.0
    %1871 = vmatpush1.msra.mxu0 0.0
    %1872 = vmatprep.subr.mxu0 0.0
    %1873 = vmatpush1.msra.mxu0 %v1411
    %1874 = vmatprep.subr.mxu0 0.0
    %1875 = vmatpush2.msra.mxu0 0.0
    %1876 = vmatprep.subr.mxu0 0.0
    %1877 = vmatpush2.msra.mxu0 0.0
    %1878 = vmatprep.subr.mxu0 0.0
    %1879 = vmatpush2.msra.mxu0 0.0
    %1880 = vmatprep.subr.mxu0 0.0
    %1881 = vmatpush2.msra.mxu0 0.0
    %1882 = vmatprep.subr.mxu0 0.0
    %1883 = vmatpush2.msra.mxu0 0.0
    %1884 = vmatprep.subr.mxu0 0.0
    %1885 = vmatpush2.msra.mxu0 0.0
    %1886 = vmatprep.subr.mxu0 0.0
    %1887 = vmatpush2.msra.mxu0 0.0
    %1888 = vmatprep.subr.mxu0 0.0
    %1889 = vmatpush2.msra.mxu0 0.0
    %1890 = vmatprep.subr.mxu0 0.0
    %1891 = vmatpush2.msra.mxu0 0.0
    %1892 = vmatprep.subr.mxu0 0.0
    %1893 = vmatpush2.msra.mxu0 0.0
    %1894 = vmatprep.subr.mxu0 0.0
    %1895 = vmatpush2.msra.mxu0 0.0
    %1896 = vmatprep.subr.mxu0 0.0
    %1897 = vmatpush2.msra.mxu0 0.0
    %1898 = vmatprep.subr.mxu0 0.0
    %1899 = vmatpush2.msra.mxu0 0.0
    %1900 = vmatprep.subr.mxu0 0.0
    %1901 = vmatpush2.msra.mxu0 0.0
    %1902 = vmatprep.subr.mxu0 0.0
    %1903 = vmatpush2.msra.mxu0 0.0
    %1904 = vmatprep.subr.mxu0 0.0
    %1905 = vmatpush2.msra.mxu0 0.0
    %1906 = vmatprep.mubr.f32.mxu0 0.0
    %1907 = vmatmul.mubr.f32.gmra.mxu0 %v1840
    %v1908 = vpop.f32.mrf.mxu0
    %v1909 = vadd.f32 0.0, %v1908
    %v1910 = vpop.f32.mrf.mxu0
    %1911 = vdwg.mxu0
    %1912 = vrot.lane.b32.xlu0 %v1409, 96
    %v1913 = vpop.permute.xlu0 %1912
    %1914 = vrot.lane.b32.xlu0 %v1409, 32
    %v1915 = vpop.permute.xlu0 %1914
    %v1916 = vsel %vm229, %v1913, 0
    %v1918 = vsel %vm229, %v1915, 0
    %1920 = vmatprep.subr.mxu0 0.0
    %1921 = vmatpush1.xpose.msra.mxu0 0.0
    %1922 = vmatprep.subr.mxu0 0.0
    %1923 = vmatpush1.xpose.msra.mxu0 0.0
    %1924 = vmatprep.subr.mxu0 0.0
    %1925 = vmatpush1.xpose.msra.mxu0 0.0
    %1926 = vmatprep.subr.mxu0 0.0
    %1927 = vmatpush1.xpose.msra.mxu0 0.0
    %1928 = vmatprep.subr.mxu0 0.0
    %1929 = vmatpush1.xpose.msra.mxu0 0.0
    %1930 = vmatprep.subr.mxu0 0.0
    %1931 = vmatpush1.xpose.msra.mxu0 0.0
    %1932 = vmatprep.subr.mxu0 0.0
    %1933 = vmatpush1.xpose.msra.mxu0 0.0
    %1934 = vmatprep.subr.mxu0 0.0
    %1935 = vmatpush1.xpose.msra.mxu0 0.0
    %1936 = vmatprep.subr.mxu0 0.0
    %1937 = vmatpush1.xpose.msra.mxu0 0.0
    %1938 = vmatprep.subr.mxu0 0.0
    %1939 = vmatpush1.xpose.msra.mxu0 0.0
    %1940 = vmatprep.subr.mxu0 0.0
    %1941 = vmatpush1.xpose.msra.mxu0 0.0
    %1942 = vmatprep.subr.mxu0 0.0
    %1943 = vmatpush1.xpose.msra.mxu0 0.0
    %1944 = vmatprep.subr.mxu0 0.0
    %1945 = vmatpush1.xpose.msra.mxu0 0.0
    %1946 = vmatprep.subr.mxu0 0.0
    %1947 = vmatpush1.xpose.msra.mxu0 0.0
    %1948 = vmatprep.subr.mxu0 0.0
    %1949 = vmatpush1.xpose.msra.mxu0 0.0
    %1950 = vmatprep.subr.mxu0 0.0
    %1951 = vmatpush1.xpose.msra.mxu0 %v1918
    %1952 = vmatprep.subr.mxu0 0.0
    %1953 = vmatpush2.xpose.msra.mxu0 0.0
    %1954 = vmatprep.subr.mxu0 0.0
    %1955 = vmatpush2.xpose.msra.mxu0 0.0
    %1956 = vmatprep.subr.mxu0 0.0
    %1957 = vmatpush2.xpose.msra.mxu0 0.0
    %1958 = vmatprep.subr.mxu0 0.0
    %1959 = vmatpush2.xpose.msra.mxu0 0.0
    %1960 = vmatprep.subr.mxu0 0.0
    %1961 = vmatpush2.xpose.msra.mxu0 0.0
    %1962 = vmatprep.subr.mxu0 0.0
    %1963 = vmatpush2.xpose.msra.mxu0 0.0
    %1964 = vmatprep.subr.mxu0 0.0
    %1965 = vmatpush2.xpose.msra.mxu0 0.0
    %1966 = vmatprep.subr.mxu0 0.0
    %1967 = vmatpush2.xpose.msra.mxu0 0.0
    %1968 = vmatprep.subr.mxu0 0.0
    %1969 = vmatpush2.xpose.msra.mxu0 0.0
    %1970 = vmatprep.subr.mxu0 0.0
    %1971 = vmatpush2.xpose.msra.mxu0 0.0
    %1972 = vmatprep.subr.mxu0 0.0
    %1973 = vmatpush2.xpose.msra.mxu0 0.0
    %1974 = vmatprep.subr.mxu0 0.0
    %1975 = vmatpush2.xpose.msra.mxu0 0.0
    %1976 = vmatprep.subr.mxu0 0.0
    %1977 = vmatpush2.xpose.msra.mxu0 0.0
    %1978 = vmatprep.subr.mxu0 0.0
    %1979 = vmatpush2.xpose.msra.mxu0 0.0
    %1980 = vmatprep.subr.mxu0 0.0
    %1981 = vmatpush2.xpose.msra.mxu0 0.0
    %1982 = vmatprep.subr.mxu0 0.0
    %1983 = vmatpush2.xpose.msra.mxu0 0.0
    %1984 = vmatprep.mubr.f32.mxu0 0.0
    %1985 = vmatmul.mubr.f32.gmra.mxu0 %v1916
    %v1986 = vpop.f32.mrf.mxu0
    %v1987 = vadd.f32 0.0, %v1986
    %v1988 = vpop.f32.mrf.mxu0
    %1989 = vdwg.mxu0
    %v1990 = vmul.f32 %v1987, 0.17677669
    %v1991 = vadd.f32 %v1990, %v649
    %v1992 = vsel %vm310, %v1991, -inf
    %1993 = vmax.xlane.f32.xlu0 %v1992
    %v1994 = vpop.xlane.xlu0 %1993
    %v1995 = vsub.f32 %v1991, %v1994
    %v1996 = vmul.f32 %v1995, 1.442695
    %v1997 = vpow.pop %v1996
    %v1998 = vsel %vm310, %v1997, 0.0
    %1999 = vadd.xlane.f32.xlu0 %v1998
    %v2000 = vpop.xlane.xlu0 %1999
    %v2001 = vrcp.pop %v2000
    %v2002 = vmul.f32 %v1997, %v2001
    %2004 = vrot.lane.b32.xlu0 %v1411, 96
    %v2005 = vpop.permute.xlu0 %2004
    %v2008 = vsel %vm310, %v2002, 0
    %2010 = vmatprep.subr.mxu0 0.0
    %2011 = vmatpush1.msra.mxu0 0.0
    %2012 = vmatprep.subr.mxu0 0.0
    %2013 = vmatpush1.msra.mxu0 0.0
    %2014 = vmatprep.subr.mxu0 0.0
    %2015 = vmatpush1.msra.mxu0 0.0
    %2016 = vmatprep.subr.mxu0 0.0
    %2017 = vmatpush1.msra.mxu0 0.0
    %2018 = vmatprep.subr.mxu0 0.0
    %2019 = vmatpush1.msra.mxu0 0.0
    %2020 = vmatprep.subr.mxu0 0.0
    %2021 = vmatpush1.msra.mxu0 0.0
    %2022 = vmatprep.subr.mxu0 0.0
    %2023 = vmatpush1.msra.mxu0 0.0
    %2024 = vmatprep.subr.mxu0 0.0
    %2025 = vmatpush1.msra.mxu0 0.0
    %2026 = vmatprep.subr.mxu0 0.0
    %2027 = vmatpush1.msra.mxu0 0.0
    %2028 = vmatprep.subr.mxu0 0.0
    %2029 = vmatpush1.msra.mxu0 0.0
    %2030 = vmatprep.subr.mxu0 0.0
    %2031 = vmatpush1.msra.mxu0 0.0
    %2032 = vmatprep.subr.mxu0 0.0
    %2033 = vmatpush1.msra.mxu0 0.0
    %2034 = vmatprep.subr.mxu0 0.0
    %2035 = vmatpush1.msra.mxu0 0.0
    %2036 = vmatprep.subr.mxu0 0.0
    %2037 = vmatpush1.msra.mxu0 0.0
    %2038 = vmatprep.subr.mxu0 0.0
    %2039 = vmatpush1.msra.mxu0 0.0
    %2040 = vmatprep.subr.mxu0 0.0
    %2041 = vmatpush1.msra.mxu0 %v2005
    %2042 = vmatprep.subr.mxu0 0.0
    %2043 = vmatpush2.msra.mxu0 0.0
    %2044 = vmatprep.subr.mxu0 0.0
    %2045 = vmatpush2.msra.mxu0 0.0
    %2046 = vmatprep.subr.mxu0 0.0
    %2047 = vmatpush2.msra.mxu0 0.0
    %2048 = vmatprep.subr.mxu0 0.0
    %2049 = vmatpush2.msra.mxu0 0.0
    %2050 = vmatprep.subr.mxu0 0.0
    %2051 = vmatpush2.msra.mxu0 0.0
    %2052 = vmatprep.subr.mxu0 0.0
    %2053 = vmatpush2.msra.mxu0 0.0
    %2054 = vmatprep.subr.mxu0 0.0
    %2055 = vmatpush2.msra.mxu0 0.0
    %2056 = vmatprep.subr.mxu0 0.0
    %2057 = vmatpush2.msra.mxu0 0.0
    %2058 = vmatprep.subr.mxu0 0.0
    %2059 = vmatpush2.msra.mxu0 0.0
    %2060 = vmatprep.subr.mxu0 0.0
    %2061 = vmatpush2.msra.mxu0 0.0
    %2062 = vmatprep.subr.mxu0 0.0
    %2063 = vmatpush2.msra.mxu0 0.0
    %2064 = vmatprep.subr.mxu0 0.0
    %2065 = vmatpush2.msra.mxu0 0.0
    %2066 = vmatprep.subr.mxu0 0.0
    %2067 = vmatpush2.msra.mxu0 0.0
    %2068 = vmatprep.subr.mxu0 0.0
    %2069 = vmatpush2.msra.mxu0 0.0
    %2070 = vmatprep.subr.mxu0 0.0
    %2071 = vmatpush2.msra.mxu0 0.0
    %2072 = vmatprep.subr.mxu0 0.0
    %2073 = vmatpush2.msra.mxu0 0.0
    %2074 = vmatprep.mubr.f32.mxu0 0.0
    %2075 = vmatmul.mubr.f32.gmra.mxu0 %v2008
    %v2076 = vpop.f32.mrf.mxu0
    %v2077 = vadd.f32 0.0, %v2076
    %v2078 = vpop.f32.mrf.mxu0
    %2079 = vdwg.mxu0
    %2081 = vrot.lane.b32.xlu0 %v2077, 32
    %v2082 = vpop.permute.xlu0 %2081
    %v2084 = vsel %vm229, %v1909, %v2082
    %s2085 = scalar_lea.vmem %s6, 64
    %v2086 = vld [vmem:[%s2085] sm:$0xff]
    %v2087 = vld [vmem:[%s2085 + $0x8] sm:$0xff]
    %v2088 = vld [vmem:[%s2085 + $0x10] sm:$0xff]
    %v2089 = vld [vmem:[%s2085 + $0x18] sm:$0xff]
    %v2090 = vld [vmem:[%s2085 + $0x20] sm:$0xff]
    %v2091 = vld [vmem:[%s2085 + $0x28] sm:$0xff]
    %v2092 = vld [vmem:[%s2085 + $0x30] sm:$0xff]
    %v2093 = vld [vmem:[%s2085 + $0x38] sm:$0xff]
    %s2094 = scalar_lea.vmem %s7, 1
    %v2095 = vld [vmem:[%s2094] sm:$0x1]
    %v2097 = vlaneseq
    %v2098 = vshrl.u32 %v2097, 7
    %v2099 = vsub.s32 0, %v2098
    %v2100 = vrot.slane %v2095, %v2099
    %v2103 = vsel %vm71, %v1748, 0
    %v2106 = vsel %vm71, %v2084, 0
    %2108 = vmatprep.subr.mxu0 0.0
    %2109 = vmatpush1.msra.mxu0 0.0
    %2110 = vmatprep.subr.mxu0 0.0
    %2111 = vmatpush1.msra.mxu0 0.0
    %2112 = vmatprep.subr.mxu0 0.0
    %2113 = vmatpush1.msra.mxu0 0.0
    %2114 = vmatprep.subr.mxu0 0.0
    %2115 = vmatpush1.msra.mxu0 0.0
    %2116 = vmatprep.subr.mxu0 0.0
    %2117 = vmatpush1.msra.mxu0 0.0
    %2118 = vmatprep.subr.mxu0 0.0
    %2119 = vmatpush1.msra.mxu0 0.0
    %2120 = vmatprep.subr.mxu0 0.0
    %2121 = vmatpush1.msra.mxu0 0.0
    %2122 = vmatprep.subr.mxu0 0.0
    %2123 = vmatpush1.msra.mxu0 0.0
    %2124 = vmatprep.subr.mxu0 0.0
    %2125 = vmatpush1.msra.mxu0 %v2093
    %2126 = vmatprep.subr.mxu0 0.0
    %2127 = vmatpush1.msra.mxu0 %v2092
    %2128 = vmatprep.subr.mxu0 0.0
    %2129 = vmatpush1.msra.mxu0 %v2091
    %2130 = vmatprep.subr.mxu0 0.0
    %2131 = vmatpush1.msra.mxu0 %v2090
    %2132 = vmatprep.subr.mxu0 0.0
    %2133 = vmatpush1.msra.mxu0 %v2089
    %2134 = vmatprep.subr.mxu0 0.0
    %2135 = vmatpush1.msra.mxu0 %v2088
    %2136 = vmatprep.subr.mxu0 0.0
    %2137 = vmatpush1.msra.mxu0 %v2087
    %2138 = vmatprep.subr.mxu0 0.0
    %2139 = vmatpush1.msra.mxu0 %v2086
    %2140 = vmatprep.subr.mxu0 0.0
    %2141 = vmatpush2.msra.mxu0 0.0
    %2142 = vmatprep.subr.mxu0 0.0
    %2143 = vmatpush2.msra.mxu0 0.0
    %2144 = vmatprep.subr.mxu0 0.0
    %2145 = vmatpush2.msra.mxu0 0.0
    %2146 = vmatprep.subr.mxu0 0.0
    %2147 = vmatpush2.msra.mxu0 0.0
    %2148 = vmatprep.subr.mxu0 0.0
    %2149 = vmatpush2.msra.mxu0 0.0
    %2150 = vmatprep.subr.mxu0 0.0
    %2151 = vmatpush2.msra.mxu0 0.0
    %2152 = vmatprep.subr.mxu0 0.0
    %2153 = vmatpush2.msra.mxu0 0.0
    %2154 = vmatprep.subr.mxu0 0.0
    %2155 = vmatpush2.msra.mxu0 0.0
    %2156 = vmatprep.subr.mxu0 0.0
    %2157 = vmatpush2.msra.mxu0 0.0
    %2158 = vmatprep.subr.mxu0 0.0
    %2159 = vmatpush2.msra.mxu0 0.0
    %2160 = vmatprep.subr.mxu0 0.0
    %2161 = vmatpush2.msra.mxu0 0.0
    %2162 = vmatprep.subr.mxu0 0.0
    %2163 = vmatpush2.msra.mxu0 0.0
    %2164 = vmatprep.subr.mxu0 0.0
    %2165 = vmatpush2.msra.mxu0 0.0
    %2166 = vmatprep.subr.mxu0 0.0
    %2167 = vmatpush2.msra.mxu0 0.0
    %2168 = vmatprep.subr.mxu0 0.0
    %2169 = vmatpush2.msra.mxu0 0.0
    %2170 = vmatprep.subr.mxu0 0.0
    %2171 = vmatpush2.msra.mxu0 0.0
    %2172 = vmatprep.mubr.f32.mxu0 0.0
    %2173 = vmatmul.mubr.f32.gmra.mxu0 %v2103
    %v2174 = vpop.f32.mrf.mxu0
    %v2175 = vadd.f32 %v2100, %v2174
    %v2176 = vpop.f32.mrf.mxu0
    %2177 = vmatprep.mubr.f32.mxu0 0.0
    %2178 = vmatmul.mubr.f32.gmra.mxu0 %v2106
    %v2179 = vpop.f32.mrf.mxu0
    %v2180 = vadd.f32 %v2100, %v2179
    %v2181 = vpop.f32.mrf.mxu0
    %2182 = vdwg.mxu0
    %v2183 = vadd.f32 %v2175, %v1298
    %v2184 = vadd.f32 %v2180, %v1299
    %s2185 = scalar_lea.vmem %s8, 1
    %v2186 = vld [vmem:[%s2185] sm:$0x1]
    %s2187 = scalar_lea.vmem %s9, 1
    %v2188 = vld [vmem:[%s2187] sm:$0x1]
    %v2189 = vsel %vm71, %v2183, 0.0
    %2190 = vadd.xlane.f32.xlu0 %v2189
    %v2191 = vpop.xlane.xlu0 %2190
    %v2192 = vsel %vm71, %v2184, 0.0
    %2193 = vadd.xlane.f32.xlu0 %v2192
    %v2194 = vpop.xlane.xlu0 %2193
    %v2195 = vmul.f32 %v2191, %v78
    %v2196 = vmul.f32 %v2194, %v78
    %v2197 = vsub.f32 %v2183, %v2195
    %v2198 = vsub.f32 %v2184, %v2196
    %v2199 = vmul.f32 %v2197, %v2197
    %v2200 = vmul.f32 %v2198, %v2198
    %v2201 = vsel %vm71, %v2199, 0.0
    %2202 = vadd.xlane.f32.xlu0 %v2201
    %v2203 = vpop.xlane.xlu0 %2202
    %v2204 = vsel %vm71, %v2200, 0.0
    %2205 = vadd.xlane.f32.xlu0 %v2204
    %v2206 = vpop.xlane.xlu0 %2205
    %v2207 = vmul.f32 %v2203, %v78
    %v2208 = vmul.f32 %v2206, %v78
    %v2209 = vadd.f32 %v2207, 1e-12
    %v2210 = vadd.f32 %v2208, 1e-12
    %v2211 = vrsqrt.pop %v2209
    %v2212 = vrsqrt.pop %v2210
    %v2213 = vmul.f32 %v2197, %v2211
    %v2214 = vmul.f32 %v2198, %v2212
    %v2216 = vlaneseq
    %v2217 = vshrl.u32 %v2216, 7
    %v2218 = vsub.s32 0, %v2217
    %v2219 = vrot.slane %v2186, %v2218
    %v2221 = vmul.f32 %v2213, %v2219
    %v2222 = vmul.f32 %v2214, %v2219
    %v2224 = vlaneseq
    %v2225 = vshrl.u32 %v2224, 7
    %v2226 = vsub.s32 0, %v2225
    %v2227 = vrot.slane %v2188, %v2226
    %v2229 = vadd.f32 %v2221, %v2227
    %v2230 = vadd.f32 %v2222, %v2227
    %s2231 = scalar_lea.vmem %s10, 64
    %v2232 = vld [vmem:[%s2231] sm:$0xff]
    %v2233 = vld [vmem:[%s2231 + $0x8] sm:$0xff]
    %v2234 = vld [vmem:[%s2231 + $0x10] sm:$0xff]
    %v2235 = vld [vmem:[%s2231 + $0x18] sm:$0xff]
    %v2236 = vld [vmem:[%s2231 + $0x20] sm:$0xff]
    %v2237 = vld [vmem:[%s2231 + $0x28] sm:$0xff]
    %v2238 = vld [vmem:[%s2231 + $0x30] sm:$0xff]
    %v2239 = vld [vmem:[%s2231 + $0x38] sm:$0xff]
    %s2240 = scalar_lea.vmem %s11, 1
    %v2241 = vld [vmem:[%s2240] sm:$0x1]
    %v2243 = vlaneseq
    %v2244 = vshrl.u32 %v2243, 7
    %v2245 = vsub.s32 0, %v2244
    %v2246 = vrot.slane %v2241, %v2245
    %v2249 = vsel %vm71, %v2229, 0
    %v2252 = vsel %vm71, %v2230, 0
    %2254 = vmatprep.subr.mxu0 0.0
    %2255 = vmatpush1.msra.mxu0 0.0
    %2256 = vmatprep.subr.mxu0 0.0
    %2257 = vmatpush1.msra.mxu0 0.0
    %2258 = vmatprep.subr.mxu0 0.0
    %2259 = vmatpush1.msra.mxu0 0.0
    %2260 = vmatprep.subr.mxu0 0.0
    %2261 = vmatpush1.msra.mxu0 0.0
    %2262 = vmatprep.subr.mxu0 0.0
    %2263 = vmatpush1.msra.mxu0 0.0
    %2264 = vmatprep.subr.mxu0 0.0
    %2265 = vmatpush1.msra.mxu0 0.0
    %2266 = vmatprep.subr.mxu0 0.0
    %2267 = vmatpush1.msra.mxu0 0.0
    %2268 = vmatprep.subr.mxu0 0.0
    %2269 = vmatpush1.msra.mxu0 0.0
    %2270 = vmatprep.subr.mxu0 0.0
    %2271 = vmatpush1.msra.mxu0 %v2239
    %2272 = vmatprep.subr.mxu0 0.0
    %2273 = vmatpush1.msra.mxu0 %v2238
    %2274 = vmatprep.subr.mxu0 0.0
    %2275 = vmatpush1.msra.mxu0 %v2237
    %2276 = vmatprep.subr.mxu0 0.0
    %2277 = vmatpush1.msra.mxu0 %v2236
    %2278 = vmatprep.subr.mxu0 0.0
    %2279 = vmatpush1.msra.mxu0 %v2235
    %2280 = vmatprep.subr.mxu0 0.0
    %2281 = vmatpush1.msra.mxu0 %v2234
    %2282 = vmatprep.subr.mxu0 0.0
    %2283 = vmatpush1.msra.mxu0 %v2233
    %2284 = vmatprep.subr.mxu0 0.0
    %2285 = vmatpush1.msra.mxu0 %v2232
    %2286 = vmatprep.subr.mxu0 0.0
    %2287 = vmatpush2.msra.mxu0 0.0
    %2288 = vmatprep.subr.mxu0 0.0
    %2289 = vmatpush2.msra.mxu0 0.0
    %2290 = vmatprep.subr.mxu0 0.0
    %2291 = vmatpush2.msra.mxu0 0.0
    %2292 = vmatprep.subr.mxu0 0.0
    %2293 = vmatpush2.msra.mxu0 0.0
    %2294 = vmatprep.subr.mxu0 0.0
    %2295 = vmatpush2.msra.mxu0 0.0
    %2296 = vmatprep.subr.mxu0 0.0
    %2297 = vmatpush2.msra.mxu0 0.0
    %2298 = vmatprep.subr.mxu0 0.0
    %2299 = vmatpush2.msra.mxu0 0.0
    %2300 = vmatprep.subr.mxu0 0.0
    %2301 = vmatpush2.msra.mxu0 0.0
    %2302 = vmatprep.subr.mxu0 0.0
    %2303 = vmatpush2.msra.mxu0 0.0
    %2304 = vmatprep.subr.mxu0 0.0
    %2305 = vmatpush2.msra.mxu0 0.0
    %2306 = vmatprep.subr.mxu0 0.0
    %2307 = vmatpush2.msra.mxu0 0.0
    %2308 = vmatprep.subr.mxu0 0.0
    %2309 = vmatpush2.msra.mxu0 0.0
    %2310 = vmatprep.subr.mxu0 0.0
    %2311 = vmatpush2.msra.mxu0 0.0
    %2312 = vmatprep.subr.mxu0 0.0
    %2313 = vmatpush2.msra.mxu0 0.0
    %2314 = vmatprep.subr.mxu0 0.0
    %2315 = vmatpush2.msra.mxu0 0.0
    %2316 = vmatprep.subr.mxu0 0.0
    %2317 = vmatpush2.msra.mxu0 0.0
    %2318 = vmatprep.mubr.f32.mxu0 0.0
    %2319 = vmatmul.mubr.f32.gmra.mxu0 %v2249
    %v2320 = vpop.f32.mrf.mxu0
    %v2321 = vadd.f32 %v2246, %v2320
    %v2322 = vpop.f32.mrf.mxu0
    %2323 = vmatprep.mubr.f32.mxu0 0.0
    %2324 = vmatmul.mubr.f32.gmra.mxu0 %v2252
    %v2325 = vpop.f32.mrf.mxu0
    %v2326 = vadd.f32 %v2246, %v2325
    %v2327 = vpop.f32.mrf.mxu0
    %2328 = vdwg.mxu0
    %v2329 = vmul.f32 %v2321, 0.5
    %v2330 = vmul.f32 %v2326, 0.5
    %v2331 = vmul.f32 %v2321, 0.70710677
    %v2332 = vmul.f32 %v2326, 0.70710677
    %v2333 = verf.f32.pop %v2331
    %v2334 = verf.f32.pop %v2332
    %v2335 = vadd.f32 %v2333, 1.0
    %v2336 = vadd.f32 %v2334, 1.0
    %v2337 = vmul.f32 %v2329, %v2335
    %v2338 = vmul.f32 %v2330, %v2336
    %s2339 = scalar_lea.vmem %s12, 128
    %v2340 = vld [vmem:[%s2339] sm:$0xff]
    %v2341 = vld [vmem:[%s2339 + $0x8] sm:$0xff]
    %v2342 = vld [vmem:[%s2339 + $0x10] sm:$0xff]
    %v2343 = vld [vmem:[%s2339 + $0x18] sm:$0xff]
    %v2344 = vld [vmem:[%s2339 + $0x20] sm:$0xff]
    %v2345 = vld [vmem:[%s2339 + $0x28] sm:$0xff]
    %v2346 = vld [vmem:[%s2339 + $0x30] sm:$0xff]
    %v2347 = vld [vmem:[%s2339 + $0x38] sm:$0xff]
    %v2348 = vld [vmem:[%s2339 + $0x40] sm:$0xff]
    %v2349 = vld [vmem:[%s2339 + $0x48] sm:$0xff]
    %v2350 = vld [vmem:[%s2339 + $0x50] sm:$0xff]
    %v2351 = vld [vmem:[%s2339 + $0x58] sm:$0xff]
    %v2352 = vld [vmem:[%s2339 + $0x60] sm:$0xff]
    %v2353 = vld [vmem:[%s2339 + $0x68] sm:$0xff]
    %v2354 = vld [vmem:[%s2339 + $0x70] sm:$0xff]
    %v2355 = vld [vmem:[%s2339 + $0x78] sm:$0xff]
    %s2356 = scalar_lea.vmem %s13, 1
    %v2357 = vld [vmem:[%s2356] sm:$0x1]
    %v2359 = vlaneseq
    %v2360 = vshrl.u32 %v2359, 7
    %v2361 = vsub.s32 0, %v2360
    %v2362 = vrot.slane %v2357, %v2361
    %2364 = vmatprep.subr.mxu0 0.0
    %2365 = vmatpush1.msra.mxu0 %v2355
    %2366 = vmatprep.subr.mxu0 0.0
    %2367 = vmatpush1.msra.mxu0 %v2354
    %2368 = vmatprep.subr.mxu0 0.0
    %2369 = vmatpush1.msra.mxu0 %v2353
    %2370 = vmatprep.subr.mxu0 0.0
    %2371 = vmatpush1.msra.mxu0 %v2352
    %2372 = vmatprep.subr.mxu0 0.0
    %2373 = vmatpush1.msra.mxu0 %v2351
    %2374 = vmatprep.subr.mxu0 0.0
    %2375 = vmatpush1.msra.mxu0 %v2350
    %2376 = vmatprep.subr.mxu0 0.0
    %2377 = vmatpush1.msra.mxu0 %v2349
    %2378 = vmatprep.subr.mxu0 0.0
    %2379 = vmatpush1.msra.mxu0 %v2348
    %2380 = vmatprep.subr.mxu0 0.0
    %2381 = vmatpush1.msra.mxu0 %v2347
    %2382 = vmatprep.subr.mxu0 0.0
    %2383 = vmatpush1.msra.mxu0 %v2346
    %2384 = vmatprep.subr.mxu0 0.0
    %2385 = vmatpush1.msra.mxu0 %v2345
    %2386 = vmatprep.subr.mxu0 0.0
    %2387 = vmatpush1.msra.mxu0 %v2344
    %2388 = vmatprep.subr.mxu0 0.0
    %2389 = vmatpush1.msra.mxu0 %v2343
    %2390 = vmatprep.subr.mxu0 0.0
    %2391 = vmatpush1.msra.mxu0 %v2342
    %2392 = vmatprep.subr.mxu0 0.0
    %2393 = vmatpush1.msra.mxu0 %v2341
    %2394 = vmatprep.subr.mxu0 0.0
    %2395 = vmatpush1.msra.mxu0 %v2340
    %2396 = vmatprep.subr.mxu0 0.0
    %2397 = vmatpush2.msra.mxu0 0.0
    %2398 = vmatprep.subr.mxu0 0.0
    %2399 = vmatpush2.msra.mxu0 0.0
    %2400 = vmatprep.subr.mxu0 0.0
    %2401 = vmatpush2.msra.mxu0 0.0
    %2402 = vmatprep.subr.mxu0 0.0
    %2403 = vmatpush2.msra.mxu0 0.0
    %2404 = vmatprep.subr.mxu0 0.0
    %2405 = vmatpush2.msra.mxu0 0.0
    %2406 = vmatprep.subr.mxu0 0.0
    %2407 = vmatpush2.msra.mxu0 0.0
    %2408 = vmatprep.subr.mxu0 0.0
    %2409 = vmatpush2.msra.mxu0 0.0
    %2410 = vmatprep.subr.mxu0 0.0
    %2411 = vmatpush2.msra.mxu0 0.0
    %2412 = vmatprep.subr.mxu0 0.0
    %2413 = vmatpush2.msra.mxu0 0.0
    %2414 = vmatprep.subr.mxu0 0.0
    %2415 = vmatpush2.msra.mxu0 0.0
    %2416 = vmatprep.subr.mxu0 0.0
    %2417 = vmatpush2.msra.mxu0 0.0
    %2418 = vmatprep.subr.mxu0 0.0
    %2419 = vmatpush2.msra.mxu0 0.0
    %2420 = vmatprep.subr.mxu0 0.0
    %2421 = vmatpush2.msra.mxu0 0.0
    %2422 = vmatprep.subr.mxu0 0.0
    %2423 = vmatpush2.msra.mxu0 0.0
    %2424 = vmatprep.subr.mxu0 0.0
    %2425 = vmatpush2.msra.mxu0 0.0
    %2426 = vmatprep.subr.mxu0 0.0
    %2427 = vmatpush2.msra.mxu0 0.0
    %2428 = vmatprep.mubr.f32.mxu0 0.0
    %2429 = vmatmul.mubr.f32.gmra.mxu0 %v2337
    %v2430 = vpop.f32.mrf.mxu0
    %v2431 = vadd.f32 %v2362, %v2430
    %v2432 = vpop.f32.mrf.mxu0
    %2433 = vmatprep.mubr.f32.mxu0 0.0
    %2434 = vmatmul.mubr.f32.gmra.mxu0 %v2338
    %v2435 = vpop.f32.mrf.mxu0
    %v2436 = vadd.f32 %v2362, %v2435
    %v2437 = vpop.f32.mrf.mxu0
    %2438 = vdwg.mxu0
    %v2439 = vadd.f32 %v2431, %v2229
    %v2440 = vadd.f32 %v2436, %v2230
    %s2441 = scalar_lea.vmem %s14, 1
    %v2442 = vld [vmem:[%s2441] sm:$0x1]
    %s2443 = scalar_lea.vmem %s15, 1
    %v2444 = vld [vmem:[%s2443] sm:$0x1]
    %v2445 = vsel %vm71, %v2439, 0.0
    %2446 = vadd.xlane.f32.xlu0 %v2445
    %v2447 = vpop.xlane.xlu0 %2446
    %v2448 = vsel %vm71, %v2440, 0.0
    %2449 = vadd.xlane.f32.xlu0 %v2448
    %v2450 = vpop.xlane.xlu0 %2449
    %v2451 = vmul.f32 %v2447, %v78
    %v2452 = vmul.f32 %v2450, %v78
    %v2453 = vsub.f32 %v2439, %v2451
    %v2454 = vsub.f32 %v2440, %v2452
    %v2455 = vmul.f32 %v2453, %v2453
    %v2456 = vmul.f32 %v2454, %v2454
    %v2457 = vsel %vm71, %v2455, 0.0
    %2458 = vadd.xlane.f32.xlu0 %v2457
    %v2459 = vpop.xlane.xlu0 %2458
    %v2460 = vsel %vm71, %v2456, 0.0
    %2461 = vadd.xlane.f32.xlu0 %v2460
    %v2462 = vpop.xlane.xlu0 %2461
    %v2463 = vmul.f32 %v2459, %v78
    %v2464 = vmul.f32 %v2462, %v78
    %v2465 = vadd.f32 %v2463, 1e-12
    %v2466 = vadd.f32 %v2464, 1e-12
    %v2467 = vrsqrt.pop %v2465
    %v2468 = vrsqrt.pop %v2466
    %v2469 = vmul.f32 %v2453, %v2467
    %v2470 = vmul.f32 %v2454, %v2468
    %v2472 = vlaneseq
    %v2473 = vshrl.u32 %v2472, 7
    %v2474 = vsub.s32 0, %v2473
    %v2475 = vrot.slane %v2442, %v2474
    %v2477 = vmul.f32 %v2469, %v2475
    %v2478 = vmul.f32 %v2470, %v2475
    %v2480 = vlaneseq
    %v2481 = vshrl.u32 %v2480, 7
    %v2482 = vsub.s32 0, %v2481
    %v2483 = vrot.slane %v2444, %v2482
    %v2485 = vadd.f32 %v2477, %v2483
    %v2486 = vadd.f32 %v2478, %v2483
    %v2488 = vrot.slane %v2486, 7
    %vm2490 = vcmask 1040384
    %v2491 = vsel %vm2490, %v2485, %v2488
    %v2492 = vld [vmem:[%s16] sm:$0xff]
    %v2493 = vld [vmem:[%s16 + $0x8] sm:$0xff]
    %v2494 = vld [vmem:[%s16 + $0x10] sm:$0xff]
    %v2495 = vld [vmem:[%s16 + $0x18] sm:$0xff]
    %v2496 = vld [vmem:[%s16 + $0x20] sm:$0xff]
    %v2497 = vld [vmem:[%s16 + $0x28] sm:$0xff]
    %v2498 = vld [vmem:[%s16 + $0x30] sm:$0xff]
    %v2499 = vld [vmem:[%s16 + $0x38] sm:$0xff]
    %v2500 = vld [vmem:[%s17] sm:$0x1]
    %v2502 = vlaneseq
    %v2503 = vshrl.u32 %v2502, 7
    %v2504 = vsub.s32 0, %v2503
    %v2505 = vrot.slane %v2500, %v2504
    %v2508 = vsel %vm71, %v2491, 0
    %2510 = vmatprep.subr.mxu0 0.0
    %2511 = vmatpush1.msra.mxu0 0.0
    %2512 = vmatprep.subr.mxu0 0.0
    %2513 = vmatpush1.msra.mxu0 0.0
    %2514 = vmatprep.subr.mxu0 0.0
    %2515 = vmatpush1.msra.mxu0 0.0
    %2516 = vmatprep.subr.mxu0 0.0
    %2517 = vmatpush1.msra.mxu0 0.0
    %2518 = vmatprep.subr.mxu0 0.0
    %2519 = vmatpush1.msra.mxu0 0.0
    %2520 = vmatprep.subr.mxu0 0.0
    %2521 = vmatpush1.msra.mxu0 0.0
    %2522 = vmatprep.subr.mxu0 0.0
    %2523 = vmatpush1.msra.mxu0 0.0
    %2524 = vmatprep.subr.mxu0 0.0
    %2525 = vmatpush1.msra.mxu0 0.0
    %2526 = vmatprep.subr.mxu0 0.0
    %2527 = vmatpush1.msra.mxu0 %v2499
    %2528 = vmatprep.subr.mxu0 0.0
    %2529 = vmatpush1.msra.mxu0 %v2498
    %2530 = vmatprep.subr.mxu0 0.0
    %2531 = vmatpush1.msra.mxu0 %v2497
    %2532 = vmatprep.subr.mxu0 0.0
    %2533 = vmatpush1.msra.mxu0 %v2496
    %2534 = vmatprep.subr.mxu0 0.0
    %2535 = vmatpush1.msra.mxu0 %v2495
    %2536 = vmatprep.subr.mxu0 0.0
    %2537 = vmatpush1.msra.mxu0 %v2494
    %2538 = vmatprep.subr.mxu0 0.0
    %2539 = vmatpush1.msra.mxu0 %v2493
    %2540 = vmatprep.subr.mxu0 0.0
    %2541 = vmatpush1.msra.mxu0 %v2492
    %2542 = vmatprep.subr.mxu0 0.0
    %2543 = vmatpush2.msra.mxu0 0.0
    %2544 = vmatprep.subr.mxu0 0.0
    %2545 = vmatpush2.msra.mxu0 0.0
    %2546 = vmatprep.subr.mxu0 0.0
    %2547 = vmatpush2.msra.mxu0 0.0
    %2548 = vmatprep.subr.mxu0 0.0
    %2549 = vmatpush2.msra.mxu0 0.0
    %2550 = vmatprep.subr.mxu0 0.0
    %2551 = vmatpush2.msra.mxu0 0.0
    %2552 = vmatprep.subr.mxu0 0.0
    %2553 = vmatpush2.msra.mxu0 0.0
    %2554 = vmatprep.subr.mxu0 0.0
    %2555 = vmatpush2.msra.mxu0 0.0
    %2556 = vmatprep.subr.mxu0 0.0
    %2557 = vmatpush2.msra.mxu0 0.0
    %2558 = vmatprep.subr.mxu0 0.0
    %2559 = vmatpush2.msra.mxu0 0.0
    %2560 = vmatprep.subr.mxu0 0.0
    %2561 = vmatpush2.msra.mxu0 0.0
    %2562 = vmatprep.subr.mxu0 0.0
    %2563 = vmatpush2.msra.mxu0 0.0
    %2564 = vmatprep.subr.mxu0 0.0
    %2565 = vmatpush2.msra.mxu0 0.0
    %2566 = vmatprep.subr.mxu0 0.0
    %2567 = vmatpush2.msra.mxu0 0.0
    %2568 = vmatprep.subr.mxu0 0.0
    %2569 = vmatpush2.msra.mxu0 0.0
    %2570 = vmatprep.subr.mxu0 0.0
    %2571 = vmatpush2.msra.mxu0 0.0
    %2572 = vmatprep.subr.mxu0 0.0
    %2573 = vmatpush2.msra.mxu0 0.0
    %2574 = vmatprep.mubr.f32.mxu0 0.0
    %2575 = vmatmul.mubr.f32.gmra.mxu0 %v2508
    %v2576 = vpop.f32.mrf.mxu0
    %v2577 = vadd.f32 %v2505, %v2576
    %v2578 = vpop.f32.mrf.mxu0
    %2579 = vdwg.mxu0
    %v2580 = vtanh.pop %v2577
    %v2581 = vld [vmem:[%s18] sm:$0xff]
    %v2582 = vld [vmem:[%s18 + $0x8] sm:$0xff]
    %v2583 = vld [vmem:[%s18 + $0x10] sm:$0xff]
    %v2584 = vld [vmem:[%s18 + $0x18] sm:$0xff]
    %v2585 = vld [vmem:[%s18 + $0x20] sm:$0xff]
    %v2586 = vld [vmem:[%s18 + $0x28] sm:$0xff]
    %v2587 = vld [vmem:[%s18 + $0x30] sm:$0xff]
    %v2588 = vld [vmem:[%s18 + $0x38] sm:$0xff]
    %v2589 = vld [vmem:[%s19] sm:$0x1]
    %v2591 = vlaneseq
    %v2592 = vshrl.u32 %v2591, 7
    %v2593 = vsub.s32 0, %v2592
    %v2594 = vrot.slane %v2589, %v2593
    %v2597 = vsel %vm71, %v2580, 0
    %2599 = vmatprep.subr.mxu0 0.0
    %2600 = vmatpush1.msra.mxu0 0.0
    %2601 = vmatprep.subr.mxu0 0.0
    %2602 = vmatpush1.msra.mxu0 0.0
    %2603 = vmatprep.subr.mxu0 0.0
    %2604 = vmatpush1.msra.mxu0 0.0
    %2605 = vmatprep.subr.mxu0 0.0
    %2606 = vmatpush1.msra.mxu0 0.0
    %2607 = vmatprep.subr.mxu0 0.0
    %2608 = vmatpush1.msra.mxu0 0.0
    %2609 = vmatprep.subr.mxu0 0.0
    %2610 = vmatpush1.msra.mxu0 0.0
    %2611 = vmatprep.subr.mxu0 0.0
    %2612 = vmatpush1.msra.mxu0 0.0
    %2613 = vmatprep.subr.mxu0 0.0
    %2614 = vmatpush1.msra.mxu0 0.0
    %2615 = vmatprep.subr.mxu0 0.0
    %2616 = vmatpush1.msra.mxu0 %v2588
    %2617 = vmatprep.subr.mxu0 0.0
    %2618 = vmatpush1.msra.mxu0 %v2587
    %2619 = vmatprep.subr.mxu0 0.0
    %2620 = vmatpush1.msra.mxu0 %v2586
    %2621 = vmatprep.subr.mxu0 0.0
    %2622 = vmatpush1.msra.mxu0 %v2585
    %2623 = vmatprep.subr.mxu0 0.0
    %2624 = vmatpush1.msra.mxu0 %v2584
    %2625 = vmatprep.subr.mxu0 0.0
    %2626 = vmatpush1.msra.mxu0 %v2583
    %2627 = vmatprep.subr.mxu0 0.0
    %2628 = vmatpush1.msra.mxu0 %v2582
    %2629 = vmatprep.subr.mxu0 0.0
    %2630 = vmatpush1.msra.mxu0 %v2581
    %2631 = vmatprep.subr.mxu0 0.0
    %2632 = vmatpush2.msra.mxu0 0.0
    %2633 = vmatprep.subr.mxu0 0.0
    %2634 = vmatpush2.msra.mxu0 0.0
    %2635 = vmatprep.subr.mxu0 0.0
    %2636 = vmatpush2.msra.mxu0 0.0
    %2637 = vmatprep.subr.mxu0 0.0
    %2638 = vmatpush2.msra.mxu0 0.0
    %2639 = vmatprep.subr.mxu0 0.0
    %2640 = vmatpush2.msra.mxu0 0.0
    %2641 = vmatprep.subr.mxu0 0.0
    %2642 = vmatpush2.msra.mxu0 0.0
    %2643 = vmatprep.subr.mxu0 0.0
    %2644 = vmatpush2.msra.mxu0 0.0
    %2645 = vmatprep.subr.mxu0 0.0
    %2646 = vmatpush2.msra.mxu0 0.0
    %2647 = vmatprep.subr.mxu0 0.0
    %2648 = vmatpush2.msra.mxu0 0.0
    %2649 = vmatprep.subr.mxu0 0.0
    %2650 = vmatpush2.msra.mxu0 0.0
    %2651 = vmatprep.subr.mxu0 0.0
    %2652 = vmatpush2.msra.mxu0 0.0
    %2653 = vmatprep.subr.mxu0 0.0
    %2654 = vmatpush2.msra.mxu0 0.0
    %2655 = vmatprep.subr.mxu0 0.0
    %2656 = vmatpush2.msra.mxu0 0.0
    %2657 = vmatprep.subr.mxu0 0.0
    %2658 = vmatpush2.msra.mxu0 0.0
    %2659 = vmatprep.subr.mxu0 0.0
    %2660 = vmatpush2.msra.mxu0 0.0
    %2661 = vmatprep.subr.mxu0 0.0
    %2662 = vmatpush2.msra.mxu0 0.0
    %2663 = vmatprep.mubr.f32.mxu0 0.0
    %2664 = vmatmul.mubr.f32.gmra.mxu0 %v2597
    %v2665 = vpop.f32.mrf.mxu0
    %v2666 = vadd.f32 %v2594, %v2665
    %v2667 = vpop.f32.mrf.mxu0
    %2668 = vdwg.mxu0
    %2669 = vst [vmem:[#allocation2] sm:$0x3] %v2666
    // Predicated region
    $region82: #{bert_classification_forward.1} parent=1 // pred_check
      _
    $region83: #{bert_classification_forward.1} parent=1 // pred_check_branch
      %2671 = sbr.rel (0) target = $region85
    $region84: #{bert_classification_forward.1} parent=1 // pred_region
      %s2673 = ssub.s32 32, 32
      %2674 = vsyncadd [#allocation3], %s2673
      %s2676 = sshll.u32 [#allocation2], 4
      %s2677 = int_to_ptr.vmem [resolvable:$true] %s2676
      %2679 = dma.vmem_to_hbm [thread:$0]  %s2677, 32, %s20, [#allocation3]
    $region85: #{bert_classification_forward.1} parent=1 // pred_fallthru
      _
    // Predicated region
    $region86: #{bert_classification_forward.1} parent=1 // pred_check
      _
    $region87: #{bert_classification_forward.1} parent=1 // pred_check_branch
      %2681 = sbr.rel (0) target = $region89
    $region88: #{bert_classification_forward.1} parent=1 // pred_region
      %2682 = dma.done [#allocation3], 32
    $region89: #{bert_classification_forward.1} parent=1 // pred_fallthru
      _
    %2683 = vsyncpa [#allocation3], 1

</llo_original>
